<compile_context>
chip_gen: v6e
topology: v6e:2x2x1
jax: 0.10.0
libtpu: 0.0.40
codegen_flags: <defaults>
</compile_context>

<pallas_src>
import jax
import jax.numpy as jnp
from jax.experimental import pallas as pl
from jax.experimental.pallas import tpu as pltpu


def _pick_tile(n, prefs):
    for p in prefs:
        if n % p == 0:
            return p
    return n


def _scaled_dot_bias_kernel(g_ref, w_ref, bm_ref, o_ref):
    """out[b, h, w] = sum_c g[b, h, w, c] * w[h, w, c] + bm[h, w].

    w already carries the 1/C mean factor; bm is the channel-mean of the bias.
    C sits on the lane axis, so the multiply is pure VPU work and the reduce is
    a single XLU lane-reduce per 128-lane group (no relayout, no MXU).
    """
    w = w_ref[...]                      # (ht, W, C)
    bm = bm_ref[...]                    # (ht, W)
    nb = g_ref.shape[0]                 # static
    for b in range(nb):                 # static unroll: temp stays (ht, W, C)
        o_ref[b] = jnp.sum(g_ref[b] * w, axis=-1) + bm


def depthwise_scale_bias_channel_mean(g, w_hwc, bias_mean, *, h_tile=None):
    """g: (B, H, W, C) f32 (channels-last gather output);
    w_hwc: (H, W, C) f32 weight already scaled by 1/C;
    bias_mean: (H, W) f32 channel-mean of the bias.
    Returns (B, H, W) f32."""
    B, H, W, C = g.shape
    assert w_hwc.shape == (H, W, C) and bias_mean.shape == (H, W)

    if h_tile is None:
        # Keep double-buffered blocks ~<= 24 MiB for the full 256^3 case while
        # keeping the step count low (per-step pipeline overhead ~0.35 us).
        h_tile = _pick_tile(H, (16, 8, 4, 2, 1))
    grid = (H // h_tile,)

    bytes_accessed = 4 * (g.size + w_hwc.size + bias_mean.size + B * H * W)
    cost = pl.CostEstimate(
        flops=2 * B * H * W * C, transcendentals=0, bytes_accessed=bytes_accessed
    )

    return pl.pallas_call(
        _scaled_dot_bias_kernel,
        out_shape=jax.ShapeDtypeStruct((B, H, W), jnp.float32),
        grid_spec=pltpu.PrefetchScalarGridSpec(
            num_scalar_prefetch=0,
            grid=grid,
            in_specs=[
                pl.BlockSpec((B, h_tile, W, C), lambda h: (0, h, 0, 0)),
                pl.BlockSpec((h_tile, W, C), lambda h: (h, 0, 0)),
                pl.BlockSpec((h_tile, W), lambda h: (h, 0)),
            ],
            out_specs=pl.BlockSpec((B, h_tile, W), lambda h: (0, h, 0)),
        ),
        compiler_params=pltpu.CompilerParams(
            dimension_semantics=("parallel",),
            vmem_limit_bytes=48 * 1024 * 1024,  # fits v7x's 64 MiB physical VMEM
        ),
        cost_estimate=cost,
    )(g, w_hwc, bias_mean)


def forward(x, ttds_x, ttds_y, conv_w, conv_b):
    """testnet_big.forward.

    x:       (B, A1, A2, C) f32
    ttds_*:  (H, W) int32 index maps into (A1, A2)
    conv_w / conv_b: (C*H*W,) per-channel depthwise 1x1 conv weight / bias
    returns  (B, 1, H, W) f32

    The module hard-codes C = H = W = 256; generalized here to any C = H = W
    so the demo can run at a small size with identical semantics.
    """
    B, _, _, C = x.shape
    H, W = ttds_x.shape
    assert conv_w.shape == (C * H * W,) and conv_b.shape == (C * H * W,)

    inv_c = jnp.float32(1.0 / C)
    # Channels-last weight with the 1/C mean factor folded in (static prep,
    # outside the kernel's hot loop).
    w_hwc = jnp.transpose(conv_w.reshape(C, H, W), (1, 2, 0)) * inv_c
    # The bias is data independent: its channel-mean is a single (H, W) map.
    bias_mean = jnp.sum(conv_b.reshape(C, H * W), axis=0).reshape(H, W) * inv_c

    # x[:, ttds_x, ttds_y] -> (B, H, W, C).  The kernel consumes it channels
    # last, so the NHWC->NCHW permute of the PyTorch reference never
    # materializes.
    # TODO(synk): the data-dependent per-pixel gather stays in XLA; a static
    # Pallas BlockSpec cannot express an arbitrary per-pixel gather.
    g = x[:, ttds_x, ttds_y]

    out = depthwise_scale_bias_channel_mean(g, w_hwc, bias_mean)  # (B, H, W)
    return out[:, None]                                           # (B, 1, H, W)


if __name__ == "__main__":
    key = jax.random.PRNGKey(0)
    kx, ki, kj, kw, kb = jax.random.split(key, 5)

    # Small shapes consistent with the module's structure (C = H = W = S).
    B = 2
    S = 64            # channel / spatial size (module hard-codes 256)
    A1 = A2 = 16      # source grid that ttds_x / ttds_y index into

    x = jax.random.normal(kx, (B, A1, A2, S), jnp.float32)
    ttds_x = jax.random.randint(ki, (S, S), 0, A1)
    ttds_y = jax.random.randint(kj, (S, S), 0, A2)

    # nn.Conv2d(G, G, 1, groups=G): weight (G,1,1,1), bias (G,); fan_in = 1 so
    # PyTorch's default init bound is 1.0 for both.
    G = S * S * S
    conv_w = jax.random.uniform(kw, (G,), jnp.float32, -1.0, 1.0)
    conv_b = jax.random.uniform(kb, (G,), jnp.float32, -1.0, 1.0)

    run = jax.jit(forward)
    out = jax.block_until_ready(run(x, ttds_x, ttds_y, conv_w, conv_b))

    assert out.shape == (B, 1, S, S), out.shape
    assert bool(jnp.all(jnp.isfinite(out)))

    # Pure-JAX reference (mirrors the PyTorch graph: gather -> permute ->
    # per-channel w*g + b -> mean over channels).
    g_ref = x[:, ttds_x, ttds_y]
    g_nchw = jnp.transpose(g_ref, (0, 3, 1, 2))
    w3 = conv_w.reshape(S, S, S)
    b3 = conv_b.reshape(S, S, S)
    ref = jnp.mean(g_nchw * w3[None] + b3[None], axis=1, keepdims=True)
    assert jnp.allclose(out, ref, rtol=1e-4, atol=1e-4), float(
        jnp.max(jnp.abs(out - ref))
    )

    print("KERNEL_OK")
</pallas_src>

<mosaic_0001>
module attributes {stable_mosaic.version = 11 : i64} {
  func.func @_scaled_dot_bias_kernel(%arg0: i32, %arg1: memref<2x16x64x64xf32, #tpu.memory_space<vmem>>, %arg2: memref<16x64x64xf32, #tpu.memory_space<vmem>>, %arg3: memref<16x64xf32, #tpu.memory_space<vmem>>, %arg4: memref<2x16x64xf32, #tpu.memory_space<vmem>>) attributes {dimension_semantics = [#tpu.dimension_semantics<parallel>], iteration_bounds = array<i64: 4>, scalar_prefetch = 0 : i64, scratch_operands = 0 : i64, tpu.core_type = #tpu.core_type<tc>, window_params = [{transform_indices = @transform_0, window_bounds = array<i64: 2, 16, 64, 64>}, {transform_indices = @transform_1, window_bounds = array<i64: 16, 64, 64>}, {transform_indices = @transform_2, window_bounds = array<i64: 16, 64>}, {transform_indices = @transform_3, window_bounds = array<i64: 2, 16, 64>}]} {
    %c0 = arith.constant 0 : index
    %c0_0 = arith.constant 0 : index
    %c0_1 = arith.constant 0 : index
    %0 = vector.load %arg2[%c0, %c0_0, %c0_1] : memref<16x64x64xf32, #tpu.memory_space<vmem>>, vector<16x64x64xf32>
    %c0_2 = arith.constant 0 : index
    %c0_3 = arith.constant 0 : index
    %1 = vector.load %arg3[%c0_2, %c0_3] : memref<16x64xf32, #tpu.memory_space<vmem>>, vector<16x64xf32>
    %c0_4 = arith.constant 0 : index
    %c0_5 = arith.constant 0 : index
    %c0_6 = arith.constant 0 : index
    %c0_7 = arith.constant 0 : index
    %2 = vector.load %arg1[%c0_4, %c0_5, %c0_6, %c0_7] : memref<2x16x64x64xf32, #tpu.memory_space<vmem>>, vector<1x16x64x64xf32>
    %3 = vector.shape_cast %2 : vector<1x16x64x64xf32> to vector<16x64x64xf32>
    %4 = arith.mulf %3, %0 : vector<16x64x64xf32>
    %cst = arith.constant dense<0.000000e+00> : vector<16x64xf32>
    %5 = vector.multi_reduction <add>, %4, %cst [2] : vector<16x64x64xf32> to vector<16x64xf32>
    %6 = arith.addf %5, %1 : vector<16x64xf32>
    %c0_8 = arith.constant 0 : index
    %c0_9 = arith.constant 0 : index
    %c0_10 = arith.constant 0 : index
    %7 = vector.load %arg4[%c0_8, %c0_9, %c0_10] : memref<2x16x64xf32, #tpu.memory_space<vmem>>, vector<1x16x64xf32>
    %8 = vector.shape_cast %7 : vector<1x16x64xf32> to vector<16x64xf32>
    %9 = vector.shape_cast %6 : vector<16x64xf32> to vector<1x16x64xf32>
    tpu.vector_store %arg4[%c0_8, %c0_9, %c0_10], %9 {strides = array<i32>} : memref<2x16x64xf32, #tpu.memory_space<vmem>>, vector<1x16x64xf32>,
    %c1 = arith.constant 1 : index
    %c0_11 = arith.constant 0 : index
    %c0_12 = arith.constant 0 : index
    %c0_13 = arith.constant 0 : index
    %10 = vector.load %arg1[%c1, %c0_11, %c0_12, %c0_13] : memref<2x16x64x64xf32, #tpu.memory_space<vmem>>, vector<1x16x64x64xf32>
    %11 = vector.shape_cast %10 : vector<1x16x64x64xf32> to vector<16x64x64xf32>
    %12 = arith.mulf %11, %0 : vector<16x64x64xf32>
    %cst_14 = arith.constant dense<0.000000e+00> : vector<16x64xf32>
    %13 = vector.multi_reduction <add>, %12, %cst_14 [2] : vector<16x64x64xf32> to vector<16x64xf32>
    %14 = arith.addf %13, %1 : vector<16x64xf32>
    %c1_15 = arith.constant 1 : index
    %c0_16 = arith.constant 0 : index
    %c0_17 = arith.constant 0 : index
    %15 = vector.load %arg4[%c1_15, %c0_16, %c0_17] : memref<2x16x64xf32, #tpu.memory_space<vmem>>, vector<1x16x64xf32>
    %16 = vector.shape_cast %15 : vector<1x16x64xf32> to vector<16x64xf32>
    %17 = vector.shape_cast %14 : vector<16x64xf32> to vector<1x16x64xf32>
    tpu.vector_store %arg4[%c1_15, %c0_16, %c0_17], %17 {strides = array<i32>} : memref<2x16x64xf32, #tpu.memory_space<vmem>>, vector<1x16x64xf32>,
    return
  }
  func.func @transform_0(%arg0: i32) -> (i32, i32, i32, i32) {
    %c0_i32 = arith.constant 0 : i32
    %c0_i32_0 = arith.constant 0 : i32
    %c0_i32_1 = arith.constant 0 : i32
    %c0_i32_2 = arith.constant 0 : i32
    return %c0_i32, %arg0, %c0_i32_0, %c0_i32_1 : i32, i32, i32, i32
  }
  func.func @transform_1(%arg0: i32) -> (i32, i32, i32) {
    %c0_i32 = arith.constant 0 : i32
    %c0_i32_0 = arith.constant 0 : i32
    %c0_i32_1 = arith.constant 0 : i32
    return %arg0, %c0_i32, %c0_i32_0 : i32, i32, i32
  }
  func.func @transform_2(%arg0: i32) -> (i32, i32) {
    %c0_i32 = arith.constant 0 : i32
    %c0_i32_0 = arith.constant 0 : i32
    return %arg0, %c0_i32 : i32, i32
  }
  func.func @transform_3(%arg0: i32) -> (i32, i32, i32) {
    %c0_i32 = arith.constant 0 : i32
    %c0_i32_0 = arith.constant 0 : i32
    %c0_i32_1 = arith.constant 0 : i32
    return %c0_i32, %arg0, %c0_i32_0 : i32, i32, i32
  }
}

</mosaic_0001>

<llo_original>
// kernel: forward.1
$region0: #{forward.1}
  #allocation0 [shape = 'u32[]', space=smem, size = 0x4, offset = 0x4, fixed_abs, tag = 'smem constant byte address 0x4 - core index']
  #allocation1 [shape = 'u32[144,128]{1,0:T(1,128)}', space=vmem, size = 0x12000, scoped, tag = 'internal scratch']
  #allocation5 [shape = 's32[]', space=sflag, size = 0x4, offset = 0, fixed_abs, tag = 'sflag constant byte address 0x0 - dummy sync flag']
  %s0 = inlined_call_operand.vmem [shape: f32[2,64,64,64], index: 0, kind: input, shape index: {}]
  %s1 = inlined_call_operand.vmem [shape: f32[64,64,64], index: 1, kind: input, shape index: {}]
  %s2 = inlined_call_operand.vmem [shape: f32[64,64], index: 2, kind: input, shape index: {}]
  %s3 = inlined_call_operand.hbm [shape: f32[2,64,64], index: 3, kind: output, shape index: {}]
  %s4 = sld [smem:[#allocation0]]
  $region83: #{forward.1} parent=0
    _
  %s6 = ssub.s32 1, %s4
  %s7 = scalar_select 0, %s6, %s4
  $region1: #{forward.1} parent=0
    #allocation2 [shape = 'u8[2097152]{0}', space=vmem, size = 0x200000, scoped, tag = 'input window, operand 0']
    #allocation3 [shape = 'u8[32768]{0}', space=vmem, size = 0x8000, scoped, tag = 'output window, operand 0']
    #allocation4 [shape = 's32[2]{0}', space=sflag, size = 0x8, scoped, tag = 'scoped memory for forward.1']
    %8 = vsyncpa [#allocation4], 0
    %s9 = scalar_lea.sflag [#allocation4], 1
    %10 = vsyncpa %s9, 0
    loop: start=0, step=1, limit=6
    $region2: #{forward.1} parent=1 // loop_pre_header
      _
    $region3: #{forward.1} parent=1 // loop_header
      %s12 = sphi 0, %s16
      %p13 = scmp.ge.s32.totalorder %s12, 6
      %s22 = sphi 0, %s24
      %s25 = sphi 0, %s22
      %s26 = sphi 0, %s25
      %s42 = sphi 0, %s26
      %s48 = sphi 0, %s50
      %s51 = sphi 0, %s48
      %s52 = sphi 0, %s51
      %s68 = sphi 0, %s52
      %s74 = sphi 0, %s76
      %s77 = sphi 0, %s74
      %s78 = sphi 0, %s77
      %s94 = sphi 0, %s78
      %s100 = sphi 0, %s102
      %s103 = sphi 0, %s100
      %s104 = sphi 0, %s103
      %s120 = sphi 0, %s104
    $region4: #{forward.1} parent=1 // loop_header_branch
      %15 = sbr.rel (%p13) target = $region8
    $region5: #{forward.1} parent=1 // loop_body
      %s17 = ssub.s32 %s12, 1
      %s18 = ssub.s32 %s12, 2
      %s19 = sadd.s32 %s12, 1
      %s20 = ssub.s32 %s12, %s19
      %p21 = scmp.eq.s32.totalorder %s20, 0
      %s23 = sadd.s32 %s22, 1
      %s24 = scalar_select %p21, %s22, %s23
      %p27 = pneg %p21
      %p28 = scmp.eq.s32.totalorder %s12, 3
      %p29 = por %p27, %p28
      %p30 = scmp.ne.s32.totalorder %s22, %s25
      %p31 = scmp.eq.s32.totalorder %s12, 0
      %p32 = por %p30, %p31
      %p33 = scmp.ne.s32.totalorder %s22, %s25
      %p34 = scmp.eq.s32.totalorder %s17, 3
      %p35 = por %p33, %p34
      %p36 = scmp.ne.s32.totalorder %s25, %s26
      %p37 = scmp.eq.s32.totalorder %s17, 0
      %p38 = por %p36, %p37
      %p39 = scmp.ne.s32.totalorder %s25, %s26
      %p40 = scmp.eq.s32.totalorder %s18, 3
      %p41 = por %p39, %p40
      %p43 = scmp.ne.s32.totalorder %s26, %s42
      %p44 = scmp.eq.s32.totalorder %s18, 0
      %p45 = por %p43, %p44
      %s46 = ssub.s32 %s12, %s19
      %p47 = scmp.eq.s32.totalorder %s46, 0
      %s49 = sadd.s32 %s48, 1
      %s50 = scalar_select %p47, %s48, %s49
      %p53 = pneg %p47
      %p54 = scmp.eq.s32.totalorder %s12, 3
      %p55 = por %p53, %p54
      %p56 = scmp.ne.s32.totalorder %s48, %s51
      %p57 = scmp.eq.s32.totalorder %s12, 0
      %p58 = por %p56, %p57
      %p59 = scmp.ne.s32.totalorder %s48, %s51
      %p60 = scmp.eq.s32.totalorder %s17, 3
      %p61 = por %p59, %p60
      %p62 = scmp.ne.s32.totalorder %s51, %s52
      %p63 = scmp.eq.s32.totalorder %s17, 0
      %p64 = por %p62, %p63
      %p65 = scmp.ne.s32.totalorder %s51, %s52
      %p66 = scmp.eq.s32.totalorder %s18, 3
      %p67 = por %p65, %p66
      %p69 = scmp.ne.s32.totalorder %s52, %s68
      %p70 = scmp.eq.s32.totalorder %s18, 0
      %p71 = por %p69, %p70
      %s72 = ssub.s32 %s12, %s19
      %p73 = scmp.eq.s32.totalorder %s72, 0
      %s75 = sadd.s32 %s74, 1
      %s76 = scalar_select %p73, %s74, %s75
      %p79 = pneg %p73
      %p80 = scmp.eq.s32.totalorder %s12, 3
      %p81 = por %p79, %p80
      %p82 = scmp.ne.s32.totalorder %s74, %s77
      %p83 = scmp.eq.s32.totalorder %s12, 0
      %p84 = por %p82, %p83
      %p85 = scmp.ne.s32.totalorder %s74, %s77
      %p86 = scmp.eq.s32.totalorder %s17, 3
      %p87 = por %p85, %p86
      %p88 = scmp.ne.s32.totalorder %s77, %s78
      %p89 = scmp.eq.s32.totalorder %s17, 0
      %p90 = por %p88, %p89
      %p91 = scmp.ne.s32.totalorder %s77, %s78
      %p92 = scmp.eq.s32.totalorder %s18, 3
      %p93 = por %p91, %p92
      %p95 = scmp.ne.s32.totalorder %s78, %s94
      %p96 = scmp.eq.s32.totalorder %s18, 0
      %p97 = por %p95, %p96
      %s98 = ssub.s32 %s12, %s19
      %p99 = scmp.eq.s32.totalorder %s98, 0
      %s101 = sadd.s32 %s100, 1
      %s102 = scalar_select %p99, %s100, %s101
      %p105 = pneg %p99
      %p106 = scmp.eq.s32.totalorder %s12, 3
      %p107 = por %p105, %p106
      %p108 = scmp.ne.s32.totalorder %s100, %s103
      %p109 = scmp.eq.s32.totalorder %s12, 0
      %p110 = por %p108, %p109
      %p111 = scmp.ne.s32.totalorder %s100, %s103
      %p112 = scmp.eq.s32.totalorder %s17, 3
      %p113 = por %p111, %p112
      %p114 = scmp.ne.s32.totalorder %s103, %s104
      %p115 = scmp.eq.s32.totalorder %s17, 0
      %p116 = por %p114, %p115
      %p117 = scmp.ne.s32.totalorder %s103, %s104
      %p118 = scmp.eq.s32.totalorder %s18, 3
      %p119 = por %p117, %p118
      %p121 = scmp.ne.s32.totalorder %s104, %s120
      %p122 = scmp.eq.s32.totalorder %s18, 0
      %p123 = por %p121, %p122
      %p124 = scmp.le.s32.totalorder 1, %s12
      %p125 = scmp.lt.s32.totalorder %s12, 5
      %p126 = pnand %p124, %p125
      %p127 = pneg %p126
      // Predicated region
      $region9: #{forward.1} parent=5 // pred_check
        _
      $region10: #{forward.1} parent=5 // pred_check_branch
        %129 = sbr.rel (%p126) target = $region12
      $region11: #{forward.1} parent=5 // pred_region
        %s130 = ssub.s32 %s12, 1
      $region12: #{forward.1} parent=5 // pred_fallthru
        _
      %p131 = scmp.lt.s32.totalorder %s12, 4
      // Predicated region
      $region13: #{forward.1} parent=5 // pred_check
        %p132 = pneg %p131
      $region14: #{forward.1} parent=5 // pred_check_branch
        %134 = sbr.rel (%p132) target = $region16
      $region15: #{forward.1} parent=5 // pred_region
        // Predicated region
        $region17: #{forward.1} parent=15 // pred_check
          %p135 = pneg %p32
        $region18: #{forward.1} parent=15 // pred_check_branch
          %137 = sbr.rel (%p135) target = $region20
        $region19: #{forward.1} parent=15 // pred_region
          %s138 = sand.u32 %s22, 1
          %s139 = sand.u32 %s22, 1
          %s140 = smul.addr %s139, 2048
          %s141 = scalar_lea.vmem [#allocation2], %s140
          %s142 = smul.u32 16, %s12
          %s143 = smul.addr %s142, 8
          %s144 = smul.addr %s143, 8
          %s145 = scalar_lea.vmem %s0, %s144
          // Predicated region
          $region21: #{forward.1} parent=19 // pred_check
            _
          $region22: #{forward.1} parent=19 // pred_check_branch
            %147 = sbr.rel (0) target = $region24
          $region23: #{forward.1} parent=19 // pred_region
            // Predicated region
            $region25: #{forward.1} parent=23 // pred_check
              _
            $region26: #{forward.1} parent=23 // pred_check_branch
              %149 = sbr.rel (0) target = $region28
            $region27: #{forward.1} parent=23 // pred_region
              // Predicated region
              $region40: #{forward.1} parent=27 // pred_check
                _
              $region41: #{forward.1} parent=27 // pred_check_branch
                %675 = sbr.rel (0) target = $region43
              $region42: #{forward.1} parent=27 // pred_region
                loop: start=0, step=1, limit=1
                $region44: #{forward.1} parent=42 // loop_pre_header
                  _
                $region45: #{forward.1} parent=42 // loop_header
                  %s677 = sphi 0, %s681
                  %p678 = scmp.ge.s32.totalorder %s677, 1
                  %s682 = sphi %s145, %s145
                  %s683 = sphi %s141, %s141
                $region46: #{forward.1} parent=42 // loop_header_branch
                  %680 = sbr.rel (%p678) target = $region50
                $region47: #{forward.1} parent=42 // loop_body
                  %v684 = vld [vmem:[%s682] sm:$0xff]
                  %685 = vst [vmem:[%s683] sm:$0xff] %v684
                  %v686 = vld [vmem:[%s682 + $0x8] sm:$0xff]
                  %687 = vst [vmem:[%s683 + $0x8] sm:$0xff] %v686
                  %v688 = vld [vmem:[%s682 + $0x10] sm:$0xff]
                  %689 = vst [vmem:[%s683 + $0x10] sm:$0xff] %v688
                  %v690 = vld [vmem:[%s682 + $0x18] sm:$0xff]
                  %691 = vst [vmem:[%s683 + $0x18] sm:$0xff] %v690
                  %v692 = vld [vmem:[%s682 + $0x20] sm:$0xff]
                  %693 = vst [vmem:[%s683 + $0x20] sm:$0xff] %v692
                  %v694 = vld [vmem:[%s682 + $0x28] sm:$0xff]
                  %695 = vst [vmem:[%s683 + $0x28] sm:$0xff] %v694
                  %v696 = vld [vmem:[%s682 + $0x30] sm:$0xff]
                  %697 = vst [vmem:[%s683 + $0x30] sm:$0xff] %v696
                  %v698 = vld [vmem:[%s682 + $0x38] sm:$0xff]
                  %699 = vst [vmem:[%s683 + $0x38] sm:$0xff] %v698
                  %v700 = vld [vmem:[%s682 + $0x40] sm:$0xff]
                  %701 = vst [vmem:[%s683 + $0x40] sm:$0xff] %v700
                  %v702 = vld [vmem:[%s682 + $0x48] sm:$0xff]
                  %703 = vst [vmem:[%s683 + $0x48] sm:$0xff] %v702
                  %v704 = vld [vmem:[%s682 + $0x50] sm:$0xff]
                  %705 = vst [vmem:[%s683 + $0x50] sm:$0xff] %v704
                  %v706 = vld [vmem:[%s682 + $0x58] sm:$0xff]
                  %707 = vst [vmem:[%s683 + $0x58] sm:$0xff] %v706
                  %v708 = vld [vmem:[%s682 + $0x60] sm:$0xff]
                  %709 = vst [vmem:[%s683 + $0x60] sm:$0xff] %v708
                  %v710 = vld [vmem:[%s682 + $0x68] sm:$0xff]
                  %711 = vst [vmem:[%s683 + $0x68] sm:$0xff] %v710
                  %v712 = vld [vmem:[%s682 + $0x70] sm:$0xff]
                  %713 = vst [vmem:[%s683 + $0x70] sm:$0xff] %v712
                  %v714 = vld [vmem:[%s682 + $0x78] sm:$0xff]
                  %715 = vst [vmem:[%s683 + $0x78] sm:$0xff] %v714
                  %v716 = vld [vmem:[%s682 + $0x80] sm:$0xff]
                  %717 = vst [vmem:[%s683 + $0x80] sm:$0xff] %v716
                  %v718 = vld [vmem:[%s682 + $0x88] sm:$0xff]
                  %719 = vst [vmem:[%s683 + $0x88] sm:$0xff] %v718
                  %v720 = vld [vmem:[%s682 + $0x90] sm:$0xff]
                  %721 = vst [vmem:[%s683 + $0x90] sm:$0xff] %v720
                  %v722 = vld [vmem:[%s682 + $0x98] sm:$0xff]
                  %723 = vst [vmem:[%s683 + $0x98] sm:$0xff] %v722
                  %v724 = vld [vmem:[%s682 + $0xa0] sm:$0xff]
                  %725 = vst [vmem:[%s683 + $0xa0] sm:$0xff] %v724
                  %v726 = vld [vmem:[%s682 + $0xa8] sm:$0xff]
                  %727 = vst [vmem:[%s683 + $0xa8] sm:$0xff] %v726
                  %v728 = vld [vmem:[%s682 + $0xb0] sm:$0xff]
                  %729 = vst [vmem:[%s683 + $0xb0] sm:$0xff] %v728
                  %v730 = vld [vmem:[%s682 + $0xb8] sm:$0xff]
                  %731 = vst [vmem:[%s683 + $0xb8] sm:$0xff] %v730
                  %v732 = vld [vmem:[%s682 + $0xc0] sm:$0xff]
                  %733 = vst [vmem:[%s683 + $0xc0] sm:$0xff] %v732
                  %v734 = vld [vmem:[%s682 + $0xc8] sm:$0xff]
                  %735 = vst [vmem:[%s683 + $0xc8] sm:$0xff] %v734
                  %v736 = vld [vmem:[%s682 + $0xd0] sm:$0xff]
                  %737 = vst [vmem:[%s683 + $0xd0] sm:$0xff] %v736
                  %v738 = vld [vmem:[%s682 + $0xd8] sm:$0xff]
                  %739 = vst [vmem:[%s683 + $0xd8] sm:$0xff] %v738
                  %v740 = vld [vmem:[%s682 + $0xe0] sm:$0xff]
                  %741 = vst [vmem:[%s683 + $0xe0] sm:$0xff] %v740
                  %v742 = vld [vmem:[%s682 + $0xe8] sm:$0xff]
                  %743 = vst [vmem:[%s683 + $0xe8] sm:$0xff] %v742
                  %v744 = vld [vmem:[%s682 + $0xf0] sm:$0xff]
                  %745 = vst [vmem:[%s683 + $0xf0] sm:$0xff] %v744
                  %v746 = vld [vmem:[%s682 + $0xf8] sm:$0xff]
                  %747 = vst [vmem:[%s683 + $0xf8] sm:$0xff] %v746
                  %v748 = vld [vmem:[%s682 + $0x100] sm:$0xff]
                  %749 = vst [vmem:[%s683 + $0x100] sm:$0xff] %v748
                  %v750 = vld [vmem:[%s682 + $0x108] sm:$0xff]
                  %751 = vst [vmem:[%s683 + $0x108] sm:$0xff] %v750
                  %v752 = vld [vmem:[%s682 + $0x110] sm:$0xff]
                  %753 = vst [vmem:[%s683 + $0x110] sm:$0xff] %v752
                  %v754 = vld [vmem:[%s682 + $0x118] sm:$0xff]
                  %755 = vst [vmem:[%s683 + $0x118] sm:$0xff] %v754
                  %v756 = vld [vmem:[%s682 + $0x120] sm:$0xff]
                  %757 = vst [vmem:[%s683 + $0x120] sm:$0xff] %v756
                  %v758 = vld [vmem:[%s682 + $0x128] sm:$0xff]
                  %759 = vst [vmem:[%s683 + $0x128] sm:$0xff] %v758
                  %v760 = vld [vmem:[%s682 + $0x130] sm:$0xff]
                  %761 = vst [vmem:[%s683 + $0x130] sm:$0xff] %v760
                  %v762 = vld [vmem:[%s682 + $0x138] sm:$0xff]
                  %763 = vst [vmem:[%s683 + $0x138] sm:$0xff] %v762
                  %v764 = vld [vmem:[%s682 + $0x140] sm:$0xff]
                  %765 = vst [vmem:[%s683 + $0x140] sm:$0xff] %v764
                  %v766 = vld [vmem:[%s682 + $0x148] sm:$0xff]
                  %767 = vst [vmem:[%s683 + $0x148] sm:$0xff] %v766
                  %v768 = vld [vmem:[%s682 + $0x150] sm:$0xff]
                  %769 = vst [vmem:[%s683 + $0x150] sm:$0xff] %v768
                  %v770 = vld [vmem:[%s682 + $0x158] sm:$0xff]
                  %771 = vst [vmem:[%s683 + $0x158] sm:$0xff] %v770
                  %v772 = vld [vmem:[%s682 + $0x160] sm:$0xff]
                  %773 = vst [vmem:[%s683 + $0x160] sm:$0xff] %v772
                  %v774 = vld [vmem:[%s682 + $0x168] sm:$0xff]
                  %775 = vst [vmem:[%s683 + $0x168] sm:$0xff] %v774
                  %v776 = vld [vmem:[%s682 + $0x170] sm:$0xff]
                  %777 = vst [vmem:[%s683 + $0x170] sm:$0xff] %v776
                  %v778 = vld [vmem:[%s682 + $0x178] sm:$0xff]
                  %779 = vst [vmem:[%s683 + $0x178] sm:$0xff] %v778
                  %v780 = vld [vmem:[%s682 + $0x180] sm:$0xff]
                  %781 = vst [vmem:[%s683 + $0x180] sm:$0xff] %v780
                  %v782 = vld [vmem:[%s682 + $0x188] sm:$0xff]
                  %783 = vst [vmem:[%s683 + $0x188] sm:$0xff] %v782
                  %v784 = vld [vmem:[%s682 + $0x190] sm:$0xff]
                  %785 = vst [vmem:[%s683 + $0x190] sm:$0xff] %v784
                  %v786 = vld [vmem:[%s682 + $0x198] sm:$0xff]
                  %787 = vst [vmem:[%s683 + $0x198] sm:$0xff] %v786
                  %v788 = vld [vmem:[%s682 + $0x1a0] sm:$0xff]
                  %789 = vst [vmem:[%s683 + $0x1a0] sm:$0xff] %v788
                  %v790 = vld [vmem:[%s682 + $0x1a8] sm:$0xff]
                  %791 = vst [vmem:[%s683 + $0x1a8] sm:$0xff] %v790
                  %v792 = vld [vmem:[%s682 + $0x1b0] sm:$0xff]
                  %793 = vst [vmem:[%s683 + $0x1b0] sm:$0xff] %v792
                  %v794 = vld [vmem:[%s682 + $0x1b8] sm:$0xff]
                  %795 = vst [vmem:[%s683 + $0x1b8] sm:$0xff] %v794
                  %v796 = vld [vmem:[%s682 + $0x1c0] sm:$0xff]
                  %797 = vst [vmem:[%s683 + $0x1c0] sm:$0xff] %v796
                  %v798 = vld [vmem:[%s682 + $0x1c8] sm:$0xff]
                  %799 = vst [vmem:[%s683 + $0x1c8] sm:$0xff] %v798
                  %v800 = vld [vmem:[%s682 + $0x1d0] sm:$0xff]
                  %801 = vst [vmem:[%s683 + $0x1d0] sm:$0xff] %v800
                  %v802 = vld [vmem:[%s682 + $0x1d8] sm:$0xff]
                  %803 = vst [vmem:[%s683 + $0x1d8] sm:$0xff] %v802
                  %v804 = vld [vmem:[%s682 + $0x1e0] sm:$0xff]
                  %805 = vst [vmem:[%s683 + $0x1e0] sm:$0xff] %v804
                  %v806 = vld [vmem:[%s682 + $0x1e8] sm:$0xff]
                  %807 = vst [vmem:[%s683 + $0x1e8] sm:$0xff] %v806
                  %v808 = vld [vmem:[%s682 + $0x1f0] sm:$0xff]
                  %809 = vst [vmem:[%s683 + $0x1f0] sm:$0xff] %v808
                  %v810 = vld [vmem:[%s682 + $0x1f8] sm:$0xff]
                  %811 = vst [vmem:[%s683 + $0x1f8] sm:$0xff] %v810
                  %v812 = vld [vmem:[%s682 + $0x200] sm:$0xff]
                  %813 = vst [vmem:[%s683 + $0x200] sm:$0xff] %v812
                  %v814 = vld [vmem:[%s682 + $0x208] sm:$0xff]
                  %815 = vst [vmem:[%s683 + $0x208] sm:$0xff] %v814
                  %v816 = vld [vmem:[%s682 + $0x210] sm:$0xff]
                  %817 = vst [vmem:[%s683 + $0x210] sm:$0xff] %v816
                  %v818 = vld [vmem:[%s682 + $0x218] sm:$0xff]
                  %819 = vst [vmem:[%s683 + $0x218] sm:$0xff] %v818
                  %v820 = vld [vmem:[%s682 + $0x220] sm:$0xff]
                  %821 = vst [vmem:[%s683 + $0x220] sm:$0xff] %v820
                  %v822 = vld [vmem:[%s682 + $0x228] sm:$0xff]
                  %823 = vst [vmem:[%s683 + $0x228] sm:$0xff] %v822
                  %v824 = vld [vmem:[%s682 + $0x230] sm:$0xff]
                  %825 = vst [vmem:[%s683 + $0x230] sm:$0xff] %v824
                  %v826 = vld [vmem:[%s682 + $0x238] sm:$0xff]
                  %827 = vst [vmem:[%s683 + $0x238] sm:$0xff] %v826
                  %v828 = vld [vmem:[%s682 + $0x240] sm:$0xff]
                  %829 = vst [vmem:[%s683 + $0x240] sm:$0xff] %v828
                  %v830 = vld [vmem:[%s682 + $0x248] sm:$0xff]
                  %831 = vst [vmem:[%s683 + $0x248] sm:$0xff] %v830
                  %v832 = vld [vmem:[%s682 + $0x250] sm:$0xff]
                  %833 = vst [vmem:[%s683 + $0x250] sm:$0xff] %v832
                  %v834 = vld [vmem:[%s682 + $0x258] sm:$0xff]
                  %835 = vst [vmem:[%s683 + $0x258] sm:$0xff] %v834
                  %v836 = vld [vmem:[%s682 + $0x260] sm:$0xff]
                  %837 = vst [vmem:[%s683 + $0x260] sm:$0xff] %v836
                  %v838 = vld [vmem:[%s682 + $0x268] sm:$0xff]
                  %839 = vst [vmem:[%s683 + $0x268] sm:$0xff] %v838
                  %v840 = vld [vmem:[%s682 + $0x270] sm:$0xff]
                  %841 = vst [vmem:[%s683 + $0x270] sm:$0xff] %v840
                  %v842 = vld [vmem:[%s682 + $0x278] sm:$0xff]
                  %843 = vst [vmem:[%s683 + $0x278] sm:$0xff] %v842
                  %v844 = vld [vmem:[%s682 + $0x280] sm:$0xff]
                  %845 = vst [vmem:[%s683 + $0x280] sm:$0xff] %v844
                  %v846 = vld [vmem:[%s682 + $0x288] sm:$0xff]
                  %847 = vst [vmem:[%s683 + $0x288] sm:$0xff] %v846
                  %v848 = vld [vmem:[%s682 + $0x290] sm:$0xff]
                  %849 = vst [vmem:[%s683 + $0x290] sm:$0xff] %v848
                  %v850 = vld [vmem:[%s682 + $0x298] sm:$0xff]
                  %851 = vst [vmem:[%s683 + $0x298] sm:$0xff] %v850
                  %v852 = vld [vmem:[%s682 + $0x2a0] sm:$0xff]
                  %853 = vst [vmem:[%s683 + $0x2a0] sm:$0xff] %v852
                  %v854 = vld [vmem:[%s682 + $0x2a8] sm:$0xff]
                  %855 = vst [vmem:[%s683 + $0x2a8] sm:$0xff] %v854
                  %v856 = vld [vmem:[%s682 + $0x2b0] sm:$0xff]
                  %857 = vst [vmem:[%s683 + $0x2b0] sm:$0xff] %v856
                  %v858 = vld [vmem:[%s682 + $0x2b8] sm:$0xff]
                  %859 = vst [vmem:[%s683 + $0x2b8] sm:$0xff] %v858
                  %v860 = vld [vmem:[%s682 + $0x2c0] sm:$0xff]
                  %861 = vst [vmem:[%s683 + $0x2c0] sm:$0xff] %v860
                  %v862 = vld [vmem:[%s682 + $0x2c8] sm:$0xff]
                  %863 = vst [vmem:[%s683 + $0x2c8] sm:$0xff] %v862
                  %v864 = vld [vmem:[%s682 + $0x2d0] sm:$0xff]
                  %865 = vst [vmem:[%s683 + $0x2d0] sm:$0xff] %v864
                  %v866 = vld [vmem:[%s682 + $0x2d8] sm:$0xff]
                  %867 = vst [vmem:[%s683 + $0x2d8] sm:$0xff] %v866
                  %v868 = vld [vmem:[%s682 + $0x2e0] sm:$0xff]
                  %869 = vst [vmem:[%s683 + $0x2e0] sm:$0xff] %v868
                  %v870 = vld [vmem:[%s682 + $0x2e8] sm:$0xff]
                  %871 = vst [vmem:[%s683 + $0x2e8] sm:$0xff] %v870
                  %v872 = vld [vmem:[%s682 + $0x2f0] sm:$0xff]
                  %873 = vst [vmem:[%s683 + $0x2f0] sm:$0xff] %v872
                  %v874 = vld [vmem:[%s682 + $0x2f8] sm:$0xff]
                  %875 = vst [vmem:[%s683 + $0x2f8] sm:$0xff] %v874
                  %v876 = vld [vmem:[%s682 + $0x300] sm:$0xff]
                  %877 = vst [vmem:[%s683 + $0x300] sm:$0xff] %v876
                  %v878 = vld [vmem:[%s682 + $0x308] sm:$0xff]
                  %879 = vst [vmem:[%s683 + $0x308] sm:$0xff] %v878
                  %v880 = vld [vmem:[%s682 + $0x310] sm:$0xff]
                  %881 = vst [vmem:[%s683 + $0x310] sm:$0xff] %v880
                  %v882 = vld [vmem:[%s682 + $0x318] sm:$0xff]
                  %883 = vst [vmem:[%s683 + $0x318] sm:$0xff] %v882
                  %v884 = vld [vmem:[%s682 + $0x320] sm:$0xff]
                  %885 = vst [vmem:[%s683 + $0x320] sm:$0xff] %v884
                  %v886 = vld [vmem:[%s682 + $0x328] sm:$0xff]
                  %887 = vst [vmem:[%s683 + $0x328] sm:$0xff] %v886
                  %v888 = vld [vmem:[%s682 + $0x330] sm:$0xff]
                  %889 = vst [vmem:[%s683 + $0x330] sm:$0xff] %v888
                  %v890 = vld [vmem:[%s682 + $0x338] sm:$0xff]
                  %891 = vst [vmem:[%s683 + $0x338] sm:$0xff] %v890
                  %v892 = vld [vmem:[%s682 + $0x340] sm:$0xff]
                  %893 = vst [vmem:[%s683 + $0x340] sm:$0xff] %v892
                  %v894 = vld [vmem:[%s682 + $0x348] sm:$0xff]
                  %895 = vst [vmem:[%s683 + $0x348] sm:$0xff] %v894
                  %v896 = vld [vmem:[%s682 + $0x350] sm:$0xff]
                  %897 = vst [vmem:[%s683 + $0x350] sm:$0xff] %v896
                  %v898 = vld [vmem:[%s682 + $0x358] sm:$0xff]
                  %899 = vst [vmem:[%s683 + $0x358] sm:$0xff] %v898
                  %v900 = vld [vmem:[%s682 + $0x360] sm:$0xff]
                  %901 = vst [vmem:[%s683 + $0x360] sm:$0xff] %v900
                  %v902 = vld [vmem:[%s682 + $0x368] sm:$0xff]
                  %903 = vst [vmem:[%s683 + $0x368] sm:$0xff] %v902
                  %v904 = vld [vmem:[%s682 + $0x370] sm:$0xff]
                  %905 = vst [vmem:[%s683 + $0x370] sm:$0xff] %v904
                  %v906 = vld [vmem:[%s682 + $0x378] sm:$0xff]
                  %907 = vst [vmem:[%s683 + $0x378] sm:$0xff] %v906
                  %v908 = vld [vmem:[%s682 + $0x380] sm:$0xff]
                  %909 = vst [vmem:[%s683 + $0x380] sm:$0xff] %v908
                  %v910 = vld [vmem:[%s682 + $0x388] sm:$0xff]
                  %911 = vst [vmem:[%s683 + $0x388] sm:$0xff] %v910
                  %v912 = vld [vmem:[%s682 + $0x390] sm:$0xff]
                  %913 = vst [vmem:[%s683 + $0x390] sm:$0xff] %v912
                  %v914 = vld [vmem:[%s682 + $0x398] sm:$0xff]
                  %915 = vst [vmem:[%s683 + $0x398] sm:$0xff] %v914
                  %v916 = vld [vmem:[%s682 + $0x3a0] sm:$0xff]
                  %917 = vst [vmem:[%s683 + $0x3a0] sm:$0xff] %v916
                  %v918 = vld [vmem:[%s682 + $0x3a8] sm:$0xff]
                  %919 = vst [vmem:[%s683 + $0x3a8] sm:$0xff] %v918
                  %v920 = vld [vmem:[%s682 + $0x3b0] sm:$0xff]
                  %921 = vst [vmem:[%s683 + $0x3b0] sm:$0xff] %v920
                  %v922 = vld [vmem:[%s682 + $0x3b8] sm:$0xff]
                  %923 = vst [vmem:[%s683 + $0x3b8] sm:$0xff] %v922
                  %v924 = vld [vmem:[%s682 + $0x3c0] sm:$0xff]
                  %925 = vst [vmem:[%s683 + $0x3c0] sm:$0xff] %v924
                  %v926 = vld [vmem:[%s682 + $0x3c8] sm:$0xff]
                  %927 = vst [vmem:[%s683 + $0x3c8] sm:$0xff] %v926
                  %v928 = vld [vmem:[%s682 + $0x3d0] sm:$0xff]
                  %929 = vst [vmem:[%s683 + $0x3d0] sm:$0xff] %v928
                  %v930 = vld [vmem:[%s682 + $0x3d8] sm:$0xff]
                  %931 = vst [vmem:[%s683 + $0x3d8] sm:$0xff] %v930
                  %v932 = vld [vmem:[%s682 + $0x3e0] sm:$0xff]
                  %933 = vst [vmem:[%s683 + $0x3e0] sm:$0xff] %v932
                  %v934 = vld [vmem:[%s682 + $0x3e8] sm:$0xff]
                  %935 = vst [vmem:[%s683 + $0x3e8] sm:$0xff] %v934
                  %v936 = vld [vmem:[%s682 + $0x3f0] sm:$0xff]
                  %937 = vst [vmem:[%s683 + $0x3f0] sm:$0xff] %v936
                  %v938 = vld [vmem:[%s682 + $0x3f8] sm:$0xff]
                  %939 = vst [vmem:[%s683 + $0x3f8] sm:$0xff] %v938
                  %v940 = vld [vmem:[%s682 + $0x1000] sm:$0xff]
                  %941 = vst [vmem:[%s683 + $0x400] sm:$0xff] %v940
                  %v942 = vld [vmem:[%s682 + $0x1008] sm:$0xff]
                  %943 = vst [vmem:[%s683 + $0x408] sm:$0xff] %v942
                  %v944 = vld [vmem:[%s682 + $0x1010] sm:$0xff]
                  %945 = vst [vmem:[%s683 + $0x410] sm:$0xff] %v944
                  %v946 = vld [vmem:[%s682 + $0x1018] sm:$0xff]
                  %947 = vst [vmem:[%s683 + $0x418] sm:$0xff] %v946
                  %v948 = vld [vmem:[%s682 + $0x1020] sm:$0xff]
                  %949 = vst [vmem:[%s683 + $0x420] sm:$0xff] %v948
                  %v950 = vld [vmem:[%s682 + $0x1028] sm:$0xff]
                  %951 = vst [vmem:[%s683 + $0x428] sm:$0xff] %v950
                  %v952 = vld [vmem:[%s682 + $0x1030] sm:$0xff]
                  %953 = vst [vmem:[%s683 + $0x430] sm:$0xff] %v952
                  %v954 = vld [vmem:[%s682 + $0x1038] sm:$0xff]
                  %955 = vst [vmem:[%s683 + $0x438] sm:$0xff] %v954
                  %v956 = vld [vmem:[%s682 + $0x1040] sm:$0xff]
                  %957 = vst [vmem:[%s683 + $0x440] sm:$0xff] %v956
                  %v958 = vld [vmem:[%s682 + $0x1048] sm:$0xff]
                  %959 = vst [vmem:[%s683 + $0x448] sm:$0xff] %v958
                  %v960 = vld [vmem:[%s682 + $0x1050] sm:$0xff]
                  %961 = vst [vmem:[%s683 + $0x450] sm:$0xff] %v960
                  %v962 = vld [vmem:[%s682 + $0x1058] sm:$0xff]
                  %963 = vst [vmem:[%s683 + $0x458] sm:$0xff] %v962
                  %v964 = vld [vmem:[%s682 + $0x1060] sm:$0xff]
                  %965 = vst [vmem:[%s683 + $0x460] sm:$0xff] %v964
                  %v966 = vld [vmem:[%s682 + $0x1068] sm:$0xff]
                  %967 = vst [vmem:[%s683 + $0x468] sm:$0xff] %v966
                  %v968 = vld [vmem:[%s682 + $0x1070] sm:$0xff]
                  %969 = vst [vmem:[%s683 + $0x470] sm:$0xff] %v968
                  %v970 = vld [vmem:[%s682 + $0x1078] sm:$0xff]
                  %971 = vst [vmem:[%s683 + $0x478] sm:$0xff] %v970
                  %v972 = vld [vmem:[%s682 + $0x1080] sm:$0xff]
                  %973 = vst [vmem:[%s683 + $0x480] sm:$0xff] %v972
                  %v974 = vld [vmem:[%s682 + $0x1088] sm:$0xff]
                  %975 = vst [vmem:[%s683 + $0x488] sm:$0xff] %v974
                  %v976 = vld [vmem:[%s682 + $0x1090] sm:$0xff]
                  %977 = vst [vmem:[%s683 + $0x490] sm:$0xff] %v976
                  %v978 = vld [vmem:[%s682 + $0x1098] sm:$0xff]
                  %979 = vst [vmem:[%s683 + $0x498] sm:$0xff] %v978
                  %v980 = vld [vmem:[%s682 + $0x10a0] sm:$0xff]
                  %981 = vst [vmem:[%s683 + $0x4a0] sm:$0xff] %v980
                  %v982 = vld [vmem:[%s682 + $0x10a8] sm:$0xff]
                  %983 = vst [vmem:[%s683 + $0x4a8] sm:$0xff] %v982
                  %v984 = vld [vmem:[%s682 + $0x10b0] sm:$0xff]
                  %985 = vst [vmem:[%s683 + $0x4b0] sm:$0xff] %v984
                  %v986 = vld [vmem:[%s682 + $0x10b8] sm:$0xff]
                  %987 = vst [vmem:[%s683 + $0x4b8] sm:$0xff] %v986
                  %v988 = vld [vmem:[%s682 + $0x10c0] sm:$0xff]
                  %989 = vst [vmem:[%s683 + $0x4c0] sm:$0xff] %v988
                  %v990 = vld [vmem:[%s682 + $0x10c8] sm:$0xff]
                  %991 = vst [vmem:[%s683 + $0x4c8] sm:$0xff] %v990
                  %v992 = vld [vmem:[%s682 + $0x10d0] sm:$0xff]
                  %993 = vst [vmem:[%s683 + $0x4d0] sm:$0xff] %v992
                  %v994 = vld [vmem:[%s682 + $0x10d8] sm:$0xff]
                  %995 = vst [vmem:[%s683 + $0x4d8] sm:$0xff] %v994
                  %v996 = vld [vmem:[%s682 + $0x10e0] sm:$0xff]
                  %997 = vst [vmem:[%s683 + $0x4e0] sm:$0xff] %v996
                  %v998 = vld [vmem:[%s682 + $0x10e8] sm:$0xff]
                  %999 = vst [vmem:[%s683 + $0x4e8] sm:$0xff] %v998
                  %v1000 = vld [vmem:[%s682 + $0x10f0] sm:$0xff]
                  %1001 = vst [vmem:[%s683 + $0x4f0] sm:$0xff] %v1000
                  %v1002 = vld [vmem:[%s682 + $0x10f8] sm:$0xff]
                  %1003 = vst [vmem:[%s683 + $0x4f8] sm:$0xff] %v1002
                  %v1004 = vld [vmem:[%s682 + $0x1100] sm:$0xff]
                  %1005 = vst [vmem:[%s683 + $0x500] sm:$0xff] %v1004
                  %v1006 = vld [vmem:[%s682 + $0x1108] sm:$0xff]
                  %1007 = vst [vmem:[%s683 + $0x508] sm:$0xff] %v1006
                  %v1008 = vld [vmem:[%s682 + $0x1110] sm:$0xff]
                  %1009 = vst [vmem:[%s683 + $0x510] sm:$0xff] %v1008
                  %v1010 = vld [vmem:[%s682 + $0x1118] sm:$0xff]
                  %1011 = vst [vmem:[%s683 + $0x518] sm:$0xff] %v1010
                  %v1012 = vld [vmem:[%s682 + $0x1120] sm:$0xff]
                  %1013 = vst [vmem:[%s683 + $0x520] sm:$0xff] %v1012
                  %v1014 = vld [vmem:[%s682 + $0x1128] sm:$0xff]
                  %1015 = vst [vmem:[%s683 + $0x528] sm:$0xff] %v1014
                  %v1016 = vld [vmem:[%s682 + $0x1130] sm:$0xff]
                  %1017 = vst [vmem:[%s683 + $0x530] sm:$0xff] %v1016
                  %v1018 = vld [vmem:[%s682 + $0x1138] sm:$0xff]
                  %1019 = vst [vmem:[%s683 + $0x538] sm:$0xff] %v1018
                  %v1020 = vld [vmem:[%s682 + $0x1140] sm:$0xff]
                  %1021 = vst [vmem:[%s683 + $0x540] sm:$0xff] %v1020
                  %v1022 = vld [vmem:[%s682 + $0x1148] sm:$0xff]
                  %1023 = vst [vmem:[%s683 + $0x548] sm:$0xff] %v1022
                  %v1024 = vld [vmem:[%s682 + $0x1150] sm:$0xff]
                  %1025 = vst [vmem:[%s683 + $0x550] sm:$0xff] %v1024
                  %v1026 = vld [vmem:[%s682 + $0x1158] sm:$0xff]
                  %1027 = vst [vmem:[%s683 + $0x558] sm:$0xff] %v1026
                  %v1028 = vld [vmem:[%s682 + $0x1160] sm:$0xff]
                  %1029 = vst [vmem:[%s683 + $0x560] sm:$0xff] %v1028
                  %v1030 = vld [vmem:[%s682 + $0x1168] sm:$0xff]
                  %1031 = vst [vmem:[%s683 + $0x568] sm:$0xff] %v1030
                  %v1032 = vld [vmem:[%s682 + $0x1170] sm:$0xff]
                  %1033 = vst [vmem:[%s683 + $0x570] sm:$0xff] %v1032
                  %v1034 = vld [vmem:[%s682 + $0x1178] sm:$0xff]
                  %1035 = vst [vmem:[%s683 + $0x578] sm:$0xff] %v1034
                  %v1036 = vld [vmem:[%s682 + $0x1180] sm:$0xff]
                  %1037 = vst [vmem:[%s683 + $0x580] sm:$0xff] %v1036
                  %v1038 = vld [vmem:[%s682 + $0x1188] sm:$0xff]
                  %1039 = vst [vmem:[%s683 + $0x588] sm:$0xff] %v1038
                  %v1040 = vld [vmem:[%s682 + $0x1190] sm:$0xff]
                  %1041 = vst [vmem:[%s683 + $0x590] sm:$0xff] %v1040
                  %v1042 = vld [vmem:[%s682 + $0x1198] sm:$0xff]
                  %1043 = vst [vmem:[%s683 + $0x598] sm:$0xff] %v1042
                  %v1044 = vld [vmem:[%s682 + $0x11a0] sm:$0xff]
                  %1045 = vst [vmem:[%s683 + $0x5a0] sm:$0xff] %v1044
                  %v1046 = vld [vmem:[%s682 + $0x11a8] sm:$0xff]
                  %1047 = vst [vmem:[%s683 + $0x5a8] sm:$0xff] %v1046
                  %v1048 = vld [vmem:[%s682 + $0x11b0] sm:$0xff]
                  %1049 = vst [vmem:[%s683 + $0x5b0] sm:$0xff] %v1048
                  %v1050 = vld [vmem:[%s682 + $0x11b8] sm:$0xff]
                  %1051 = vst [vmem:[%s683 + $0x5b8] sm:$0xff] %v1050
                  %v1052 = vld [vmem:[%s682 + $0x11c0] sm:$0xff]
                  %1053 = vst [vmem:[%s683 + $0x5c0] sm:$0xff] %v1052
                  %v1054 = vld [vmem:[%s682 + $0x11c8] sm:$0xff]
                  %1055 = vst [vmem:[%s683 + $0x5c8] sm:$0xff] %v1054
                  %v1056 = vld [vmem:[%s682 + $0x11d0] sm:$0xff]
                  %1057 = vst [vmem:[%s683 + $0x5d0] sm:$0xff] %v1056
                  %v1058 = vld [vmem:[%s682 + $0x11d8] sm:$0xff]
                  %1059 = vst [vmem:[%s683 + $0x5d8] sm:$0xff] %v1058
                  %v1060 = vld [vmem:[%s682 + $0x11e0] sm:$0xff]
                  %1061 = vst [vmem:[%s683 + $0x5e0] sm:$0xff] %v1060
                  %v1062 = vld [vmem:[%s682 + $0x11e8] sm:$0xff]
                  %1063 = vst [vmem:[%s683 + $0x5e8] sm:$0xff] %v1062
                  %v1064 = vld [vmem:[%s682 + $0x11f0] sm:$0xff]
                  %1065 = vst [vmem:[%s683 + $0x5f0] sm:$0xff] %v1064
                  %v1066 = vld [vmem:[%s682 + $0x11f8] sm:$0xff]
                  %1067 = vst [vmem:[%s683 + $0x5f8] sm:$0xff] %v1066
                  %v1068 = vld [vmem:[%s682 + $0x1200] sm:$0xff]
                  %1069 = vst [vmem:[%s683 + $0x600] sm:$0xff] %v1068
                  %v1070 = vld [vmem:[%s682 + $0x1208] sm:$0xff]
                  %1071 = vst [vmem:[%s683 + $0x608] sm:$0xff] %v1070
                  %v1072 = vld [vmem:[%s682 + $0x1210] sm:$0xff]
                  %1073 = vst [vmem:[%s683 + $0x610] sm:$0xff] %v1072
                  %v1074 = vld [vmem:[%s682 + $0x1218] sm:$0xff]
                  %1075 = vst [vmem:[%s683 + $0x618] sm:$0xff] %v1074
                  %v1076 = vld [vmem:[%s682 + $0x1220] sm:$0xff]
                  %1077 = vst [vmem:[%s683 + $0x620] sm:$0xff] %v1076
                  %v1078 = vld [vmem:[%s682 + $0x1228] sm:$0xff]
                  %1079 = vst [vmem:[%s683 + $0x628] sm:$0xff] %v1078
                  %v1080 = vld [vmem:[%s682 + $0x1230] sm:$0xff]
                  %1081 = vst [vmem:[%s683 + $0x630] sm:$0xff] %v1080
                  %v1082 = vld [vmem:[%s682 + $0x1238] sm:$0xff]
                  %1083 = vst [vmem:[%s683 + $0x638] sm:$0xff] %v1082
                  %v1084 = vld [vmem:[%s682 + $0x1240] sm:$0xff]
                  %1085 = vst [vmem:[%s683 + $0x640] sm:$0xff] %v1084
                  %v1086 = vld [vmem:[%s682 + $0x1248] sm:$0xff]
                  %1087 = vst [vmem:[%s683 + $0x648] sm:$0xff] %v1086
                  %v1088 = vld [vmem:[%s682 + $0x1250] sm:$0xff]
                  %1089 = vst [vmem:[%s683 + $0x650] sm:$0xff] %v1088
                  %v1090 = vld [vmem:[%s682 + $0x1258] sm:$0xff]
                  %1091 = vst [vmem:[%s683 + $0x658] sm:$0xff] %v1090
                  %v1092 = vld [vmem:[%s682 + $0x1260] sm:$0xff]
                  %1093 = vst [vmem:[%s683 + $0x660] sm:$0xff] %v1092
                  %v1094 = vld [vmem:[%s682 + $0x1268] sm:$0xff]
                  %1095 = vst [vmem:[%s683 + $0x668] sm:$0xff] %v1094
                  %v1096 = vld [vmem:[%s682 + $0x1270] sm:$0xff]
                  %1097 = vst [vmem:[%s683 + $0x670] sm:$0xff] %v1096
                  %v1098 = vld [vmem:[%s682 + $0x1278] sm:$0xff]
                  %1099 = vst [vmem:[%s683 + $0x678] sm:$0xff] %v1098
                  %v1100 = vld [vmem:[%s682 + $0x1280] sm:$0xff]
                  %1101 = vst [vmem:[%s683 + $0x680] sm:$0xff] %v1100
                  %v1102 = vld [vmem:[%s682 + $0x1288] sm:$0xff]
                  %1103 = vst [vmem:[%s683 + $0x688] sm:$0xff] %v1102
                  %v1104 = vld [vmem:[%s682 + $0x1290] sm:$0xff]
                  %1105 = vst [vmem:[%s683 + $0x690] sm:$0xff] %v1104
                  %v1106 = vld [vmem:[%s682 + $0x1298] sm:$0xff]
                  %1107 = vst [vmem:[%s683 + $0x698] sm:$0xff] %v1106
                  %v1108 = vld [vmem:[%s682 + $0x12a0] sm:$0xff]
                  %1109 = vst [vmem:[%s683 + $0x6a0] sm:$0xff] %v1108
                  %v1110 = vld [vmem:[%s682 + $0x12a8] sm:$0xff]
                  %1111 = vst [vmem:[%s683 + $0x6a8] sm:$0xff] %v1110
                  %v1112 = vld [vmem:[%s682 + $0x12b0] sm:$0xff]
                  %1113 = vst [vmem:[%s683 + $0x6b0] sm:$0xff] %v1112
                  %v1114 = vld [vmem:[%s682 + $0x12b8] sm:$0xff]
                  %1115 = vst [vmem:[%s683 + $0x6b8] sm:$0xff] %v1114
                  %v1116 = vld [vmem:[%s682 + $0x12c0] sm:$0xff]
                  %1117 = vst [vmem:[%s683 + $0x6c0] sm:$0xff] %v1116
                  %v1118 = vld [vmem:[%s682 + $0x12c8] sm:$0xff]
                  %1119 = vst [vmem:[%s683 + $0x6c8] sm:$0xff] %v1118
                  %v1120 = vld [vmem:[%s682 + $0x12d0] sm:$0xff]
                  %1121 = vst [vmem:[%s683 + $0x6d0] sm:$0xff] %v1120
                  %v1122 = vld [vmem:[%s682 + $0x12d8] sm:$0xff]
                  %1123 = vst [vmem:[%s683 + $0x6d8] sm:$0xff] %v1122
                  %v1124 = vld [vmem:[%s682 + $0x12e0] sm:$0xff]
                  %1125 = vst [vmem:[%s683 + $0x6e0] sm:$0xff] %v1124
                  %v1126 = vld [vmem:[%s682 + $0x12e8] sm:$0xff]
                  %1127 = vst [vmem:[%s683 + $0x6e8] sm:$0xff] %v1126
                  %v1128 = vld [vmem:[%s682 + $0x12f0] sm:$0xff]
                  %1129 = vst [vmem:[%s683 + $0x6f0] sm:$0xff] %v1128
                  %v1130 = vld [vmem:[%s682 + $0x12f8] sm:$0xff]
                  %1131 = vst [vmem:[%s683 + $0x6f8] sm:$0xff] %v1130
                  %v1132 = vld [vmem:[%s682 + $0x1300] sm:$0xff]
                  %1133 = vst [vmem:[%s683 + $0x700] sm:$0xff] %v1132
                  %v1134 = vld [vmem:[%s682 + $0x1308] sm:$0xff]
                  %1135 = vst [vmem:[%s683 + $0x708] sm:$0xff] %v1134
                  %v1136 = vld [vmem:[%s682 + $0x1310] sm:$0xff]
                  %1137 = vst [vmem:[%s683 + $0x710] sm:$0xff] %v1136
                  %v1138 = vld [vmem:[%s682 + $0x1318] sm:$0xff]
                  %1139 = vst [vmem:[%s683 + $0x718] sm:$0xff] %v1138
                  %v1140 = vld [vmem:[%s682 + $0x1320] sm:$0xff]
                  %1141 = vst [vmem:[%s683 + $0x720] sm:$0xff] %v1140
                  %v1142 = vld [vmem:[%s682 + $0x1328] sm:$0xff]
                  %1143 = vst [vmem:[%s683 + $0x728] sm:$0xff] %v1142
                  %v1144 = vld [vmem:[%s682 + $0x1330] sm:$0xff]
                  %1145 = vst [vmem:[%s683 + $0x730] sm:$0xff] %v1144
                  %v1146 = vld [vmem:[%s682 + $0x1338] sm:$0xff]
                  %1147 = vst [vmem:[%s683 + $0x738] sm:$0xff] %v1146
                  %v1148 = vld [vmem:[%s682 + $0x1340] sm:$0xff]
                  %1149 = vst [vmem:[%s683 + $0x740] sm:$0xff] %v1148
                  %v1150 = vld [vmem:[%s682 + $0x1348] sm:$0xff]
                  %1151 = vst [vmem:[%s683 + $0x748] sm:$0xff] %v1150
                  %v1152 = vld [vmem:[%s682 + $0x1350] sm:$0xff]
                  %1153 = vst [vmem:[%s683 + $0x750] sm:$0xff] %v1152
                  %v1154 = vld [vmem:[%s682 + $0x1358] sm:$0xff]
                  %1155 = vst [vmem:[%s683 + $0x758] sm:$0xff] %v1154
                  %v1156 = vld [vmem:[%s682 + $0x1360] sm:$0xff]
                  %1157 = vst [vmem:[%s683 + $0x760] sm:$0xff] %v1156
                  %v1158 = vld [vmem:[%s682 + $0x1368] sm:$0xff]
                  %1159 = vst [vmem:[%s683 + $0x768] sm:$0xff] %v1158
                  %v1160 = vld [vmem:[%s682 + $0x1370] sm:$0xff]
                  %1161 = vst [vmem:[%s683 + $0x770] sm:$0xff] %v1160
                  %v1162 = vld [vmem:[%s682 + $0x1378] sm:$0xff]
                  %1163 = vst [vmem:[%s683 + $0x778] sm:$0xff] %v1162
                  %v1164 = vld [vmem:[%s682 + $0x1380] sm:$0xff]
                  %1165 = vst [vmem:[%s683 + $0x780] sm:$0xff] %v1164
                  %v1166 = vld [vmem:[%s682 + $0x1388] sm:$0xff]
                  %1167 = vst [vmem:[%s683 + $0x788] sm:$0xff] %v1166
                  %v1168 = vld [vmem:[%s682 + $0x1390] sm:$0xff]
                  %1169 = vst [vmem:[%s683 + $0x790] sm:$0xff] %v1168
                  %v1170 = vld [vmem:[%s682 + $0x1398] sm:$0xff]
                  %1171 = vst [vmem:[%s683 + $0x798] sm:$0xff] %v1170
                  %v1172 = vld [vmem:[%s682 + $0x13a0] sm:$0xff]
                  %1173 = vst [vmem:[%s683 + $0x7a0] sm:$0xff] %v1172
                  %v1174 = vld [vmem:[%s682 + $0x13a8] sm:$0xff]
                  %1175 = vst [vmem:[%s683 + $0x7a8] sm:$0xff] %v1174
                  %v1176 = vld [vmem:[%s682 + $0x13b0] sm:$0xff]
                  %1177 = vst [vmem:[%s683 + $0x7b0] sm:$0xff] %v1176
                  %v1178 = vld [vmem:[%s682 + $0x13b8] sm:$0xff]
                  %1179 = vst [vmem:[%s683 + $0x7b8] sm:$0xff] %v1178
                  %v1180 = vld [vmem:[%s682 + $0x13c0] sm:$0xff]
                  %1181 = vst [vmem:[%s683 + $0x7c0] sm:$0xff] %v1180
                  %v1182 = vld [vmem:[%s682 + $0x13c8] sm:$0xff]
                  %1183 = vst [vmem:[%s683 + $0x7c8] sm:$0xff] %v1182
                  %v1184 = vld [vmem:[%s682 + $0x13d0] sm:$0xff]
                  %1185 = vst [vmem:[%s683 + $0x7d0] sm:$0xff] %v1184
                  %v1186 = vld [vmem:[%s682 + $0x13d8] sm:$0xff]
                  %1187 = vst [vmem:[%s683 + $0x7d8] sm:$0xff] %v1186
                  %v1188 = vld [vmem:[%s682 + $0x13e0] sm:$0xff]
                  %1189 = vst [vmem:[%s683 + $0x7e0] sm:$0xff] %v1188
                  %v1190 = vld [vmem:[%s682 + $0x13e8] sm:$0xff]
                  %1191 = vst [vmem:[%s683 + $0x7e8] sm:$0xff] %v1190
                  %v1192 = vld [vmem:[%s682 + $0x13f0] sm:$0xff]
                  %1193 = vst [vmem:[%s683 + $0x7f0] sm:$0xff] %v1192
                  %v1194 = vld [vmem:[%s682 + $0x13f8] sm:$0xff]
                  %1195 = vst [vmem:[%s683 + $0x7f8] sm:$0xff] %v1194
                $region48: #{forward.1} parent=42 // loop_footer
                  %s681 = sadd.s32 1, %s677
                $region49: #{forward.1} parent=42 // loop_footer_branch
                  %676 = sbr.rel target = $region45
                $region50: #{forward.1} parent=42 // loop_exit
                  _
              $region43: #{forward.1} parent=27 // pred_fallthru
                _
              // Predicated region
              $region51: #{forward.1} parent=27 // pred_check
                _
              $region52: #{forward.1} parent=27 // pred_check_branch
                %1197 = sbr.rel target = $region54
              $region53: #{forward.1} parent=27 // pred_region
                _
              $region54: #{forward.1} parent=27 // pred_fallthru
                _
            $region28: #{forward.1} parent=23 // pred_fallthru
              _
            // Predicated region
            $region29: #{forward.1} parent=23 // pred_check
              _
            $region30: #{forward.1} parent=23 // pred_check_branch
              %151 = sbr.rel target = $region32
            $region31: #{forward.1} parent=23 // pred_region
              %s153 = ssub.s32 256, 1
              loop: start=0, step=1, limit=1
              $region33: #{forward.1} parent=31 // loop_pre_header
                _
              $region34: #{forward.1} parent=31 // loop_header
                %s155 = sphi 0, %s159
                %p156 = scmp.ge.s32.totalorder %s155, 1
                %s160 = sphi %s145, %s145
                %s161 = sphi %s141, %s141
              $region35: #{forward.1} parent=31 // loop_header_branch
                %158 = sbr.rel (%p156) target = $region39
              $region36: #{forward.1} parent=31 // loop_body
                %v162 = vld [vmem:[%s160] sm:%s153]
                %163 = vst [vmem:[%s161] sm:%s153] %v162
                %v164 = vld [vmem:[%s160 + $0x8] sm:%s153]
                %165 = vst [vmem:[%s161 + $0x8] sm:%s153] %v164
                %v166 = vld [vmem:[%s160 + $0x10] sm:%s153]
                %167 = vst [vmem:[%s161 + $0x10] sm:%s153] %v166
                %v168 = vld [vmem:[%s160 + $0x18] sm:%s153]
                %169 = vst [vmem:[%s161 + $0x18] sm:%s153] %v168
                %v170 = vld [vmem:[%s160 + $0x20] sm:%s153]
                %171 = vst [vmem:[%s161 + $0x20] sm:%s153] %v170
                %v172 = vld [vmem:[%s160 + $0x28] sm:%s153]
                %173 = vst [vmem:[%s161 + $0x28] sm:%s153] %v172
                %v174 = vld [vmem:[%s160 + $0x30] sm:%s153]
                %175 = vst [vmem:[%s161 + $0x30] sm:%s153] %v174
                %v176 = vld [vmem:[%s160 + $0x38] sm:%s153]
                %177 = vst [vmem:[%s161 + $0x38] sm:%s153] %v176
                %v178 = vld [vmem:[%s160 + $0x40] sm:%s153]
                %179 = vst [vmem:[%s161 + $0x40] sm:%s153] %v178
                %v180 = vld [vmem:[%s160 + $0x48] sm:%s153]
                %181 = vst [vmem:[%s161 + $0x48] sm:%s153] %v180
                %v182 = vld [vmem:[%s160 + $0x50] sm:%s153]
                %183 = vst [vmem:[%s161 + $0x50] sm:%s153] %v182
                %v184 = vld [vmem:[%s160 + $0x58] sm:%s153]
                %185 = vst [vmem:[%s161 + $0x58] sm:%s153] %v184
                %v186 = vld [vmem:[%s160 + $0x60] sm:%s153]
                %187 = vst [vmem:[%s161 + $0x60] sm:%s153] %v186
                %v188 = vld [vmem:[%s160 + $0x68] sm:%s153]
                %189 = vst [vmem:[%s161 + $0x68] sm:%s153] %v188
                %v190 = vld [vmem:[%s160 + $0x70] sm:%s153]
                %191 = vst [vmem:[%s161 + $0x70] sm:%s153] %v190
                %v192 = vld [vmem:[%s160 + $0x78] sm:%s153]
                %193 = vst [vmem:[%s161 + $0x78] sm:%s153] %v192
                %v194 = vld [vmem:[%s160 + $0x80] sm:%s153]
                %195 = vst [vmem:[%s161 + $0x80] sm:%s153] %v194
                %v196 = vld [vmem:[%s160 + $0x88] sm:%s153]
                %197 = vst [vmem:[%s161 + $0x88] sm:%s153] %v196
                %v198 = vld [vmem:[%s160 + $0x90] sm:%s153]
                %199 = vst [vmem:[%s161 + $0x90] sm:%s153] %v198
                %v200 = vld [vmem:[%s160 + $0x98] sm:%s153]
                %201 = vst [vmem:[%s161 + $0x98] sm:%s153] %v200
                %v202 = vld [vmem:[%s160 + $0xa0] sm:%s153]
                %203 = vst [vmem:[%s161 + $0xa0] sm:%s153] %v202
                %v204 = vld [vmem:[%s160 + $0xa8] sm:%s153]
                %205 = vst [vmem:[%s161 + $0xa8] sm:%s153] %v204
                %v206 = vld [vmem:[%s160 + $0xb0] sm:%s153]
                %207 = vst [vmem:[%s161 + $0xb0] sm:%s153] %v206
                %v208 = vld [vmem:[%s160 + $0xb8] sm:%s153]
                %209 = vst [vmem:[%s161 + $0xb8] sm:%s153] %v208
                %v210 = vld [vmem:[%s160 + $0xc0] sm:%s153]
                %211 = vst [vmem:[%s161 + $0xc0] sm:%s153] %v210
                %v212 = vld [vmem:[%s160 + $0xc8] sm:%s153]
                %213 = vst [vmem:[%s161 + $0xc8] sm:%s153] %v212
                %v214 = vld [vmem:[%s160 + $0xd0] sm:%s153]
                %215 = vst [vmem:[%s161 + $0xd0] sm:%s153] %v214
                %v216 = vld [vmem:[%s160 + $0xd8] sm:%s153]
                %217 = vst [vmem:[%s161 + $0xd8] sm:%s153] %v216
                %v218 = vld [vmem:[%s160 + $0xe0] sm:%s153]
                %219 = vst [vmem:[%s161 + $0xe0] sm:%s153] %v218
                %v220 = vld [vmem:[%s160 + $0xe8] sm:%s153]
                %221 = vst [vmem:[%s161 + $0xe8] sm:%s153] %v220
                %v222 = vld [vmem:[%s160 + $0xf0] sm:%s153]
                %223 = vst [vmem:[%s161 + $0xf0] sm:%s153] %v222
                %v224 = vld [vmem:[%s160 + $0xf8] sm:%s153]
                %225 = vst [vmem:[%s161 + $0xf8] sm:%s153] %v224
                %v226 = vld [vmem:[%s160 + $0x100] sm:%s153]
                %227 = vst [vmem:[%s161 + $0x100] sm:%s153] %v226
                %v228 = vld [vmem:[%s160 + $0x108] sm:%s153]
                %229 = vst [vmem:[%s161 + $0x108] sm:%s153] %v228
                %v230 = vld [vmem:[%s160 + $0x110] sm:%s153]
                %231 = vst [vmem:[%s161 + $0x110] sm:%s153] %v230
                %v232 = vld [vmem:[%s160 + $0x118] sm:%s153]
                %233 = vst [vmem:[%s161 + $0x118] sm:%s153] %v232
                %v234 = vld [vmem:[%s160 + $0x120] sm:%s153]
                %235 = vst [vmem:[%s161 + $0x120] sm:%s153] %v234
                %v236 = vld [vmem:[%s160 + $0x128] sm:%s153]
                %237 = vst [vmem:[%s161 + $0x128] sm:%s153] %v236
                %v238 = vld [vmem:[%s160 + $0x130] sm:%s153]
                %239 = vst [vmem:[%s161 + $0x130] sm:%s153] %v238
                %v240 = vld [vmem:[%s160 + $0x138] sm:%s153]
                %241 = vst [vmem:[%s161 + $0x138] sm:%s153] %v240
                %v242 = vld [vmem:[%s160 + $0x140] sm:%s153]
                %243 = vst [vmem:[%s161 + $0x140] sm:%s153] %v242
                %v244 = vld [vmem:[%s160 + $0x148] sm:%s153]
                %245 = vst [vmem:[%s161 + $0x148] sm:%s153] %v244
                %v246 = vld [vmem:[%s160 + $0x150] sm:%s153]
                %247 = vst [vmem:[%s161 + $0x150] sm:%s153] %v246
                %v248 = vld [vmem:[%s160 + $0x158] sm:%s153]
                %249 = vst [vmem:[%s161 + $0x158] sm:%s153] %v248
                %v250 = vld [vmem:[%s160 + $0x160] sm:%s153]
                %251 = vst [vmem:[%s161 + $0x160] sm:%s153] %v250
                %v252 = vld [vmem:[%s160 + $0x168] sm:%s153]
                %253 = vst [vmem:[%s161 + $0x168] sm:%s153] %v252
                %v254 = vld [vmem:[%s160 + $0x170] sm:%s153]
                %255 = vst [vmem:[%s161 + $0x170] sm:%s153] %v254
                %v256 = vld [vmem:[%s160 + $0x178] sm:%s153]
                %257 = vst [vmem:[%s161 + $0x178] sm:%s153] %v256
                %v258 = vld [vmem:[%s160 + $0x180] sm:%s153]
                %259 = vst [vmem:[%s161 + $0x180] sm:%s153] %v258
                %v260 = vld [vmem:[%s160 + $0x188] sm:%s153]
                %261 = vst [vmem:[%s161 + $0x188] sm:%s153] %v260
                %v262 = vld [vmem:[%s160 + $0x190] sm:%s153]
                %263 = vst [vmem:[%s161 + $0x190] sm:%s153] %v262
                %v264 = vld [vmem:[%s160 + $0x198] sm:%s153]
                %265 = vst [vmem:[%s161 + $0x198] sm:%s153] %v264
                %v266 = vld [vmem:[%s160 + $0x1a0] sm:%s153]
                %267 = vst [vmem:[%s161 + $0x1a0] sm:%s153] %v266
                %v268 = vld [vmem:[%s160 + $0x1a8] sm:%s153]
                %269 = vst [vmem:[%s161 + $0x1a8] sm:%s153] %v268
                %v270 = vld [vmem:[%s160 + $0x1b0] sm:%s153]
                %271 = vst [vmem:[%s161 + $0x1b0] sm:%s153] %v270
                %v272 = vld [vmem:[%s160 + $0x1b8] sm:%s153]
                %273 = vst [vmem:[%s161 + $0x1b8] sm:%s153] %v272
                %v274 = vld [vmem:[%s160 + $0x1c0] sm:%s153]
                %275 = vst [vmem:[%s161 + $0x1c0] sm:%s153] %v274
                %v276 = vld [vmem:[%s160 + $0x1c8] sm:%s153]
                %277 = vst [vmem:[%s161 + $0x1c8] sm:%s153] %v276
                %v278 = vld [vmem:[%s160 + $0x1d0] sm:%s153]
                %279 = vst [vmem:[%s161 + $0x1d0] sm:%s153] %v278
                %v280 = vld [vmem:[%s160 + $0x1d8] sm:%s153]
                %281 = vst [vmem:[%s161 + $0x1d8] sm:%s153] %v280
                %v282 = vld [vmem:[%s160 + $0x1e0] sm:%s153]
                %283 = vst [vmem:[%s161 + $0x1e0] sm:%s153] %v282
                %v284 = vld [vmem:[%s160 + $0x1e8] sm:%s153]
                %285 = vst [vmem:[%s161 + $0x1e8] sm:%s153] %v284
                %v286 = vld [vmem:[%s160 + $0x1f0] sm:%s153]
                %287 = vst [vmem:[%s161 + $0x1f0] sm:%s153] %v286
                %v288 = vld [vmem:[%s160 + $0x1f8] sm:%s153]
                %289 = vst [vmem:[%s161 + $0x1f8] sm:%s153] %v288
                %v290 = vld [vmem:[%s160 + $0x200] sm:%s153]
                %291 = vst [vmem:[%s161 + $0x200] sm:%s153] %v290
                %v292 = vld [vmem:[%s160 + $0x208] sm:%s153]
                %293 = vst [vmem:[%s161 + $0x208] sm:%s153] %v292
                %v294 = vld [vmem:[%s160 + $0x210] sm:%s153]
                %295 = vst [vmem:[%s161 + $0x210] sm:%s153] %v294
                %v296 = vld [vmem:[%s160 + $0x218] sm:%s153]
                %297 = vst [vmem:[%s161 + $0x218] sm:%s153] %v296
                %v298 = vld [vmem:[%s160 + $0x220] sm:%s153]
                %299 = vst [vmem:[%s161 + $0x220] sm:%s153] %v298
                %v300 = vld [vmem:[%s160 + $0x228] sm:%s153]
                %301 = vst [vmem:[%s161 + $0x228] sm:%s153] %v300
                %v302 = vld [vmem:[%s160 + $0x230] sm:%s153]
                %303 = vst [vmem:[%s161 + $0x230] sm:%s153] %v302
                %v304 = vld [vmem:[%s160 + $0x238] sm:%s153]
                %305 = vst [vmem:[%s161 + $0x238] sm:%s153] %v304
                %v306 = vld [vmem:[%s160 + $0x240] sm:%s153]
                %307 = vst [vmem:[%s161 + $0x240] sm:%s153] %v306
                %v308 = vld [vmem:[%s160 + $0x248] sm:%s153]
                %309 = vst [vmem:[%s161 + $0x248] sm:%s153] %v308
                %v310 = vld [vmem:[%s160 + $0x250] sm:%s153]
                %311 = vst [vmem:[%s161 + $0x250] sm:%s153] %v310
                %v312 = vld [vmem:[%s160 + $0x258] sm:%s153]
                %313 = vst [vmem:[%s161 + $0x258] sm:%s153] %v312
                %v314 = vld [vmem:[%s160 + $0x260] sm:%s153]
                %315 = vst [vmem:[%s161 + $0x260] sm:%s153] %v314
                %v316 = vld [vmem:[%s160 + $0x268] sm:%s153]
                %317 = vst [vmem:[%s161 + $0x268] sm:%s153] %v316
                %v318 = vld [vmem:[%s160 + $0x270] sm:%s153]
                %319 = vst [vmem:[%s161 + $0x270] sm:%s153] %v318
                %v320 = vld [vmem:[%s160 + $0x278] sm:%s153]
                %321 = vst [vmem:[%s161 + $0x278] sm:%s153] %v320
                %v322 = vld [vmem:[%s160 + $0x280] sm:%s153]
                %323 = vst [vmem:[%s161 + $0x280] sm:%s153] %v322
                %v324 = vld [vmem:[%s160 + $0x288] sm:%s153]
                %325 = vst [vmem:[%s161 + $0x288] sm:%s153] %v324
                %v326 = vld [vmem:[%s160 + $0x290] sm:%s153]
                %327 = vst [vmem:[%s161 + $0x290] sm:%s153] %v326
                %v328 = vld [vmem:[%s160 + $0x298] sm:%s153]
                %329 = vst [vmem:[%s161 + $0x298] sm:%s153] %v328
                %v330 = vld [vmem:[%s160 + $0x2a0] sm:%s153]
                %331 = vst [vmem:[%s161 + $0x2a0] sm:%s153] %v330
                %v332 = vld [vmem:[%s160 + $0x2a8] sm:%s153]
                %333 = vst [vmem:[%s161 + $0x2a8] sm:%s153] %v332
                %v334 = vld [vmem:[%s160 + $0x2b0] sm:%s153]
                %335 = vst [vmem:[%s161 + $0x2b0] sm:%s153] %v334
                %v336 = vld [vmem:[%s160 + $0x2b8] sm:%s153]
                %337 = vst [vmem:[%s161 + $0x2b8] sm:%s153] %v336
                %v338 = vld [vmem:[%s160 + $0x2c0] sm:%s153]
                %339 = vst [vmem:[%s161 + $0x2c0] sm:%s153] %v338
                %v340 = vld [vmem:[%s160 + $0x2c8] sm:%s153]
                %341 = vst [vmem:[%s161 + $0x2c8] sm:%s153] %v340
                %v342 = vld [vmem:[%s160 + $0x2d0] sm:%s153]
                %343 = vst [vmem:[%s161 + $0x2d0] sm:%s153] %v342
                %v344 = vld [vmem:[%s160 + $0x2d8] sm:%s153]
                %345 = vst [vmem:[%s161 + $0x2d8] sm:%s153] %v344
                %v346 = vld [vmem:[%s160 + $0x2e0] sm:%s153]
                %347 = vst [vmem:[%s161 + $0x2e0] sm:%s153] %v346
                %v348 = vld [vmem:[%s160 + $0x2e8] sm:%s153]
                %349 = vst [vmem:[%s161 + $0x2e8] sm:%s153] %v348
                %v350 = vld [vmem:[%s160 + $0x2f0] sm:%s153]
                %351 = vst [vmem:[%s161 + $0x2f0] sm:%s153] %v350
                %v352 = vld [vmem:[%s160 + $0x2f8] sm:%s153]
                %353 = vst [vmem:[%s161 + $0x2f8] sm:%s153] %v352
                %v354 = vld [vmem:[%s160 + $0x300] sm:%s153]
                %355 = vst [vmem:[%s161 + $0x300] sm:%s153] %v354
                %v356 = vld [vmem:[%s160 + $0x308] sm:%s153]
                %357 = vst [vmem:[%s161 + $0x308] sm:%s153] %v356
                %v358 = vld [vmem:[%s160 + $0x310] sm:%s153]
                %359 = vst [vmem:[%s161 + $0x310] sm:%s153] %v358
                %v360 = vld [vmem:[%s160 + $0x318] sm:%s153]
                %361 = vst [vmem:[%s161 + $0x318] sm:%s153] %v360
                %v362 = vld [vmem:[%s160 + $0x320] sm:%s153]
                %363 = vst [vmem:[%s161 + $0x320] sm:%s153] %v362
                %v364 = vld [vmem:[%s160 + $0x328] sm:%s153]
                %365 = vst [vmem:[%s161 + $0x328] sm:%s153] %v364
                %v366 = vld [vmem:[%s160 + $0x330] sm:%s153]
                %367 = vst [vmem:[%s161 + $0x330] sm:%s153] %v366
                %v368 = vld [vmem:[%s160 + $0x338] sm:%s153]
                %369 = vst [vmem:[%s161 + $0x338] sm:%s153] %v368
                %v370 = vld [vmem:[%s160 + $0x340] sm:%s153]
                %371 = vst [vmem:[%s161 + $0x340] sm:%s153] %v370
                %v372 = vld [vmem:[%s160 + $0x348] sm:%s153]
                %373 = vst [vmem:[%s161 + $0x348] sm:%s153] %v372
                %v374 = vld [vmem:[%s160 + $0x350] sm:%s153]
                %375 = vst [vmem:[%s161 + $0x350] sm:%s153] %v374
                %v376 = vld [vmem:[%s160 + $0x358] sm:%s153]
                %377 = vst [vmem:[%s161 + $0x358] sm:%s153] %v376
                %v378 = vld [vmem:[%s160 + $0x360] sm:%s153]
                %379 = vst [vmem:[%s161 + $0x360] sm:%s153] %v378
                %v380 = vld [vmem:[%s160 + $0x368] sm:%s153]
                %381 = vst [vmem:[%s161 + $0x368] sm:%s153] %v380
                %v382 = vld [vmem:[%s160 + $0x370] sm:%s153]
                %383 = vst [vmem:[%s161 + $0x370] sm:%s153] %v382
                %v384 = vld [vmem:[%s160 + $0x378] sm:%s153]
                %385 = vst [vmem:[%s161 + $0x378] sm:%s153] %v384
                %v386 = vld [vmem:[%s160 + $0x380] sm:%s153]
                %387 = vst [vmem:[%s161 + $0x380] sm:%s153] %v386
                %v388 = vld [vmem:[%s160 + $0x388] sm:%s153]
                %389 = vst [vmem:[%s161 + $0x388] sm:%s153] %v388
                %v390 = vld [vmem:[%s160 + $0x390] sm:%s153]
                %391 = vst [vmem:[%s161 + $0x390] sm:%s153] %v390
                %v392 = vld [vmem:[%s160 + $0x398] sm:%s153]
                %393 = vst [vmem:[%s161 + $0x398] sm:%s153] %v392
                %v394 = vld [vmem:[%s160 + $0x3a0] sm:%s153]
                %395 = vst [vmem:[%s161 + $0x3a0] sm:%s153] %v394
                %v396 = vld [vmem:[%s160 + $0x3a8] sm:%s153]
                %397 = vst [vmem:[%s161 + $0x3a8] sm:%s153] %v396
                %v398 = vld [vmem:[%s160 + $0x3b0] sm:%s153]
                %399 = vst [vmem:[%s161 + $0x3b0] sm:%s153] %v398
                %v400 = vld [vmem:[%s160 + $0x3b8] sm:%s153]
                %401 = vst [vmem:[%s161 + $0x3b8] sm:%s153] %v400
                %v402 = vld [vmem:[%s160 + $0x3c0] sm:%s153]
                %403 = vst [vmem:[%s161 + $0x3c0] sm:%s153] %v402
                %v404 = vld [vmem:[%s160 + $0x3c8] sm:%s153]
                %405 = vst [vmem:[%s161 + $0x3c8] sm:%s153] %v404
                %v406 = vld [vmem:[%s160 + $0x3d0] sm:%s153]
                %407 = vst [vmem:[%s161 + $0x3d0] sm:%s153] %v406
                %v408 = vld [vmem:[%s160 + $0x3d8] sm:%s153]
                %409 = vst [vmem:[%s161 + $0x3d8] sm:%s153] %v408
                %v410 = vld [vmem:[%s160 + $0x3e0] sm:%s153]
                %411 = vst [vmem:[%s161 + $0x3e0] sm:%s153] %v410
                %v412 = vld [vmem:[%s160 + $0x3e8] sm:%s153]
                %413 = vst [vmem:[%s161 + $0x3e8] sm:%s153] %v412
                %v414 = vld [vmem:[%s160 + $0x3f0] sm:%s153]
                %415 = vst [vmem:[%s161 + $0x3f0] sm:%s153] %v414
                %v416 = vld [vmem:[%s160 + $0x3f8] sm:%s153]
                %417 = vst [vmem:[%s161 + $0x3f8] sm:%s153] %v416
                %v418 = vld [vmem:[%s160 + $0x1000] sm:%s153]
                %419 = vst [vmem:[%s161 + $0x400] sm:%s153] %v418
                %v420 = vld [vmem:[%s160 + $0x1008] sm:%s153]
                %421 = vst [vmem:[%s161 + $0x408] sm:%s153] %v420
                %v422 = vld [vmem:[%s160 + $0x1010] sm:%s153]
                %423 = vst [vmem:[%s161 + $0x410] sm:%s153] %v422
                %v424 = vld [vmem:[%s160 + $0x1018] sm:%s153]
                %425 = vst [vmem:[%s161 + $0x418] sm:%s153] %v424
                %v426 = vld [vmem:[%s160 + $0x1020] sm:%s153]
                %427 = vst [vmem:[%s161 + $0x420] sm:%s153] %v426
                %v428 = vld [vmem:[%s160 + $0x1028] sm:%s153]
                %429 = vst [vmem:[%s161 + $0x428] sm:%s153] %v428
                %v430 = vld [vmem:[%s160 + $0x1030] sm:%s153]
                %431 = vst [vmem:[%s161 + $0x430] sm:%s153] %v430
                %v432 = vld [vmem:[%s160 + $0x1038] sm:%s153]
                %433 = vst [vmem:[%s161 + $0x438] sm:%s153] %v432
                %v434 = vld [vmem:[%s160 + $0x1040] sm:%s153]
                %435 = vst [vmem:[%s161 + $0x440] sm:%s153] %v434
                %v436 = vld [vmem:[%s160 + $0x1048] sm:%s153]
                %437 = vst [vmem:[%s161 + $0x448] sm:%s153] %v436
                %v438 = vld [vmem:[%s160 + $0x1050] sm:%s153]
                %439 = vst [vmem:[%s161 + $0x450] sm:%s153] %v438
                %v440 = vld [vmem:[%s160 + $0x1058] sm:%s153]
                %441 = vst [vmem:[%s161 + $0x458] sm:%s153] %v440
                %v442 = vld [vmem:[%s160 + $0x1060] sm:%s153]
                %443 = vst [vmem:[%s161 + $0x460] sm:%s153] %v442
                %v444 = vld [vmem:[%s160 + $0x1068] sm:%s153]
                %445 = vst [vmem:[%s161 + $0x468] sm:%s153] %v444
                %v446 = vld [vmem:[%s160 + $0x1070] sm:%s153]
                %447 = vst [vmem:[%s161 + $0x470] sm:%s153] %v446
                %v448 = vld [vmem:[%s160 + $0x1078] sm:%s153]
                %449 = vst [vmem:[%s161 + $0x478] sm:%s153] %v448
                %v450 = vld [vmem:[%s160 + $0x1080] sm:%s153]
                %451 = vst [vmem:[%s161 + $0x480] sm:%s153] %v450
                %v452 = vld [vmem:[%s160 + $0x1088] sm:%s153]
                %453 = vst [vmem:[%s161 + $0x488] sm:%s153] %v452
                %v454 = vld [vmem:[%s160 + $0x1090] sm:%s153]
                %455 = vst [vmem:[%s161 + $0x490] sm:%s153] %v454
                %v456 = vld [vmem:[%s160 + $0x1098] sm:%s153]
                %457 = vst [vmem:[%s161 + $0x498] sm:%s153] %v456
                %v458 = vld [vmem:[%s160 + $0x10a0] sm:%s153]
                %459 = vst [vmem:[%s161 + $0x4a0] sm:%s153] %v458
                %v460 = vld [vmem:[%s160 + $0x10a8] sm:%s153]
                %461 = vst [vmem:[%s161 + $0x4a8] sm:%s153] %v460
                %v462 = vld [vmem:[%s160 + $0x10b0] sm:%s153]
                %463 = vst [vmem:[%s161 + $0x4b0] sm:%s153] %v462
                %v464 = vld [vmem:[%s160 + $0x10b8] sm:%s153]
                %465 = vst [vmem:[%s161 + $0x4b8] sm:%s153] %v464
                %v466 = vld [vmem:[%s160 + $0x10c0] sm:%s153]
                %467 = vst [vmem:[%s161 + $0x4c0] sm:%s153] %v466
                %v468 = vld [vmem:[%s160 + $0x10c8] sm:%s153]
                %469 = vst [vmem:[%s161 + $0x4c8] sm:%s153] %v468
                %v470 = vld [vmem:[%s160 + $0x10d0] sm:%s153]
                %471 = vst [vmem:[%s161 + $0x4d0] sm:%s153] %v470
                %v472 = vld [vmem:[%s160 + $0x10d8] sm:%s153]
                %473 = vst [vmem:[%s161 + $0x4d8] sm:%s153] %v472
                %v474 = vld [vmem:[%s160 + $0x10e0] sm:%s153]
                %475 = vst [vmem:[%s161 + $0x4e0] sm:%s153] %v474
                %v476 = vld [vmem:[%s160 + $0x10e8] sm:%s153]
                %477 = vst [vmem:[%s161 + $0x4e8] sm:%s153] %v476
                %v478 = vld [vmem:[%s160 + $0x10f0] sm:%s153]
                %479 = vst [vmem:[%s161 + $0x4f0] sm:%s153] %v478
                %v480 = vld [vmem:[%s160 + $0x10f8] sm:%s153]
                %481 = vst [vmem:[%s161 + $0x4f8] sm:%s153] %v480
                %v482 = vld [vmem:[%s160 + $0x1100] sm:%s153]
                %483 = vst [vmem:[%s161 + $0x500] sm:%s153] %v482
                %v484 = vld [vmem:[%s160 + $0x1108] sm:%s153]
                %485 = vst [vmem:[%s161 + $0x508] sm:%s153] %v484
                %v486 = vld [vmem:[%s160 + $0x1110] sm:%s153]
                %487 = vst [vmem:[%s161 + $0x510] sm:%s153] %v486
                %v488 = vld [vmem:[%s160 + $0x1118] sm:%s153]
                %489 = vst [vmem:[%s161 + $0x518] sm:%s153] %v488
                %v490 = vld [vmem:[%s160 + $0x1120] sm:%s153]
                %491 = vst [vmem:[%s161 + $0x520] sm:%s153] %v490
                %v492 = vld [vmem:[%s160 + $0x1128] sm:%s153]
                %493 = vst [vmem:[%s161 + $0x528] sm:%s153] %v492
                %v494 = vld [vmem:[%s160 + $0x1130] sm:%s153]
                %495 = vst [vmem:[%s161 + $0x530] sm:%s153] %v494
                %v496 = vld [vmem:[%s160 + $0x1138] sm:%s153]
                %497 = vst [vmem:[%s161 + $0x538] sm:%s153] %v496
                %v498 = vld [vmem:[%s160 + $0x1140] sm:%s153]
                %499 = vst [vmem:[%s161 + $0x540] sm:%s153] %v498
                %v500 = vld [vmem:[%s160 + $0x1148] sm:%s153]
                %501 = vst [vmem:[%s161 + $0x548] sm:%s153] %v500
                %v502 = vld [vmem:[%s160 + $0x1150] sm:%s153]
                %503 = vst [vmem:[%s161 + $0x550] sm:%s153] %v502
                %v504 = vld [vmem:[%s160 + $0x1158] sm:%s153]
                %505 = vst [vmem:[%s161 + $0x558] sm:%s153] %v504
                %v506 = vld [vmem:[%s160 + $0x1160] sm:%s153]
                %507 = vst [vmem:[%s161 + $0x560] sm:%s153] %v506
                %v508 = vld [vmem:[%s160 + $0x1168] sm:%s153]
                %509 = vst [vmem:[%s161 + $0x568] sm:%s153] %v508
                %v510 = vld [vmem:[%s160 + $0x1170] sm:%s153]
                %511 = vst [vmem:[%s161 + $0x570] sm:%s153] %v510
                %v512 = vld [vmem:[%s160 + $0x1178] sm:%s153]
                %513 = vst [vmem:[%s161 + $0x578] sm:%s153] %v512
                %v514 = vld [vmem:[%s160 + $0x1180] sm:%s153]
                %515 = vst [vmem:[%s161 + $0x580] sm:%s153] %v514
                %v516 = vld [vmem:[%s160 + $0x1188] sm:%s153]
                %517 = vst [vmem:[%s161 + $0x588] sm:%s153] %v516
                %v518 = vld [vmem:[%s160 + $0x1190] sm:%s153]
                %519 = vst [vmem:[%s161 + $0x590] sm:%s153] %v518
                %v520 = vld [vmem:[%s160 + $0x1198] sm:%s153]
                %521 = vst [vmem:[%s161 + $0x598] sm:%s153] %v520
                %v522 = vld [vmem:[%s160 + $0x11a0] sm:%s153]
                %523 = vst [vmem:[%s161 + $0x5a0] sm:%s153] %v522
                %v524 = vld [vmem:[%s160 + $0x11a8] sm:%s153]
                %525 = vst [vmem:[%s161 + $0x5a8] sm:%s153] %v524
                %v526 = vld [vmem:[%s160 + $0x11b0] sm:%s153]
                %527 = vst [vmem:[%s161 + $0x5b0] sm:%s153] %v526
                %v528 = vld [vmem:[%s160 + $0x11b8] sm:%s153]
                %529 = vst [vmem:[%s161 + $0x5b8] sm:%s153] %v528
                %v530 = vld [vmem:[%s160 + $0x11c0] sm:%s153]
                %531 = vst [vmem:[%s161 + $0x5c0] sm:%s153] %v530
                %v532 = vld [vmem:[%s160 + $0x11c8] sm:%s153]
                %533 = vst [vmem:[%s161 + $0x5c8] sm:%s153] %v532
                %v534 = vld [vmem:[%s160 + $0x11d0] sm:%s153]
                %535 = vst [vmem:[%s161 + $0x5d0] sm:%s153] %v534
                %v536 = vld [vmem:[%s160 + $0x11d8] sm:%s153]
                %537 = vst [vmem:[%s161 + $0x5d8] sm:%s153] %v536
                %v538 = vld [vmem:[%s160 + $0x11e0] sm:%s153]
                %539 = vst [vmem:[%s161 + $0x5e0] sm:%s153] %v538
                %v540 = vld [vmem:[%s160 + $0x11e8] sm:%s153]
                %541 = vst [vmem:[%s161 + $0x5e8] sm:%s153] %v540
                %v542 = vld [vmem:[%s160 + $0x11f0] sm:%s153]
                %543 = vst [vmem:[%s161 + $0x5f0] sm:%s153] %v542
                %v544 = vld [vmem:[%s160 + $0x11f8] sm:%s153]
                %545 = vst [vmem:[%s161 + $0x5f8] sm:%s153] %v544
                %v546 = vld [vmem:[%s160 + $0x1200] sm:%s153]
                %547 = vst [vmem:[%s161 + $0x600] sm:%s153] %v546
                %v548 = vld [vmem:[%s160 + $0x1208] sm:%s153]
                %549 = vst [vmem:[%s161 + $0x608] sm:%s153] %v548
                %v550 = vld [vmem:[%s160 + $0x1210] sm:%s153]
                %551 = vst [vmem:[%s161 + $0x610] sm:%s153] %v550
                %v552 = vld [vmem:[%s160 + $0x1218] sm:%s153]
                %553 = vst [vmem:[%s161 + $0x618] sm:%s153] %v552
                %v554 = vld [vmem:[%s160 + $0x1220] sm:%s153]
                %555 = vst [vmem:[%s161 + $0x620] sm:%s153] %v554
                %v556 = vld [vmem:[%s160 + $0x1228] sm:%s153]
                %557 = vst [vmem:[%s161 + $0x628] sm:%s153] %v556
                %v558 = vld [vmem:[%s160 + $0x1230] sm:%s153]
                %559 = vst [vmem:[%s161 + $0x630] sm:%s153] %v558
                %v560 = vld [vmem:[%s160 + $0x1238] sm:%s153]
                %561 = vst [vmem:[%s161 + $0x638] sm:%s153] %v560
                %v562 = vld [vmem:[%s160 + $0x1240] sm:%s153]
                %563 = vst [vmem:[%s161 + $0x640] sm:%s153] %v562
                %v564 = vld [vmem:[%s160 + $0x1248] sm:%s153]
                %565 = vst [vmem:[%s161 + $0x648] sm:%s153] %v564
                %v566 = vld [vmem:[%s160 + $0x1250] sm:%s153]
                %567 = vst [vmem:[%s161 + $0x650] sm:%s153] %v566
                %v568 = vld [vmem:[%s160 + $0x1258] sm:%s153]
                %569 = vst [vmem:[%s161 + $0x658] sm:%s153] %v568
                %v570 = vld [vmem:[%s160 + $0x1260] sm:%s153]
                %571 = vst [vmem:[%s161 + $0x660] sm:%s153] %v570
                %v572 = vld [vmem:[%s160 + $0x1268] sm:%s153]
                %573 = vst [vmem:[%s161 + $0x668] sm:%s153] %v572
                %v574 = vld [vmem:[%s160 + $0x1270] sm:%s153]
                %575 = vst [vmem:[%s161 + $0x670] sm:%s153] %v574
                %v576 = vld [vmem:[%s160 + $0x1278] sm:%s153]
                %577 = vst [vmem:[%s161 + $0x678] sm:%s153] %v576
                %v578 = vld [vmem:[%s160 + $0x1280] sm:%s153]
                %579 = vst [vmem:[%s161 + $0x680] sm:%s153] %v578
                %v580 = vld [vmem:[%s160 + $0x1288] sm:%s153]
                %581 = vst [vmem:[%s161 + $0x688] sm:%s153] %v580
                %v582 = vld [vmem:[%s160 + $0x1290] sm:%s153]
                %583 = vst [vmem:[%s161 + $0x690] sm:%s153] %v582
                %v584 = vld [vmem:[%s160 + $0x1298] sm:%s153]
                %585 = vst [vmem:[%s161 + $0x698] sm:%s153] %v584
                %v586 = vld [vmem:[%s160 + $0x12a0] sm:%s153]
                %587 = vst [vmem:[%s161 + $0x6a0] sm:%s153] %v586
                %v588 = vld [vmem:[%s160 + $0x12a8] sm:%s153]
                %589 = vst [vmem:[%s161 + $0x6a8] sm:%s153] %v588
                %v590 = vld [vmem:[%s160 + $0x12b0] sm:%s153]
                %591 = vst [vmem:[%s161 + $0x6b0] sm:%s153] %v590
                %v592 = vld [vmem:[%s160 + $0x12b8] sm:%s153]
                %593 = vst [vmem:[%s161 + $0x6b8] sm:%s153] %v592
                %v594 = vld [vmem:[%s160 + $0x12c0] sm:%s153]
                %595 = vst [vmem:[%s161 + $0x6c0] sm:%s153] %v594
                %v596 = vld [vmem:[%s160 + $0x12c8] sm:%s153]
                %597 = vst [vmem:[%s161 + $0x6c8] sm:%s153] %v596
                %v598 = vld [vmem:[%s160 + $0x12d0] sm:%s153]
                %599 = vst [vmem:[%s161 + $0x6d0] sm:%s153] %v598
                %v600 = vld [vmem:[%s160 + $0x12d8] sm:%s153]
                %601 = vst [vmem:[%s161 + $0x6d8] sm:%s153] %v600
                %v602 = vld [vmem:[%s160 + $0x12e0] sm:%s153]
                %603 = vst [vmem:[%s161 + $0x6e0] sm:%s153] %v602
                %v604 = vld [vmem:[%s160 + $0x12e8] sm:%s153]
                %605 = vst [vmem:[%s161 + $0x6e8] sm:%s153] %v604
                %v606 = vld [vmem:[%s160 + $0x12f0] sm:%s153]
                %607 = vst [vmem:[%s161 + $0x6f0] sm:%s153] %v606
                %v608 = vld [vmem:[%s160 + $0x12f8] sm:%s153]
                %609 = vst [vmem:[%s161 + $0x6f8] sm:%s153] %v608
                %v610 = vld [vmem:[%s160 + $0x1300] sm:%s153]
                %611 = vst [vmem:[%s161 + $0x700] sm:%s153] %v610
                %v612 = vld [vmem:[%s160 + $0x1308] sm:%s153]
                %613 = vst [vmem:[%s161 + $0x708] sm:%s153] %v612
                %v614 = vld [vmem:[%s160 + $0x1310] sm:%s153]
                %615 = vst [vmem:[%s161 + $0x710] sm:%s153] %v614
                %v616 = vld [vmem:[%s160 + $0x1318] sm:%s153]
                %617 = vst [vmem:[%s161 + $0x718] sm:%s153] %v616
                %v618 = vld [vmem:[%s160 + $0x1320] sm:%s153]
                %619 = vst [vmem:[%s161 + $0x720] sm:%s153] %v618
                %v620 = vld [vmem:[%s160 + $0x1328] sm:%s153]
                %621 = vst [vmem:[%s161 + $0x728] sm:%s153] %v620
                %v622 = vld [vmem:[%s160 + $0x1330] sm:%s153]
                %623 = vst [vmem:[%s161 + $0x730] sm:%s153] %v622
                %v624 = vld [vmem:[%s160 + $0x1338] sm:%s153]
                %625 = vst [vmem:[%s161 + $0x738] sm:%s153] %v624
                %v626 = vld [vmem:[%s160 + $0x1340] sm:%s153]
                %627 = vst [vmem:[%s161 + $0x740] sm:%s153] %v626
                %v628 = vld [vmem:[%s160 + $0x1348] sm:%s153]
                %629 = vst [vmem:[%s161 + $0x748] sm:%s153] %v628
                %v630 = vld [vmem:[%s160 + $0x1350] sm:%s153]
                %631 = vst [vmem:[%s161 + $0x750] sm:%s153] %v630
                %v632 = vld [vmem:[%s160 + $0x1358] sm:%s153]
                %633 = vst [vmem:[%s161 + $0x758] sm:%s153] %v632
                %v634 = vld [vmem:[%s160 + $0x1360] sm:%s153]
                %635 = vst [vmem:[%s161 + $0x760] sm:%s153] %v634
                %v636 = vld [vmem:[%s160 + $0x1368] sm:%s153]
                %637 = vst [vmem:[%s161 + $0x768] sm:%s153] %v636
                %v638 = vld [vmem:[%s160 + $0x1370] sm:%s153]
                %639 = vst [vmem:[%s161 + $0x770] sm:%s153] %v638
                %v640 = vld [vmem:[%s160 + $0x1378] sm:%s153]
                %641 = vst [vmem:[%s161 + $0x778] sm:%s153] %v640
                %v642 = vld [vmem:[%s160 + $0x1380] sm:%s153]
                %643 = vst [vmem:[%s161 + $0x780] sm:%s153] %v642
                %v644 = vld [vmem:[%s160 + $0x1388] sm:%s153]
                %645 = vst [vmem:[%s161 + $0x788] sm:%s153] %v644
                %v646 = vld [vmem:[%s160 + $0x1390] sm:%s153]
                %647 = vst [vmem:[%s161 + $0x790] sm:%s153] %v646
                %v648 = vld [vmem:[%s160 + $0x1398] sm:%s153]
                %649 = vst [vmem:[%s161 + $0x798] sm:%s153] %v648
                %v650 = vld [vmem:[%s160 + $0x13a0] sm:%s153]
                %651 = vst [vmem:[%s161 + $0x7a0] sm:%s153] %v650
                %v652 = vld [vmem:[%s160 + $0x13a8] sm:%s153]
                %653 = vst [vmem:[%s161 + $0x7a8] sm:%s153] %v652
                %v654 = vld [vmem:[%s160 + $0x13b0] sm:%s153]
                %655 = vst [vmem:[%s161 + $0x7b0] sm:%s153] %v654
                %v656 = vld [vmem:[%s160 + $0x13b8] sm:%s153]
                %657 = vst [vmem:[%s161 + $0x7b8] sm:%s153] %v656
                %v658 = vld [vmem:[%s160 + $0x13c0] sm:%s153]
                %659 = vst [vmem:[%s161 + $0x7c0] sm:%s153] %v658
                %v660 = vld [vmem:[%s160 + $0x13c8] sm:%s153]
                %661 = vst [vmem:[%s161 + $0x7c8] sm:%s153] %v660
                %v662 = vld [vmem:[%s160 + $0x13d0] sm:%s153]
                %663 = vst [vmem:[%s161 + $0x7d0] sm:%s153] %v662
                %v664 = vld [vmem:[%s160 + $0x13d8] sm:%s153]
                %665 = vst [vmem:[%s161 + $0x7d8] sm:%s153] %v664
                %v666 = vld [vmem:[%s160 + $0x13e0] sm:%s153]
                %667 = vst [vmem:[%s161 + $0x7e0] sm:%s153] %v666
                %v668 = vld [vmem:[%s160 + $0x13e8] sm:%s153]
                %669 = vst [vmem:[%s161 + $0x7e8] sm:%s153] %v668
                %v670 = vld [vmem:[%s160 + $0x13f0] sm:%s153]
                %671 = vst [vmem:[%s161 + $0x7f0] sm:%s153] %v670
                %v672 = vld [vmem:[%s160 + $0x13f8] sm:%s153]
                %673 = vst [vmem:[%s161 + $0x7f8] sm:%s153] %v672
              $region37: #{forward.1} parent=31 // loop_footer
                %s159 = sadd.s32 1, %s155
              $region38: #{forward.1} parent=31 // loop_footer_branch
                %154 = sbr.rel target = $region34
              $region39: #{forward.1} parent=31 // loop_exit
                _
            $region32: #{forward.1} parent=23 // pred_fallthru
              _
          $region24: #{forward.1} parent=19 // pred_fallthru
            _
          %1198 = vnop
        $region20: #{forward.1} parent=15 // pred_fallthru
          _
        // Predicated region
        $region55: #{forward.1} parent=15 // pred_check
          %p1199 = pneg %p58
        $region56: #{forward.1} parent=15 // pred_check_branch
          %1201 = sbr.rel (%p1199) target = $region58
        $region57: #{forward.1} parent=15 // pred_region
          %s1202 = smul.u32 16, %s12
          %p1203 = scmp.lt.s32.totalorder %s1202, 63
          %s1204 = scalar_select %p1203, %s1202, 63
          %s1205 = smul.addr %s1204, 8
          %s1206 = smul.addr %s1205, 8
          %s1207 = scalar_lea.vmem %s1, %s1206
          %s1208 = smul.u32 16, %s12
        $region58: #{forward.1} parent=15 // pred_fallthru
          _
        // Predicated region
        $region59: #{forward.1} parent=15 // pred_check
          %p1209 = pneg %p84
        $region60: #{forward.1} parent=15 // pred_check_branch
          %1211 = sbr.rel (%p1209) target = $region62
        $region61: #{forward.1} parent=15 // pred_region
          %s1212 = smul.u32 2, %s12
          %p1213 = scmp.lt.s32.totalorder %s1212, 7
          %s1214 = scalar_select %p1213, %s1212, 7
          %s1215 = smul.addr %s1214, 8
          %s1216 = scalar_lea.vmem %s2, %s1215
          %s1217 = smul.u32 2, %s12
        $region62: #{forward.1} parent=15 // pred_fallthru
          _
      $region16: #{forward.1} parent=5 // pred_fallthru
        _
      %p1218 = scmp.le.s32.totalorder 1, %s12
      %p1219 = scmp.lt.s32.totalorder %s12, 5
      %p1220 = pnand %p1218, %p1219
      %p1221 = pneg %p1220
      // Predicated region
      $region63: #{forward.1} parent=5 // pred_check
        _
      $region64: #{forward.1} parent=5 // pred_check_branch
        %1223 = sbr.rel (%p1220) target = $region66
      $region65: #{forward.1} parent=5 // pred_region
        %s1224 = ssub.s32 %s12, 1
        %s1225 = sand.u32 %s25, 1
        %s1226 = sand.u32 %s25, 1
        %s1227 = smul.addr %s1226, 2048
        %s1228 = scalar_lea.vmem [#allocation2], %s1227
        // Predicated region
        $region67: #{forward.1} parent=65 // pred_check
          %p1229 = pneg %p38
        $region68: #{forward.1} parent=65 // pred_check_branch
          %1231 = sbr.rel (%p1229) target = $region70
        $region69: #{forward.1} parent=65 // pred_region
          _
        $region70: #{forward.1} parent=65 // pred_fallthru
          _
        %s1232 = sand.u32 %s25, 1
        %s1233 = sand.u32 %s25, 1
        %s1234 = smul.addr %s1233, 2048
        %s1235 = scalar_lea.vmem [#allocation2], %s1234
        %p1236 = pneg %p38
        %p1237 = pneg %p35
        %s1238 = smul.u32 16, %s17
        %p1239 = scmp.lt.s32.totalorder %s1238, 63
        %s1240 = scalar_select %p1239, %s1238, 63
        %s1241 = smul.addr %s1240, 8
        %s1242 = smul.addr %s1241, 8
        %s1243 = scalar_lea.vmem %s1, %s1242
        %p1244 = pneg %p64
        %p1245 = pneg %p61
        %s1246 = smul.u32 2, %s17
        %p1247 = scmp.lt.s32.totalorder %s1246, 7
        %s1248 = scalar_select %p1247, %s1246, 7
        %s1249 = smul.addr %s1248, 8
        %s1250 = scalar_lea.vmem %s2, %s1249
        %p1251 = pneg %p90
        %p1252 = pneg %p87
        %p1253 = pneg %p116
        %p1254 = pneg %p113
        %s1255 = sand.u32 %s103, 1
        %s1256 = scalar_lea.sflag [#allocation4], %s1255
        %s1257 = sand.u32 %s103, 1
        %s1258 = smul.addr %s1257, 32
        %s1259 = scalar_lea.vmem [#allocation3], %s1258
        %s1260 = smul.u32 16, %s17
        %s1261 = smul.u32 16, %s17
        %p1262 = scmp.lt.s32.totalorder %s1261, 63
        %s1263 = scalar_select %p1262, %s1261, 63
        %s1264 = smul.addr %s1263, 8
        %s1265 = smul.addr %s1264, 8
        %s1266 = scalar_lea.vmem %s1, %s1265
        %s1267 = smul.u32 16, %s17
        %s1268 = smul.u32 2, %s17
        %p1269 = scmp.lt.s32.totalorder %s1268, 7
        %s1270 = scalar_select %p1269, %s1268, 7
        %s1271 = smul.addr %s1270, 8
        %s1272 = scalar_lea.vmem %s2, %s1271
        %s1273 = smul.u32 2, %s17
        %s1274 = smul.u32 2, %s17
        %v1275 = vld [vmem:[%s1266] sm:$0xff]
        %v1276 = vld [vmem:[%s1266 + $0x8] sm:$0xff]
        %v1277 = vld [vmem:[%s1266 + $0x10] sm:$0xff]
        %v1278 = vld [vmem:[%s1266 + $0x18] sm:$0xff]
        %v1279 = vld [vmem:[%s1266 + $0x20] sm:$0xff]
        %v1280 = vld [vmem:[%s1266 + $0x28] sm:$0xff]
        %v1281 = vld [vmem:[%s1266 + $0x30] sm:$0xff]
        %v1282 = vld [vmem:[%s1266 + $0x38] sm:$0xff]
        %v1283 = vld [vmem:[%s1266 + $0x40] sm:$0xff]
        %v1284 = vld [vmem:[%s1266 + $0x48] sm:$0xff]
        %v1285 = vld [vmem:[%s1266 + $0x50] sm:$0xff]
        %v1286 = vld [vmem:[%s1266 + $0x58] sm:$0xff]
        %v1287 = vld [vmem:[%s1266 + $0x60] sm:$0xff]
        %v1288 = vld [vmem:[%s1266 + $0x68] sm:$0xff]
        %v1289 = vld [vmem:[%s1266 + $0x70] sm:$0xff]
        %v1290 = vld [vmem:[%s1266 + $0x78] sm:$0xff]
        %v1291 = vld [vmem:[%s1266 + $0x80] sm:$0xff]
        %v1292 = vld [vmem:[%s1266 + $0x88] sm:$0xff]
        %v1293 = vld [vmem:[%s1266 + $0x90] sm:$0xff]
        %v1294 = vld [vmem:[%s1266 + $0x98] sm:$0xff]
        %v1295 = vld [vmem:[%s1266 + $0xa0] sm:$0xff]
        %v1296 = vld [vmem:[%s1266 + $0xa8] sm:$0xff]
        %v1297 = vld [vmem:[%s1266 + $0xb0] sm:$0xff]
        %v1298 = vld [vmem:[%s1266 + $0xb8] sm:$0xff]
        %v1299 = vld [vmem:[%s1266 + $0xc0] sm:$0xff]
        %v1300 = vld [vmem:[%s1266 + $0xc8] sm:$0xff]
        %v1301 = vld [vmem:[%s1266 + $0xd0] sm:$0xff]
        %v1302 = vld [vmem:[%s1266 + $0xd8] sm:$0xff]
        %v1303 = vld [vmem:[%s1266 + $0xe0] sm:$0xff]
        %v1304 = vld [vmem:[%s1266 + $0xe8] sm:$0xff]
        %v1305 = vld [vmem:[%s1266 + $0xf0] sm:$0xff]
        %v1306 = vld [vmem:[%s1266 + $0xf8] sm:$0xff]
        %v1307 = vld [vmem:[%s1266 + $0x100] sm:$0xff]
        %v1308 = vld [vmem:[%s1266 + $0x108] sm:$0xff]
        %v1309 = vld [vmem:[%s1266 + $0x110] sm:$0xff]
        %v1310 = vld [vmem:[%s1266 + $0x118] sm:$0xff]
        %v1311 = vld [vmem:[%s1266 + $0x120] sm:$0xff]
        %v1312 = vld [vmem:[%s1266 + $0x128] sm:$0xff]
        %v1313 = vld [vmem:[%s1266 + $0x130] sm:$0xff]
        %v1314 = vld [vmem:[%s1266 + $0x138] sm:$0xff]
        %v1315 = vld [vmem:[%s1266 + $0x140] sm:$0xff]
        %v1316 = vld [vmem:[%s1266 + $0x148] sm:$0xff]
        %v1317 = vld [vmem:[%s1266 + $0x150] sm:$0xff]
        %v1318 = vld [vmem:[%s1266 + $0x158] sm:$0xff]
        %v1319 = vld [vmem:[%s1266 + $0x160] sm:$0xff]
        %v1320 = vld [vmem:[%s1266 + $0x168] sm:$0xff]
        %v1321 = vld [vmem:[%s1266 + $0x170] sm:$0xff]
        %v1322 = vld [vmem:[%s1266 + $0x178] sm:$0xff]
        %v1323 = vld [vmem:[%s1266 + $0x180] sm:$0xff]
        %v1324 = vld [vmem:[%s1266 + $0x188] sm:$0xff]
        %v1325 = vld [vmem:[%s1266 + $0x190] sm:$0xff]
        %v1326 = vld [vmem:[%s1266 + $0x198] sm:$0xff]
        %v1327 = vld [vmem:[%s1266 + $0x1a0] sm:$0xff]
        %v1328 = vld [vmem:[%s1266 + $0x1a8] sm:$0xff]
        %v1329 = vld [vmem:[%s1266 + $0x1b0] sm:$0xff]
        %v1330 = vld [vmem:[%s1266 + $0x1b8] sm:$0xff]
        %v1331 = vld [vmem:[%s1266 + $0x1c0] sm:$0xff]
        %v1332 = vld [vmem:[%s1266 + $0x1c8] sm:$0xff]
        %v1333 = vld [vmem:[%s1266 + $0x1d0] sm:$0xff]
        %v1334 = vld [vmem:[%s1266 + $0x1d8] sm:$0xff]
        %v1335 = vld [vmem:[%s1266 + $0x1e0] sm:$0xff]
        %v1336 = vld [vmem:[%s1266 + $0x1e8] sm:$0xff]
        %v1337 = vld [vmem:[%s1266 + $0x1f0] sm:$0xff]
        %v1338 = vld [vmem:[%s1266 + $0x1f8] sm:$0xff]
        %v1339 = vld [vmem:[%s1266 + $0x200] sm:$0xff]
        %v1340 = vld [vmem:[%s1266 + $0x208] sm:$0xff]
        %v1341 = vld [vmem:[%s1266 + $0x210] sm:$0xff]
        %v1342 = vld [vmem:[%s1266 + $0x218] sm:$0xff]
        %v1343 = vld [vmem:[%s1266 + $0x220] sm:$0xff]
        %v1344 = vld [vmem:[%s1266 + $0x228] sm:$0xff]
        %v1345 = vld [vmem:[%s1266 + $0x230] sm:$0xff]
        %v1346 = vld [vmem:[%s1266 + $0x238] sm:$0xff]
        %v1347 = vld [vmem:[%s1266 + $0x240] sm:$0xff]
        %v1348 = vld [vmem:[%s1266 + $0x248] sm:$0xff]
        %v1349 = vld [vmem:[%s1266 + $0x250] sm:$0xff]
        %v1350 = vld [vmem:[%s1266 + $0x258] sm:$0xff]
        %v1351 = vld [vmem:[%s1266 + $0x260] sm:$0xff]
        %v1352 = vld [vmem:[%s1266 + $0x268] sm:$0xff]
        %v1353 = vld [vmem:[%s1266 + $0x270] sm:$0xff]
        %v1354 = vld [vmem:[%s1266 + $0x278] sm:$0xff]
        %v1355 = vld [vmem:[%s1266 + $0x280] sm:$0xff]
        %v1356 = vld [vmem:[%s1266 + $0x288] sm:$0xff]
        %v1357 = vld [vmem:[%s1266 + $0x290] sm:$0xff]
        %v1358 = vld [vmem:[%s1266 + $0x298] sm:$0xff]
        %v1359 = vld [vmem:[%s1266 + $0x2a0] sm:$0xff]
        %v1360 = vld [vmem:[%s1266 + $0x2a8] sm:$0xff]
        %v1361 = vld [vmem:[%s1266 + $0x2b0] sm:$0xff]
        %v1362 = vld [vmem:[%s1266 + $0x2b8] sm:$0xff]
        %v1363 = vld [vmem:[%s1266 + $0x2c0] sm:$0xff]
        %v1364 = vld [vmem:[%s1266 + $0x2c8] sm:$0xff]
        %v1365 = vld [vmem:[%s1266 + $0x2d0] sm:$0xff]
        %v1366 = vld [vmem:[%s1266 + $0x2d8] sm:$0xff]
        %v1367 = vld [vmem:[%s1266 + $0x2e0] sm:$0xff]
        %v1368 = vld [vmem:[%s1266 + $0x2e8] sm:$0xff]
        %v1369 = vld [vmem:[%s1266 + $0x2f0] sm:$0xff]
        %v1370 = vld [vmem:[%s1266 + $0x2f8] sm:$0xff]
        %v1371 = vld [vmem:[%s1266 + $0x300] sm:$0xff]
        %v1372 = vld [vmem:[%s1266 + $0x308] sm:$0xff]
        %v1373 = vld [vmem:[%s1266 + $0x310] sm:$0xff]
        %v1374 = vld [vmem:[%s1266 + $0x318] sm:$0xff]
        %v1375 = vld [vmem:[%s1266 + $0x320] sm:$0xff]
        %v1376 = vld [vmem:[%s1266 + $0x328] sm:$0xff]
        %v1377 = vld [vmem:[%s1266 + $0x330] sm:$0xff]
        %v1378 = vld [vmem:[%s1266 + $0x338] sm:$0xff]
        %v1379 = vld [vmem:[%s1266 + $0x340] sm:$0xff]
        %v1380 = vld [vmem:[%s1266 + $0x348] sm:$0xff]
        %v1381 = vld [vmem:[%s1266 + $0x350] sm:$0xff]
        %v1382 = vld [vmem:[%s1266 + $0x358] sm:$0xff]
        %v1383 = vld [vmem:[%s1266 + $0x360] sm:$0xff]
        %v1384 = vld [vmem:[%s1266 + $0x368] sm:$0xff]
        %v1385 = vld [vmem:[%s1266 + $0x370] sm:$0xff]
        %v1386 = vld [vmem:[%s1266 + $0x378] sm:$0xff]
        %v1387 = vld [vmem:[%s1266 + $0x380] sm:$0xff]
        %v1388 = vld [vmem:[%s1266 + $0x388] sm:$0xff]
        %v1389 = vld [vmem:[%s1266 + $0x390] sm:$0xff]
        %v1390 = vld [vmem:[%s1266 + $0x398] sm:$0xff]
        %v1391 = vld [vmem:[%s1266 + $0x3a0] sm:$0xff]
        %v1392 = vld [vmem:[%s1266 + $0x3a8] sm:$0xff]
        %v1393 = vld [vmem:[%s1266 + $0x3b0] sm:$0xff]
        %v1394 = vld [vmem:[%s1266 + $0x3b8] sm:$0xff]
        %v1395 = vld [vmem:[%s1266 + $0x3c0] sm:$0xff]
        %v1396 = vld [vmem:[%s1266 + $0x3c8] sm:$0xff]
        %v1397 = vld [vmem:[%s1266 + $0x3d0] sm:$0xff]
        %v1398 = vld [vmem:[%s1266 + $0x3d8] sm:$0xff]
        %v1399 = vld [vmem:[%s1266 + $0x3e0] sm:$0xff]
        %v1400 = vld [vmem:[%s1266 + $0x3e8] sm:$0xff]
        %v1401 = vld [vmem:[%s1266 + $0x3f0] sm:$0xff]
        %v1402 = vld [vmem:[%s1266 + $0x3f8] sm:$0xff]
        %v1403 = vld [vmem:[%s1272] sm:$0xff]
        %v1404 = vld [vmem:[%s1272 + $0x8] sm:$0xff]
        %v1405 = vld [vmem:[%s1228] sm:$0xff]
        %v1406 = vld [vmem:[%s1228 + $0x8] sm:$0xff]
        %v1407 = vld [vmem:[%s1228 + $0x10] sm:$0xff]
        %v1408 = vld [vmem:[%s1228 + $0x18] sm:$0xff]
        %v1409 = vld [vmem:[%s1228 + $0x20] sm:$0xff]
        %v1410 = vld [vmem:[%s1228 + $0x28] sm:$0xff]
        %v1411 = vld [vmem:[%s1228 + $0x30] sm:$0xff]
        %v1412 = vld [vmem:[%s1228 + $0x38] sm:$0xff]
        %v1413 = vld [vmem:[%s1228 + $0x40] sm:$0xff]
        %v1414 = vld [vmem:[%s1228 + $0x48] sm:$0xff]
        %v1415 = vld [vmem:[%s1228 + $0x50] sm:$0xff]
        %v1416 = vld [vmem:[%s1228 + $0x58] sm:$0xff]
        %v1417 = vld [vmem:[%s1228 + $0x60] sm:$0xff]
        %v1418 = vld [vmem:[%s1228 + $0x68] sm:$0xff]
        %v1419 = vld [vmem:[%s1228 + $0x70] sm:$0xff]
        %v1420 = vld [vmem:[%s1228 + $0x78] sm:$0xff]
        %v1421 = vld [vmem:[%s1228 + $0x80] sm:$0xff]
        %v1422 = vld [vmem:[%s1228 + $0x88] sm:$0xff]
        %v1423 = vld [vmem:[%s1228 + $0x90] sm:$0xff]
        %v1424 = vld [vmem:[%s1228 + $0x98] sm:$0xff]
        %v1425 = vld [vmem:[%s1228 + $0xa0] sm:$0xff]
        %v1426 = vld [vmem:[%s1228 + $0xa8] sm:$0xff]
        %v1427 = vld [vmem:[%s1228 + $0xb0] sm:$0xff]
        %v1428 = vld [vmem:[%s1228 + $0xb8] sm:$0xff]
        %v1429 = vld [vmem:[%s1228 + $0xc0] sm:$0xff]
        %v1430 = vld [vmem:[%s1228 + $0xc8] sm:$0xff]
        %v1431 = vld [vmem:[%s1228 + $0xd0] sm:$0xff]
        %v1432 = vld [vmem:[%s1228 + $0xd8] sm:$0xff]
        %v1433 = vld [vmem:[%s1228 + $0xe0] sm:$0xff]
        %v1434 = vld [vmem:[%s1228 + $0xe8] sm:$0xff]
        %v1435 = vld [vmem:[%s1228 + $0xf0] sm:$0xff]
        %v1436 = vld [vmem:[%s1228 + $0xf8] sm:$0xff]
        %v1437 = vld [vmem:[%s1228 + $0x100] sm:$0xff]
        %v1438 = vld [vmem:[%s1228 + $0x108] sm:$0xff]
        %v1439 = vld [vmem:[%s1228 + $0x110] sm:$0xff]
        %v1440 = vld [vmem:[%s1228 + $0x118] sm:$0xff]
        %v1441 = vld [vmem:[%s1228 + $0x120] sm:$0xff]
        %v1442 = vld [vmem:[%s1228 + $0x128] sm:$0xff]
        %v1443 = vld [vmem:[%s1228 + $0x130] sm:$0xff]
        %v1444 = vld [vmem:[%s1228 + $0x138] sm:$0xff]
        %v1445 = vld [vmem:[%s1228 + $0x140] sm:$0xff]
        %v1446 = vld [vmem:[%s1228 + $0x148] sm:$0xff]
        %v1447 = vld [vmem:[%s1228 + $0x150] sm:$0xff]
        %v1448 = vld [vmem:[%s1228 + $0x158] sm:$0xff]
        %v1449 = vld [vmem:[%s1228 + $0x160] sm:$0xff]
        %v1450 = vld [vmem:[%s1228 + $0x168] sm:$0xff]
        %v1451 = vld [vmem:[%s1228 + $0x170] sm:$0xff]
        %v1452 = vld [vmem:[%s1228 + $0x178] sm:$0xff]
        %v1453 = vld [vmem:[%s1228 + $0x180] sm:$0xff]
        %v1454 = vld [vmem:[%s1228 + $0x188] sm:$0xff]
        %v1455 = vld [vmem:[%s1228 + $0x190] sm:$0xff]
        %v1456 = vld [vmem:[%s1228 + $0x198] sm:$0xff]
        %v1457 = vld [vmem:[%s1228 + $0x1a0] sm:$0xff]
        %v1458 = vld [vmem:[%s1228 + $0x1a8] sm:$0xff]
        %v1459 = vld [vmem:[%s1228 + $0x1b0] sm:$0xff]
        %v1460 = vld [vmem:[%s1228 + $0x1b8] sm:$0xff]
        %v1461 = vld [vmem:[%s1228 + $0x1c0] sm:$0xff]
        %v1462 = vld [vmem:[%s1228 + $0x1c8] sm:$0xff]
        %v1463 = vld [vmem:[%s1228 + $0x1d0] sm:$0xff]
        %v1464 = vld [vmem:[%s1228 + $0x1d8] sm:$0xff]
        %v1465 = vld [vmem:[%s1228 + $0x1e0] sm:$0xff]
        %v1466 = vld [vmem:[%s1228 + $0x1e8] sm:$0xff]
        %v1467 = vld [vmem:[%s1228 + $0x1f0] sm:$0xff]
        %v1468 = vld [vmem:[%s1228 + $0x1f8] sm:$0xff]
        %v1469 = vld [vmem:[%s1228 + $0x200] sm:$0xff]
        %v1470 = vld [vmem:[%s1228 + $0x208] sm:$0xff]
        %v1471 = vld [vmem:[%s1228 + $0x210] sm:$0xff]
        %v1472 = vld [vmem:[%s1228 + $0x218] sm:$0xff]
        %v1473 = vld [vmem:[%s1228 + $0x220] sm:$0xff]
        %v1474 = vld [vmem:[%s1228 + $0x228] sm:$0xff]
        %v1475 = vld [vmem:[%s1228 + $0x230] sm:$0xff]
        %v1476 = vld [vmem:[%s1228 + $0x238] sm:$0xff]
        %v1477 = vld [vmem:[%s1228 + $0x240] sm:$0xff]
        %v1478 = vld [vmem:[%s1228 + $0x248] sm:$0xff]
        %v1479 = vld [vmem:[%s1228 + $0x250] sm:$0xff]
        %v1480 = vld [vmem:[%s1228 + $0x258] sm:$0xff]
        %v1481 = vld [vmem:[%s1228 + $0x260] sm:$0xff]
        %v1482 = vld [vmem:[%s1228 + $0x268] sm:$0xff]
        %v1483 = vld [vmem:[%s1228 + $0x270] sm:$0xff]
        %v1484 = vld [vmem:[%s1228 + $0x278] sm:$0xff]
        %v1485 = vld [vmem:[%s1228 + $0x280] sm:$0xff]
        %v1486 = vld [vmem:[%s1228 + $0x288] sm:$0xff]
        %v1487 = vld [vmem:[%s1228 + $0x290] sm:$0xff]
        %v1488 = vld [vmem:[%s1228 + $0x298] sm:$0xff]
        %v1489 = vld [vmem:[%s1228 + $0x2a0] sm:$0xff]
        %v1490 = vld [vmem:[%s1228 + $0x2a8] sm:$0xff]
        %v1491 = vld [vmem:[%s1228 + $0x2b0] sm:$0xff]
        %v1492 = vld [vmem:[%s1228 + $0x2b8] sm:$0xff]
        %v1493 = vld [vmem:[%s1228 + $0x2c0] sm:$0xff]
        %v1494 = vld [vmem:[%s1228 + $0x2c8] sm:$0xff]
        %v1495 = vld [vmem:[%s1228 + $0x2d0] sm:$0xff]
        %v1496 = vld [vmem:[%s1228 + $0x2d8] sm:$0xff]
        %v1497 = vld [vmem:[%s1228 + $0x2e0] sm:$0xff]
        %v1498 = vld [vmem:[%s1228 + $0x2e8] sm:$0xff]
        %v1499 = vld [vmem:[%s1228 + $0x2f0] sm:$0xff]
        %v1500 = vld [vmem:[%s1228 + $0x2f8] sm:$0xff]
        %v1501 = vld [vmem:[%s1228 + $0x300] sm:$0xff]
        %v1502 = vld [vmem:[%s1228 + $0x308] sm:$0xff]
        %v1503 = vld [vmem:[%s1228 + $0x310] sm:$0xff]
        %v1504 = vld [vmem:[%s1228 + $0x318] sm:$0xff]
        %v1505 = vld [vmem:[%s1228 + $0x320] sm:$0xff]
        %v1506 = vld [vmem:[%s1228 + $0x328] sm:$0xff]
        %v1507 = vld [vmem:[%s1228 + $0x330] sm:$0xff]
        %v1508 = vld [vmem:[%s1228 + $0x338] sm:$0xff]
        %v1509 = vld [vmem:[%s1228 + $0x340] sm:$0xff]
        %v1510 = vld [vmem:[%s1228 + $0x348] sm:$0xff]
        %v1511 = vld [vmem:[%s1228 + $0x350] sm:$0xff]
        %v1512 = vld [vmem:[%s1228 + $0x358] sm:$0xff]
        %v1513 = vld [vmem:[%s1228 + $0x360] sm:$0xff]
        %v1514 = vld [vmem:[%s1228 + $0x368] sm:$0xff]
        %v1515 = vld [vmem:[%s1228 + $0x370] sm:$0xff]
        %v1516 = vld [vmem:[%s1228 + $0x378] sm:$0xff]
        %v1517 = vld [vmem:[%s1228 + $0x380] sm:$0xff]
        %v1518 = vld [vmem:[%s1228 + $0x388] sm:$0xff]
        %v1519 = vld [vmem:[%s1228 + $0x390] sm:$0xff]
        %v1520 = vld [vmem:[%s1228 + $0x398] sm:$0xff]
        %v1521 = vld [vmem:[%s1228 + $0x3a0] sm:$0xff]
        %v1522 = vld [vmem:[%s1228 + $0x3a8] sm:$0xff]
        %v1523 = vld [vmem:[%s1228 + $0x3b0] sm:$0xff]
        %v1524 = vld [vmem:[%s1228 + $0x3b8] sm:$0xff]
        %v1525 = vld [vmem:[%s1228 + $0x3c0] sm:$0xff]
        %v1526 = vld [vmem:[%s1228 + $0x3c8] sm:$0xff]
        %v1527 = vld [vmem:[%s1228 + $0x3d0] sm:$0xff]
        %v1528 = vld [vmem:[%s1228 + $0x3d8] sm:$0xff]
        %v1529 = vld [vmem:[%s1228 + $0x3e0] sm:$0xff]
        %v1530 = vld [vmem:[%s1228 + $0x3e8] sm:$0xff]
        %v1531 = vld [vmem:[%s1228 + $0x3f0] sm:$0xff]
        %v1532 = vld [vmem:[%s1228 + $0x3f8] sm:$0xff]
        %v1533 = vmul.f32 %v1405, %v1275
        %v1534 = vmul.f32 %v1406, %v1276
        %v1535 = vmul.f32 %v1407, %v1277
        %v1536 = vmul.f32 %v1408, %v1278
        %v1537 = vmul.f32 %v1409, %v1279
        %v1538 = vmul.f32 %v1410, %v1280
        %v1539 = vmul.f32 %v1411, %v1281
        %v1540 = vmul.f32 %v1412, %v1282
        %v1541 = vmul.f32 %v1413, %v1283
        %v1542 = vmul.f32 %v1414, %v1284
        %v1543 = vmul.f32 %v1415, %v1285
        %v1544 = vmul.f32 %v1416, %v1286
        %v1545 = vmul.f32 %v1417, %v1287
        %v1546 = vmul.f32 %v1418, %v1288
        %v1547 = vmul.f32 %v1419, %v1289
        %v1548 = vmul.f32 %v1420, %v1290
        %v1549 = vmul.f32 %v1421, %v1291
        %v1550 = vmul.f32 %v1422, %v1292
        %v1551 = vmul.f32 %v1423, %v1293
        %v1552 = vmul.f32 %v1424, %v1294
        %v1553 = vmul.f32 %v1425, %v1295
        %v1554 = vmul.f32 %v1426, %v1296
        %v1555 = vmul.f32 %v1427, %v1297
        %v1556 = vmul.f32 %v1428, %v1298
        %v1557 = vmul.f32 %v1429, %v1299
        %v1558 = vmul.f32 %v1430, %v1300
        %v1559 = vmul.f32 %v1431, %v1301
        %v1560 = vmul.f32 %v1432, %v1302
        %v1561 = vmul.f32 %v1433, %v1303
        %v1562 = vmul.f32 %v1434, %v1304
        %v1563 = vmul.f32 %v1435, %v1305
        %v1564 = vmul.f32 %v1436, %v1306
        %v1565 = vmul.f32 %v1437, %v1307
        %v1566 = vmul.f32 %v1438, %v1308
        %v1567 = vmul.f32 %v1439, %v1309
        %v1568 = vmul.f32 %v1440, %v1310
        %v1569 = vmul.f32 %v1441, %v1311
        %v1570 = vmul.f32 %v1442, %v1312
        %v1571 = vmul.f32 %v1443, %v1313
        %v1572 = vmul.f32 %v1444, %v1314
        %v1573 = vmul.f32 %v1445, %v1315
        %v1574 = vmul.f32 %v1446, %v1316
        %v1575 = vmul.f32 %v1447, %v1317
        %v1576 = vmul.f32 %v1448, %v1318
        %v1577 = vmul.f32 %v1449, %v1319
        %v1578 = vmul.f32 %v1450, %v1320
        %v1579 = vmul.f32 %v1451, %v1321
        %v1580 = vmul.f32 %v1452, %v1322
        %v1581 = vmul.f32 %v1453, %v1323
        %v1582 = vmul.f32 %v1454, %v1324
        %v1583 = vmul.f32 %v1455, %v1325
        %v1584 = vmul.f32 %v1456, %v1326
        %v1585 = vmul.f32 %v1457, %v1327
        %v1586 = vmul.f32 %v1458, %v1328
        %v1587 = vmul.f32 %v1459, %v1329
        %v1588 = vmul.f32 %v1460, %v1330
        %v1589 = vmul.f32 %v1461, %v1331
        %v1590 = vmul.f32 %v1462, %v1332
        %v1591 = vmul.f32 %v1463, %v1333
        %v1592 = vmul.f32 %v1464, %v1334
        %v1593 = vmul.f32 %v1465, %v1335
        %v1594 = vmul.f32 %v1466, %v1336
        %v1595 = vmul.f32 %v1467, %v1337
        %v1596 = vmul.f32 %v1468, %v1338
        %v1597 = vmul.f32 %v1469, %v1339
        %v1598 = vmul.f32 %v1470, %v1340
        %v1599 = vmul.f32 %v1471, %v1341
        %v1600 = vmul.f32 %v1472, %v1342
        %v1601 = vmul.f32 %v1473, %v1343
        %v1602 = vmul.f32 %v1474, %v1344
        %v1603 = vmul.f32 %v1475, %v1345
        %v1604 = vmul.f32 %v1476, %v1346
        %v1605 = vmul.f32 %v1477, %v1347
        %v1606 = vmul.f32 %v1478, %v1348
        %v1607 = vmul.f32 %v1479, %v1349
        %v1608 = vmul.f32 %v1480, %v1350
        %v1609 = vmul.f32 %v1481, %v1351
        %v1610 = vmul.f32 %v1482, %v1352
        %v1611 = vmul.f32 %v1483, %v1353
        %v1612 = vmul.f32 %v1484, %v1354
        %v1613 = vmul.f32 %v1485, %v1355
        %v1614 = vmul.f32 %v1486, %v1356
        %v1615 = vmul.f32 %v1487, %v1357
        %v1616 = vmul.f32 %v1488, %v1358
        %v1617 = vmul.f32 %v1489, %v1359
        %v1618 = vmul.f32 %v1490, %v1360
        %v1619 = vmul.f32 %v1491, %v1361
        %v1620 = vmul.f32 %v1492, %v1362
        %v1621 = vmul.f32 %v1493, %v1363
        %v1622 = vmul.f32 %v1494, %v1364
        %v1623 = vmul.f32 %v1495, %v1365
        %v1624 = vmul.f32 %v1496, %v1366
        %v1625 = vmul.f32 %v1497, %v1367
        %v1626 = vmul.f32 %v1498, %v1368
        %v1627 = vmul.f32 %v1499, %v1369
        %v1628 = vmul.f32 %v1500, %v1370
        %v1629 = vmul.f32 %v1501, %v1371
        %v1630 = vmul.f32 %v1502, %v1372
        %v1631 = vmul.f32 %v1503, %v1373
        %v1632 = vmul.f32 %v1504, %v1374
        %v1633 = vmul.f32 %v1505, %v1375
        %v1634 = vmul.f32 %v1506, %v1376
        %v1635 = vmul.f32 %v1507, %v1377
        %v1636 = vmul.f32 %v1508, %v1378
        %v1637 = vmul.f32 %v1509, %v1379
        %v1638 = vmul.f32 %v1510, %v1380
        %v1639 = vmul.f32 %v1511, %v1381
        %v1640 = vmul.f32 %v1512, %v1382
        %v1641 = vmul.f32 %v1513, %v1383
        %v1642 = vmul.f32 %v1514, %v1384
        %v1643 = vmul.f32 %v1515, %v1385
        %v1644 = vmul.f32 %v1516, %v1386
        %v1645 = vmul.f32 %v1517, %v1387
        %v1646 = vmul.f32 %v1518, %v1388
        %v1647 = vmul.f32 %v1519, %v1389
        %v1648 = vmul.f32 %v1520, %v1390
        %v1649 = vmul.f32 %v1521, %v1391
        %v1650 = vmul.f32 %v1522, %v1392
        %v1651 = vmul.f32 %v1523, %v1393
        %v1652 = vmul.f32 %v1524, %v1394
        %v1653 = vmul.f32 %v1525, %v1395
        %v1654 = vmul.f32 %v1526, %v1396
        %v1655 = vmul.f32 %v1527, %v1397
        %v1656 = vmul.f32 %v1528, %v1398
        %v1657 = vmul.f32 %v1529, %v1399
        %v1658 = vmul.f32 %v1530, %v1400
        %v1659 = vmul.f32 %v1531, %v1401
        %v1660 = vmul.f32 %v1532, %v1402
        %vm1661 = vcmask 523264
        %v1662 = vsel %vm1661, %v1533, 0.0
        %1663 = vadd.xlane.f32.xlu0 %v1662
        %v1664 = vpop.xlane.xlu0 %1663
        %v1665 = vsel %vm1661, %v1534, 0.0
        %1666 = vadd.xlane.f32.xlu0 %v1665
        %v1667 = vpop.xlane.xlu0 %1666
        %v1668 = vsel %vm1661, %v1535, 0.0
        %1669 = vadd.xlane.f32.xlu0 %v1668
        %v1670 = vpop.xlane.xlu0 %1669
        %v1671 = vsel %vm1661, %v1536, 0.0
        %1672 = vadd.xlane.f32.xlu0 %v1671
        %v1673 = vpop.xlane.xlu0 %1672
        %v1674 = vsel %vm1661, %v1537, 0.0
        %1675 = vadd.xlane.f32.xlu0 %v1674
        %v1676 = vpop.xlane.xlu0 %1675
        %v1677 = vsel %vm1661, %v1538, 0.0
        %1678 = vadd.xlane.f32.xlu0 %v1677
        %v1679 = vpop.xlane.xlu0 %1678
        %v1680 = vsel %vm1661, %v1539, 0.0
        %1681 = vadd.xlane.f32.xlu0 %v1680
        %v1682 = vpop.xlane.xlu0 %1681
        %v1683 = vsel %vm1661, %v1540, 0.0
        %1684 = vadd.xlane.f32.xlu0 %v1683
        %v1685 = vpop.xlane.xlu0 %1684
        %v1686 = vsel %vm1661, %v1541, 0.0
        %1687 = vadd.xlane.f32.xlu0 %v1686
        %v1688 = vpop.xlane.xlu0 %1687
        %v1689 = vsel %vm1661, %v1542, 0.0
        %1690 = vadd.xlane.f32.xlu0 %v1689
        %v1691 = vpop.xlane.xlu0 %1690
        %v1692 = vsel %vm1661, %v1543, 0.0
        %1693 = vadd.xlane.f32.xlu0 %v1692
        %v1694 = vpop.xlane.xlu0 %1693
        %v1695 = vsel %vm1661, %v1544, 0.0
        %1696 = vadd.xlane.f32.xlu0 %v1695
        %v1697 = vpop.xlane.xlu0 %1696
        %v1698 = vsel %vm1661, %v1545, 0.0
        %1699 = vadd.xlane.f32.xlu0 %v1698
        %v1700 = vpop.xlane.xlu0 %1699
        %v1701 = vsel %vm1661, %v1546, 0.0
        %1702 = vadd.xlane.f32.xlu0 %v1701
        %v1703 = vpop.xlane.xlu0 %1702
        %v1704 = vsel %vm1661, %v1547, 0.0
        %1705 = vadd.xlane.f32.xlu0 %v1704
        %v1706 = vpop.xlane.xlu0 %1705
        %v1707 = vsel %vm1661, %v1548, 0.0
        %1708 = vadd.xlane.f32.xlu0 %v1707
        %v1709 = vpop.xlane.xlu0 %1708
        %v1710 = vsel %vm1661, %v1549, 0.0
        %1711 = vadd.xlane.f32.xlu0 %v1710
        %v1712 = vpop.xlane.xlu0 %1711
        %v1713 = vsel %vm1661, %v1550, 0.0
        %1714 = vadd.xlane.f32.xlu0 %v1713
        %v1715 = vpop.xlane.xlu0 %1714
        %v1716 = vsel %vm1661, %v1551, 0.0
        %1717 = vadd.xlane.f32.xlu0 %v1716
        %v1718 = vpop.xlane.xlu0 %1717
        %v1719 = vsel %vm1661, %v1552, 0.0
        %1720 = vadd.xlane.f32.xlu0 %v1719
        %v1721 = vpop.xlane.xlu0 %1720
        %v1722 = vsel %vm1661, %v1553, 0.0
        %1723 = vadd.xlane.f32.xlu0 %v1722
        %v1724 = vpop.xlane.xlu0 %1723
        %v1725 = vsel %vm1661, %v1554, 0.0
        %1726 = vadd.xlane.f32.xlu0 %v1725
        %v1727 = vpop.xlane.xlu0 %1726
        %v1728 = vsel %vm1661, %v1555, 0.0
        %1729 = vadd.xlane.f32.xlu0 %v1728
        %v1730 = vpop.xlane.xlu0 %1729
        %v1731 = vsel %vm1661, %v1556, 0.0
        %1732 = vadd.xlane.f32.xlu0 %v1731
        %v1733 = vpop.xlane.xlu0 %1732
        %v1734 = vsel %vm1661, %v1557, 0.0
        %1735 = vadd.xlane.f32.xlu0 %v1734
        %v1736 = vpop.xlane.xlu0 %1735
        %v1737 = vsel %vm1661, %v1558, 0.0
        %1738 = vadd.xlane.f32.xlu0 %v1737
        %v1739 = vpop.xlane.xlu0 %1738
        %v1740 = vsel %vm1661, %v1559, 0.0
        %1741 = vadd.xlane.f32.xlu0 %v1740
        %v1742 = vpop.xlane.xlu0 %1741
        %v1743 = vsel %vm1661, %v1560, 0.0
        %1744 = vadd.xlane.f32.xlu0 %v1743
        %v1745 = vpop.xlane.xlu0 %1744
        %v1746 = vsel %vm1661, %v1561, 0.0
        %1747 = vadd.xlane.f32.xlu0 %v1746
        %v1748 = vpop.xlane.xlu0 %1747
        %v1749 = vsel %vm1661, %v1562, 0.0
        %1750 = vadd.xlane.f32.xlu0 %v1749
        %v1751 = vpop.xlane.xlu0 %1750
        %v1752 = vsel %vm1661, %v1563, 0.0
        %1753 = vadd.xlane.f32.xlu0 %v1752
        %v1754 = vpop.xlane.xlu0 %1753
        %v1755 = vsel %vm1661, %v1564, 0.0
        %1756 = vadd.xlane.f32.xlu0 %v1755
        %v1757 = vpop.xlane.xlu0 %1756
        %v1758 = vsel %vm1661, %v1565, 0.0
        %1759 = vadd.xlane.f32.xlu0 %v1758
        %v1760 = vpop.xlane.xlu0 %1759
        %v1761 = vsel %vm1661, %v1566, 0.0
        %1762 = vadd.xlane.f32.xlu0 %v1761
        %v1763 = vpop.xlane.xlu0 %1762
        %v1764 = vsel %vm1661, %v1567, 0.0
        %1765 = vadd.xlane.f32.xlu0 %v1764
        %v1766 = vpop.xlane.xlu0 %1765
        %v1767 = vsel %vm1661, %v1568, 0.0
        %1768 = vadd.xlane.f32.xlu0 %v1767
        %v1769 = vpop.xlane.xlu0 %1768
        %v1770 = vsel %vm1661, %v1569, 0.0
        %1771 = vadd.xlane.f32.xlu0 %v1770
        %v1772 = vpop.xlane.xlu0 %1771
        %v1773 = vsel %vm1661, %v1570, 0.0
        %1774 = vadd.xlane.f32.xlu0 %v1773
        %v1775 = vpop.xlane.xlu0 %1774
        %v1776 = vsel %vm1661, %v1571, 0.0
        %1777 = vadd.xlane.f32.xlu0 %v1776
        %v1778 = vpop.xlane.xlu0 %1777
        %v1779 = vsel %vm1661, %v1572, 0.0
        %1780 = vadd.xlane.f32.xlu0 %v1779
        %v1781 = vpop.xlane.xlu0 %1780
        %v1782 = vsel %vm1661, %v1573, 0.0
        %1783 = vadd.xlane.f32.xlu0 %v1782
        %v1784 = vpop.xlane.xlu0 %1783
        %v1785 = vsel %vm1661, %v1574, 0.0
        %1786 = vadd.xlane.f32.xlu0 %v1785
        %v1787 = vpop.xlane.xlu0 %1786
        %v1788 = vsel %vm1661, %v1575, 0.0
        %1789 = vadd.xlane.f32.xlu0 %v1788
        %v1790 = vpop.xlane.xlu0 %1789
        %v1791 = vsel %vm1661, %v1576, 0.0
        %1792 = vadd.xlane.f32.xlu0 %v1791
        %v1793 = vpop.xlane.xlu0 %1792
        %v1794 = vsel %vm1661, %v1577, 0.0
        %1795 = vadd.xlane.f32.xlu0 %v1794
        %v1796 = vpop.xlane.xlu0 %1795
        %v1797 = vsel %vm1661, %v1578, 0.0
        %1798 = vadd.xlane.f32.xlu0 %v1797
        %v1799 = vpop.xlane.xlu0 %1798
        %v1800 = vsel %vm1661, %v1579, 0.0
        %1801 = vadd.xlane.f32.xlu0 %v1800
        %v1802 = vpop.xlane.xlu0 %1801
        %v1803 = vsel %vm1661, %v1580, 0.0
        %1804 = vadd.xlane.f32.xlu0 %v1803
        %v1805 = vpop.xlane.xlu0 %1804
        %v1806 = vsel %vm1661, %v1581, 0.0
        %1807 = vadd.xlane.f32.xlu0 %v1806
        %v1808 = vpop.xlane.xlu0 %1807
        %v1809 = vsel %vm1661, %v1582, 0.0
        %1810 = vadd.xlane.f32.xlu0 %v1809
        %v1811 = vpop.xlane.xlu0 %1810
        %v1812 = vsel %vm1661, %v1583, 0.0
        %1813 = vadd.xlane.f32.xlu0 %v1812
        %v1814 = vpop.xlane.xlu0 %1813
        %v1815 = vsel %vm1661, %v1584, 0.0
        %1816 = vadd.xlane.f32.xlu0 %v1815
        %v1817 = vpop.xlane.xlu0 %1816
        %v1818 = vsel %vm1661, %v1585, 0.0
        %1819 = vadd.xlane.f32.xlu0 %v1818
        %v1820 = vpop.xlane.xlu0 %1819
        %v1821 = vsel %vm1661, %v1586, 0.0
        %1822 = vadd.xlane.f32.xlu0 %v1821
        %v1823 = vpop.xlane.xlu0 %1822
        %v1824 = vsel %vm1661, %v1587, 0.0
        %1825 = vadd.xlane.f32.xlu0 %v1824
        %v1826 = vpop.xlane.xlu0 %1825
        %v1827 = vsel %vm1661, %v1588, 0.0
        %1828 = vadd.xlane.f32.xlu0 %v1827
        %v1829 = vpop.xlane.xlu0 %1828
        %v1830 = vsel %vm1661, %v1589, 0.0
        %1831 = vadd.xlane.f32.xlu0 %v1830
        %v1832 = vpop.xlane.xlu0 %1831
        %v1833 = vsel %vm1661, %v1590, 0.0
        %1834 = vadd.xlane.f32.xlu0 %v1833
        %v1835 = vpop.xlane.xlu0 %1834
        %v1836 = vsel %vm1661, %v1591, 0.0
        %1837 = vadd.xlane.f32.xlu0 %v1836
        %v1838 = vpop.xlane.xlu0 %1837
        %v1839 = vsel %vm1661, %v1592, 0.0
        %1840 = vadd.xlane.f32.xlu0 %v1839
        %v1841 = vpop.xlane.xlu0 %1840
        %v1842 = vsel %vm1661, %v1593, 0.0
        %1843 = vadd.xlane.f32.xlu0 %v1842
        %v1844 = vpop.xlane.xlu0 %1843
        %v1845 = vsel %vm1661, %v1594, 0.0
        %1846 = vadd.xlane.f32.xlu0 %v1845
        %v1847 = vpop.xlane.xlu0 %1846
        %v1848 = vsel %vm1661, %v1595, 0.0
        %1849 = vadd.xlane.f32.xlu0 %v1848
        %v1850 = vpop.xlane.xlu0 %1849
        %v1851 = vsel %vm1661, %v1596, 0.0
        %1852 = vadd.xlane.f32.xlu0 %v1851
        %v1853 = vpop.xlane.xlu0 %1852
        %v1854 = vsel %vm1661, %v1597, 0.0
        %1855 = vadd.xlane.f32.xlu0 %v1854
        %v1856 = vpop.xlane.xlu0 %1855
        %v1857 = vsel %vm1661, %v1598, 0.0
        %1858 = vadd.xlane.f32.xlu0 %v1857
        %v1859 = vpop.xlane.xlu0 %1858
        %v1860 = vsel %vm1661, %v1599, 0.0
        %1861 = vadd.xlane.f32.xlu0 %v1860
        %v1862 = vpop.xlane.xlu0 %1861
        %v1863 = vsel %vm1661, %v1600, 0.0
        %1864 = vadd.xlane.f32.xlu0 %v1863
        %v1865 = vpop.xlane.xlu0 %1864
        %v1866 = vsel %vm1661, %v1601, 0.0
        %1867 = vadd.xlane.f32.xlu0 %v1866
        %v1868 = vpop.xlane.xlu0 %1867
        %v1869 = vsel %vm1661, %v1602, 0.0
        %1870 = vadd.xlane.f32.xlu0 %v1869
        %v1871 = vpop.xlane.xlu0 %1870
        %v1872 = vsel %vm1661, %v1603, 0.0
        %1873 = vadd.xlane.f32.xlu0 %v1872
        %v1874 = vpop.xlane.xlu0 %1873
        %v1875 = vsel %vm1661, %v1604, 0.0
        %1876 = vadd.xlane.f32.xlu0 %v1875
        %v1877 = vpop.xlane.xlu0 %1876
        %v1878 = vsel %vm1661, %v1605, 0.0
        %1879 = vadd.xlane.f32.xlu0 %v1878
        %v1880 = vpop.xlane.xlu0 %1879
        %v1881 = vsel %vm1661, %v1606, 0.0
        %1882 = vadd.xlane.f32.xlu0 %v1881
        %v1883 = vpop.xlane.xlu0 %1882
        %v1884 = vsel %vm1661, %v1607, 0.0
        %1885 = vadd.xlane.f32.xlu0 %v1884
        %v1886 = vpop.xlane.xlu0 %1885
        %v1887 = vsel %vm1661, %v1608, 0.0
        %1888 = vadd.xlane.f32.xlu0 %v1887
        %v1889 = vpop.xlane.xlu0 %1888
        %v1890 = vsel %vm1661, %v1609, 0.0
        %1891 = vadd.xlane.f32.xlu0 %v1890
        %v1892 = vpop.xlane.xlu0 %1891
        %v1893 = vsel %vm1661, %v1610, 0.0
        %1894 = vadd.xlane.f32.xlu0 %v1893
        %v1895 = vpop.xlane.xlu0 %1894
        %v1896 = vsel %vm1661, %v1611, 0.0
        %1897 = vadd.xlane.f32.xlu0 %v1896
        %v1898 = vpop.xlane.xlu0 %1897
        %v1899 = vsel %vm1661, %v1612, 0.0
        %1900 = vadd.xlane.f32.xlu0 %v1899
        %v1901 = vpop.xlane.xlu0 %1900
        %v1902 = vsel %vm1661, %v1613, 0.0
        %1903 = vadd.xlane.f32.xlu0 %v1902
        %v1904 = vpop.xlane.xlu0 %1903
        %v1905 = vsel %vm1661, %v1614, 0.0
        %1906 = vadd.xlane.f32.xlu0 %v1905
        %v1907 = vpop.xlane.xlu0 %1906
        %v1908 = vsel %vm1661, %v1615, 0.0
        %1909 = vadd.xlane.f32.xlu0 %v1908
        %v1910 = vpop.xlane.xlu0 %1909
        %v1911 = vsel %vm1661, %v1616, 0.0
        %1912 = vadd.xlane.f32.xlu0 %v1911
        %v1913 = vpop.xlane.xlu0 %1912
        %v1914 = vsel %vm1661, %v1617, 0.0
        %1915 = vadd.xlane.f32.xlu0 %v1914
        %v1916 = vpop.xlane.xlu0 %1915
        %v1917 = vsel %vm1661, %v1618, 0.0
        %1918 = vadd.xlane.f32.xlu0 %v1917
        %v1919 = vpop.xlane.xlu0 %1918
        %v1920 = vsel %vm1661, %v1619, 0.0
        %1921 = vadd.xlane.f32.xlu0 %v1920
        %v1922 = vpop.xlane.xlu0 %1921
        %v1923 = vsel %vm1661, %v1620, 0.0
        %1924 = vadd.xlane.f32.xlu0 %v1923
        %v1925 = vpop.xlane.xlu0 %1924
        %v1926 = vsel %vm1661, %v1621, 0.0
        %1927 = vadd.xlane.f32.xlu0 %v1926
        %v1928 = vpop.xlane.xlu0 %1927
        %v1929 = vsel %vm1661, %v1622, 0.0
        %1930 = vadd.xlane.f32.xlu0 %v1929
        %v1931 = vpop.xlane.xlu0 %1930
        %v1932 = vsel %vm1661, %v1623, 0.0
        %1933 = vadd.xlane.f32.xlu0 %v1932
        %v1934 = vpop.xlane.xlu0 %1933
        %v1935 = vsel %vm1661, %v1624, 0.0
        %1936 = vadd.xlane.f32.xlu0 %v1935
        %v1937 = vpop.xlane.xlu0 %1936
        %v1938 = vsel %vm1661, %v1625, 0.0
        %1939 = vadd.xlane.f32.xlu0 %v1938
        %v1940 = vpop.xlane.xlu0 %1939
        %v1941 = vsel %vm1661, %v1626, 0.0
        %1942 = vadd.xlane.f32.xlu0 %v1941
        %v1943 = vpop.xlane.xlu0 %1942
        %v1944 = vsel %vm1661, %v1627, 0.0
        %1945 = vadd.xlane.f32.xlu0 %v1944
        %v1946 = vpop.xlane.xlu0 %1945
        %v1947 = vsel %vm1661, %v1628, 0.0
        %1948 = vadd.xlane.f32.xlu0 %v1947
        %v1949 = vpop.xlane.xlu0 %1948
        %v1950 = vsel %vm1661, %v1629, 0.0
        %1951 = vadd.xlane.f32.xlu0 %v1950
        %v1952 = vpop.xlane.xlu0 %1951
        %v1953 = vsel %vm1661, %v1630, 0.0
        %1954 = vadd.xlane.f32.xlu0 %v1953
        %v1955 = vpop.xlane.xlu0 %1954
        %v1956 = vsel %vm1661, %v1631, 0.0
        %1957 = vadd.xlane.f32.xlu0 %v1956
        %v1958 = vpop.xlane.xlu0 %1957
        %v1959 = vsel %vm1661, %v1632, 0.0
        %1960 = vadd.xlane.f32.xlu0 %v1959
        %v1961 = vpop.xlane.xlu0 %1960
        %v1962 = vsel %vm1661, %v1633, 0.0
        %1963 = vadd.xlane.f32.xlu0 %v1962
        %v1964 = vpop.xlane.xlu0 %1963
        %v1965 = vsel %vm1661, %v1634, 0.0
        %1966 = vadd.xlane.f32.xlu0 %v1965
        %v1967 = vpop.xlane.xlu0 %1966
        %v1968 = vsel %vm1661, %v1635, 0.0
        %1969 = vadd.xlane.f32.xlu0 %v1968
        %v1970 = vpop.xlane.xlu0 %1969
        %v1971 = vsel %vm1661, %v1636, 0.0
        %1972 = vadd.xlane.f32.xlu0 %v1971
        %v1973 = vpop.xlane.xlu0 %1972
        %v1974 = vsel %vm1661, %v1637, 0.0
        %1975 = vadd.xlane.f32.xlu0 %v1974
        %v1976 = vpop.xlane.xlu0 %1975
        %v1977 = vsel %vm1661, %v1638, 0.0
        %1978 = vadd.xlane.f32.xlu0 %v1977
        %v1979 = vpop.xlane.xlu0 %1978
        %v1980 = vsel %vm1661, %v1639, 0.0
        %1981 = vadd.xlane.f32.xlu0 %v1980
        %v1982 = vpop.xlane.xlu0 %1981
        %v1983 = vsel %vm1661, %v1640, 0.0
        %1984 = vadd.xlane.f32.xlu0 %v1983
        %v1985 = vpop.xlane.xlu0 %1984
        %v1986 = vsel %vm1661, %v1641, 0.0
        %1987 = vadd.xlane.f32.xlu0 %v1986
        %v1988 = vpop.xlane.xlu0 %1987
        %v1989 = vsel %vm1661, %v1642, 0.0
        %1990 = vadd.xlane.f32.xlu0 %v1989
        %v1991 = vpop.xlane.xlu0 %1990
        %v1992 = vsel %vm1661, %v1643, 0.0
        %1993 = vadd.xlane.f32.xlu0 %v1992
        %v1994 = vpop.xlane.xlu0 %1993
        %v1995 = vsel %vm1661, %v1644, 0.0
        %1996 = vadd.xlane.f32.xlu0 %v1995
        %v1997 = vpop.xlane.xlu0 %1996
        %v1998 = vsel %vm1661, %v1645, 0.0
        %1999 = vadd.xlane.f32.xlu0 %v1998
        %v2000 = vpop.xlane.xlu0 %1999
        %v2001 = vsel %vm1661, %v1646, 0.0
        %2002 = vadd.xlane.f32.xlu0 %v2001
        %v2003 = vpop.xlane.xlu0 %2002
        %v2004 = vsel %vm1661, %v1647, 0.0
        %2005 = vadd.xlane.f32.xlu0 %v2004
        %v2006 = vpop.xlane.xlu0 %2005
        %v2007 = vsel %vm1661, %v1648, 0.0
        %2008 = vadd.xlane.f32.xlu0 %v2007
        %v2009 = vpop.xlane.xlu0 %2008
        %v2010 = vsel %vm1661, %v1649, 0.0
        %2011 = vadd.xlane.f32.xlu0 %v2010
        %v2012 = vpop.xlane.xlu0 %2011
        %v2013 = vsel %vm1661, %v1650, 0.0
        %2014 = vadd.xlane.f32.xlu0 %v2013
        %v2015 = vpop.xlane.xlu0 %2014
        %v2016 = vsel %vm1661, %v1651, 0.0
        %2017 = vadd.xlane.f32.xlu0 %v2016
        %v2018 = vpop.xlane.xlu0 %2017
        %v2019 = vsel %vm1661, %v1652, 0.0
        %2020 = vadd.xlane.f32.xlu0 %v2019
        %v2021 = vpop.xlane.xlu0 %2020
        %v2022 = vsel %vm1661, %v1653, 0.0
        %2023 = vadd.xlane.f32.xlu0 %v2022
        %v2024 = vpop.xlane.xlu0 %2023
        %v2025 = vsel %vm1661, %v1654, 0.0
        %2026 = vadd.xlane.f32.xlu0 %v2025
        %v2027 = vpop.xlane.xlu0 %2026
        %v2028 = vsel %vm1661, %v1655, 0.0
        %2029 = vadd.xlane.f32.xlu0 %v2028
        %v2030 = vpop.xlane.xlu0 %2029
        %v2031 = vsel %vm1661, %v1656, 0.0
        %2032 = vadd.xlane.f32.xlu0 %v2031
        %v2033 = vpop.xlane.xlu0 %2032
        %v2034 = vsel %vm1661, %v1657, 0.0
        %2035 = vadd.xlane.f32.xlu0 %v2034
        %v2036 = vpop.xlane.xlu0 %2035
        %v2037 = vsel %vm1661, %v1658, 0.0
        %2038 = vadd.xlane.f32.xlu0 %v2037
        %v2039 = vpop.xlane.xlu0 %2038
        %v2040 = vsel %vm1661, %v1659, 0.0
        %2041 = vadd.xlane.f32.xlu0 %v2040
        %v2042 = vpop.xlane.xlu0 %2041
        %v2043 = vsel %vm1661, %v1660, 0.0
        %2044 = vadd.xlane.f32.xlu0 %v2043
        %v2045 = vpop.xlane.xlu0 %2044
        %v2048 = vlaneseq
        %v2049 = vshrl.u32 %v2048, 7
        %v2050 = vsub.s32 0, %v2049
        %v2051 = vrot.slane %v1403, %v2050
        %2053 = vbcast.lane.b32.xlu0 %v2051, 256
        %v2054 = vpop.permute.xlu0 %2053
        %s2056 = sor.u32 256, 8
        %2057 = vbcast.lane.b32.xlu0 %v2051, %s2056
        %v2058 = vpop.permute.xlu0 %2057
        %s2060 = sor.u32 256, 16
        %2061 = vbcast.lane.b32.xlu0 %v2051, %s2060
        %v2062 = vpop.permute.xlu0 %2061
        %s2064 = sor.u32 256, 24
        %2065 = vbcast.lane.b32.xlu0 %v2051, %s2064
        %v2066 = vpop.permute.xlu0 %2065
        %s2068 = sor.u32 256, 32
        %2069 = vbcast.lane.b32.xlu0 %v2051, %s2068
        %v2070 = vpop.permute.xlu0 %2069
        %s2072 = sor.u32 256, 40
        %2073 = vbcast.lane.b32.xlu0 %v2051, %s2072
        %v2074 = vpop.permute.xlu0 %2073
        %s2076 = sor.u32 256, 48
        %2077 = vbcast.lane.b32.xlu0 %v2051, %s2076
        %v2078 = vpop.permute.xlu0 %2077
        %s2080 = sor.u32 256, 56
        %2081 = vbcast.lane.b32.xlu0 %v2051, %s2080
        %v2082 = vpop.permute.xlu0 %2081
        %v2083 = vlaneseq
        %v2084 = vshrl.u32 %v2083, 7
        %v2085 = vsub.s32 1, %v2084
        %v2086 = vrot.slane %v1403, %v2085
        %2088 = vbcast.lane.b32.xlu0 %v2086, 256
        %v2089 = vpop.permute.xlu0 %2088
        %s2091 = sor.u32 256, 8
        %2092 = vbcast.lane.b32.xlu0 %v2086, %s2091
        %v2093 = vpop.permute.xlu0 %2092
        %s2095 = sor.u32 256, 16
        %2096 = vbcast.lane.b32.xlu0 %v2086, %s2095
        %v2097 = vpop.permute.xlu0 %2096
        %s2099 = sor.u32 256, 24
        %2100 = vbcast.lane.b32.xlu0 %v2086, %s2099
        %v2101 = vpop.permute.xlu0 %2100
        %s2103 = sor.u32 256, 32
        %2104 = vbcast.lane.b32.xlu0 %v2086, %s2103
        %v2105 = vpop.permute.xlu0 %2104
        %s2107 = sor.u32 256, 40
        %2108 = vbcast.lane.b32.xlu0 %v2086, %s2107
        %v2109 = vpop.permute.xlu0 %2108
        %s2111 = sor.u32 256, 48
        %2112 = vbcast.lane.b32.xlu0 %v2086, %s2111
        %v2113 = vpop.permute.xlu0 %2112
        %s2115 = sor.u32 256, 56
        %2116 = vbcast.lane.b32.xlu0 %v2086, %s2115
        %v2117 = vpop.permute.xlu0 %2116
        %v2118 = vlaneseq
        %v2119 = vshrl.u32 %v2118, 7
        %v2120 = vsub.s32 2, %v2119
        %v2121 = vrot.slane %v1403, %v2120
        %2123 = vbcast.lane.b32.xlu0 %v2121, 256
        %v2124 = vpop.permute.xlu0 %2123
        %s2126 = sor.u32 256, 8
        %2127 = vbcast.lane.b32.xlu0 %v2121, %s2126
        %v2128 = vpop.permute.xlu0 %2127
        %s2130 = sor.u32 256, 16
        %2131 = vbcast.lane.b32.xlu0 %v2121, %s2130
        %v2132 = vpop.permute.xlu0 %2131
        %s2134 = sor.u32 256, 24
        %2135 = vbcast.lane.b32.xlu0 %v2121, %s2134
        %v2136 = vpop.permute.xlu0 %2135
        %s2138 = sor.u32 256, 32
        %2139 = vbcast.lane.b32.xlu0 %v2121, %s2138
        %v2140 = vpop.permute.xlu0 %2139
        %s2142 = sor.u32 256, 40
        %2143 = vbcast.lane.b32.xlu0 %v2121, %s2142
        %v2144 = vpop.permute.xlu0 %2143
        %s2146 = sor.u32 256, 48
        %2147 = vbcast.lane.b32.xlu0 %v2121, %s2146
        %v2148 = vpop.permute.xlu0 %2147
        %s2150 = sor.u32 256, 56
        %2151 = vbcast.lane.b32.xlu0 %v2121, %s2150
        %v2152 = vpop.permute.xlu0 %2151
        %v2153 = vlaneseq
        %v2154 = vshrl.u32 %v2153, 7
        %v2155 = vsub.s32 3, %v2154
        %v2156 = vrot.slane %v1403, %v2155
        %2158 = vbcast.lane.b32.xlu0 %v2156, 256
        %v2159 = vpop.permute.xlu0 %2158
        %s2161 = sor.u32 256, 8
        %2162 = vbcast.lane.b32.xlu0 %v2156, %s2161
        %v2163 = vpop.permute.xlu0 %2162
        %s2165 = sor.u32 256, 16
        %2166 = vbcast.lane.b32.xlu0 %v2156, %s2165
        %v2167 = vpop.permute.xlu0 %2166
        %s2169 = sor.u32 256, 24
        %2170 = vbcast.lane.b32.xlu0 %v2156, %s2169
        %v2171 = vpop.permute.xlu0 %2170
        %s2173 = sor.u32 256, 32
        %2174 = vbcast.lane.b32.xlu0 %v2156, %s2173
        %v2175 = vpop.permute.xlu0 %2174
        %s2177 = sor.u32 256, 40
        %2178 = vbcast.lane.b32.xlu0 %v2156, %s2177
        %v2179 = vpop.permute.xlu0 %2178
        %s2181 = sor.u32 256, 48
        %2182 = vbcast.lane.b32.xlu0 %v2156, %s2181
        %v2183 = vpop.permute.xlu0 %2182
        %s2185 = sor.u32 256, 56
        %2186 = vbcast.lane.b32.xlu0 %v2156, %s2185
        %v2187 = vpop.permute.xlu0 %2186
        %v2188 = vlaneseq
        %v2189 = vshrl.u32 %v2188, 7
        %v2190 = vsub.s32 4, %v2189
        %v2191 = vrot.slane %v1403, %v2190
        %2193 = vbcast.lane.b32.xlu0 %v2191, 256
        %v2194 = vpop.permute.xlu0 %2193
        %s2196 = sor.u32 256, 8
        %2197 = vbcast.lane.b32.xlu0 %v2191, %s2196
        %v2198 = vpop.permute.xlu0 %2197
        %s2200 = sor.u32 256, 16
        %2201 = vbcast.lane.b32.xlu0 %v2191, %s2200
        %v2202 = vpop.permute.xlu0 %2201
        %s2204 = sor.u32 256, 24
        %2205 = vbcast.lane.b32.xlu0 %v2191, %s2204
        %v2206 = vpop.permute.xlu0 %2205
        %s2208 = sor.u32 256, 32
        %2209 = vbcast.lane.b32.xlu0 %v2191, %s2208
        %v2210 = vpop.permute.xlu0 %2209
        %s2212 = sor.u32 256, 40
        %2213 = vbcast.lane.b32.xlu0 %v2191, %s2212
        %v2214 = vpop.permute.xlu0 %2213
        %s2216 = sor.u32 256, 48
        %2217 = vbcast.lane.b32.xlu0 %v2191, %s2216
        %v2218 = vpop.permute.xlu0 %2217
        %s2220 = sor.u32 256, 56
        %2221 = vbcast.lane.b32.xlu0 %v2191, %s2220
        %v2222 = vpop.permute.xlu0 %2221
        %v2223 = vlaneseq
        %v2224 = vshrl.u32 %v2223, 7
        %v2225 = vsub.s32 5, %v2224
        %v2226 = vrot.slane %v1403, %v2225
        %2228 = vbcast.lane.b32.xlu0 %v2226, 256
        %v2229 = vpop.permute.xlu0 %2228
        %s2231 = sor.u32 256, 8
        %2232 = vbcast.lane.b32.xlu0 %v2226, %s2231
        %v2233 = vpop.permute.xlu0 %2232
        %s2235 = sor.u32 256, 16
        %2236 = vbcast.lane.b32.xlu0 %v2226, %s2235
        %v2237 = vpop.permute.xlu0 %2236
        %s2239 = sor.u32 256, 24
        %2240 = vbcast.lane.b32.xlu0 %v2226, %s2239
        %v2241 = vpop.permute.xlu0 %2240
        %s2243 = sor.u32 256, 32
        %2244 = vbcast.lane.b32.xlu0 %v2226, %s2243
        %v2245 = vpop.permute.xlu0 %2244
        %s2247 = sor.u32 256, 40
        %2248 = vbcast.lane.b32.xlu0 %v2226, %s2247
        %v2249 = vpop.permute.xlu0 %2248
        %s2251 = sor.u32 256, 48
        %2252 = vbcast.lane.b32.xlu0 %v2226, %s2251
        %v2253 = vpop.permute.xlu0 %2252
        %s2255 = sor.u32 256, 56
        %2256 = vbcast.lane.b32.xlu0 %v2226, %s2255
        %v2257 = vpop.permute.xlu0 %2256
        %v2258 = vlaneseq
        %v2259 = vshrl.u32 %v2258, 7
        %v2260 = vsub.s32 6, %v2259
        %v2261 = vrot.slane %v1403, %v2260
        %2263 = vbcast.lane.b32.xlu0 %v2261, 256
        %v2264 = vpop.permute.xlu0 %2263
        %s2266 = sor.u32 256, 8
        %2267 = vbcast.lane.b32.xlu0 %v2261, %s2266
        %v2268 = vpop.permute.xlu0 %2267
        %s2270 = sor.u32 256, 16
        %2271 = vbcast.lane.b32.xlu0 %v2261, %s2270
        %v2272 = vpop.permute.xlu0 %2271
        %s2274 = sor.u32 256, 24
        %2275 = vbcast.lane.b32.xlu0 %v2261, %s2274
        %v2276 = vpop.permute.xlu0 %2275
        %s2278 = sor.u32 256, 32
        %2279 = vbcast.lane.b32.xlu0 %v2261, %s2278
        %v2280 = vpop.permute.xlu0 %2279
        %s2282 = sor.u32 256, 40
        %2283 = vbcast.lane.b32.xlu0 %v2261, %s2282
        %v2284 = vpop.permute.xlu0 %2283
        %s2286 = sor.u32 256, 48
        %2287 = vbcast.lane.b32.xlu0 %v2261, %s2286
        %v2288 = vpop.permute.xlu0 %2287
        %s2290 = sor.u32 256, 56
        %2291 = vbcast.lane.b32.xlu0 %v2261, %s2290
        %v2292 = vpop.permute.xlu0 %2291
        %v2293 = vlaneseq
        %v2294 = vshrl.u32 %v2293, 7
        %v2295 = vsub.s32 7, %v2294
        %v2296 = vrot.slane %v1403, %v2295
        %2298 = vbcast.lane.b32.xlu0 %v2296, 256
        %v2299 = vpop.permute.xlu0 %2298
        %s2301 = sor.u32 256, 8
        %2302 = vbcast.lane.b32.xlu0 %v2296, %s2301
        %v2303 = vpop.permute.xlu0 %2302
        %s2305 = sor.u32 256, 16
        %2306 = vbcast.lane.b32.xlu0 %v2296, %s2305
        %v2307 = vpop.permute.xlu0 %2306
        %s2309 = sor.u32 256, 24
        %2310 = vbcast.lane.b32.xlu0 %v2296, %s2309
        %v2311 = vpop.permute.xlu0 %2310
        %s2313 = sor.u32 256, 32
        %2314 = vbcast.lane.b32.xlu0 %v2296, %s2313
        %v2315 = vpop.permute.xlu0 %2314
        %s2317 = sor.u32 256, 40
        %2318 = vbcast.lane.b32.xlu0 %v2296, %s2317
        %v2319 = vpop.permute.xlu0 %2318
        %s2321 = sor.u32 256, 48
        %2322 = vbcast.lane.b32.xlu0 %v2296, %s2321
        %v2323 = vpop.permute.xlu0 %2322
        %s2325 = sor.u32 256, 56
        %2326 = vbcast.lane.b32.xlu0 %v2296, %s2325
        %v2327 = vpop.permute.xlu0 %2326
        %v2328 = vlaneseq
        %v2329 = vshrl.u32 %v2328, 7
        %v2330 = vsub.s32 0, %v2329
        %v2331 = vrot.slane %v1404, %v2330
        %2333 = vbcast.lane.b32.xlu0 %v2331, 256
        %v2334 = vpop.permute.xlu0 %2333
        %s2336 = sor.u32 256, 8
        %2337 = vbcast.lane.b32.xlu0 %v2331, %s2336
        %v2338 = vpop.permute.xlu0 %2337
        %s2340 = sor.u32 256, 16
        %2341 = vbcast.lane.b32.xlu0 %v2331, %s2340
        %v2342 = vpop.permute.xlu0 %2341
        %s2344 = sor.u32 256, 24
        %2345 = vbcast.lane.b32.xlu0 %v2331, %s2344
        %v2346 = vpop.permute.xlu0 %2345
        %s2348 = sor.u32 256, 32
        %2349 = vbcast.lane.b32.xlu0 %v2331, %s2348
        %v2350 = vpop.permute.xlu0 %2349
        %s2352 = sor.u32 256, 40
        %2353 = vbcast.lane.b32.xlu0 %v2331, %s2352
        %v2354 = vpop.permute.xlu0 %2353
        %s2356 = sor.u32 256, 48
        %2357 = vbcast.lane.b32.xlu0 %v2331, %s2356
        %v2358 = vpop.permute.xlu0 %2357
        %s2360 = sor.u32 256, 56
        %2361 = vbcast.lane.b32.xlu0 %v2331, %s2360
        %v2362 = vpop.permute.xlu0 %2361
        %v2363 = vlaneseq
        %v2364 = vshrl.u32 %v2363, 7
        %v2365 = vsub.s32 1, %v2364
        %v2366 = vrot.slane %v1404, %v2365
        %2368 = vbcast.lane.b32.xlu0 %v2366, 256
        %v2369 = vpop.permute.xlu0 %2368
        %s2371 = sor.u32 256, 8
        %2372 = vbcast.lane.b32.xlu0 %v2366, %s2371
        %v2373 = vpop.permute.xlu0 %2372
        %s2375 = sor.u32 256, 16
        %2376 = vbcast.lane.b32.xlu0 %v2366, %s2375
        %v2377 = vpop.permute.xlu0 %2376
        %s2379 = sor.u32 256, 24
        %2380 = vbcast.lane.b32.xlu0 %v2366, %s2379
        %v2381 = vpop.permute.xlu0 %2380
        %s2383 = sor.u32 256, 32
        %2384 = vbcast.lane.b32.xlu0 %v2366, %s2383
        %v2385 = vpop.permute.xlu0 %2384
        %s2387 = sor.u32 256, 40
        %2388 = vbcast.lane.b32.xlu0 %v2366, %s2387
        %v2389 = vpop.permute.xlu0 %2388
        %s2391 = sor.u32 256, 48
        %2392 = vbcast.lane.b32.xlu0 %v2366, %s2391
        %v2393 = vpop.permute.xlu0 %2392
        %s2395 = sor.u32 256, 56
        %2396 = vbcast.lane.b32.xlu0 %v2366, %s2395
        %v2397 = vpop.permute.xlu0 %2396
        %v2398 = vlaneseq
        %v2399 = vshrl.u32 %v2398, 7
        %v2400 = vsub.s32 2, %v2399
        %v2401 = vrot.slane %v1404, %v2400
        %2403 = vbcast.lane.b32.xlu0 %v2401, 256
        %v2404 = vpop.permute.xlu0 %2403
        %s2406 = sor.u32 256, 8
        %2407 = vbcast.lane.b32.xlu0 %v2401, %s2406
        %v2408 = vpop.permute.xlu0 %2407
        %s2410 = sor.u32 256, 16
        %2411 = vbcast.lane.b32.xlu0 %v2401, %s2410
        %v2412 = vpop.permute.xlu0 %2411
        %s2414 = sor.u32 256, 24
        %2415 = vbcast.lane.b32.xlu0 %v2401, %s2414
        %v2416 = vpop.permute.xlu0 %2415
        %s2418 = sor.u32 256, 32
        %2419 = vbcast.lane.b32.xlu0 %v2401, %s2418
        %v2420 = vpop.permute.xlu0 %2419
        %s2422 = sor.u32 256, 40
        %2423 = vbcast.lane.b32.xlu0 %v2401, %s2422
        %v2424 = vpop.permute.xlu0 %2423
        %s2426 = sor.u32 256, 48
        %2427 = vbcast.lane.b32.xlu0 %v2401, %s2426
        %v2428 = vpop.permute.xlu0 %2427
        %s2430 = sor.u32 256, 56
        %2431 = vbcast.lane.b32.xlu0 %v2401, %s2430
        %v2432 = vpop.permute.xlu0 %2431
        %v2433 = vlaneseq
        %v2434 = vshrl.u32 %v2433, 7
        %v2435 = vsub.s32 3, %v2434
        %v2436 = vrot.slane %v1404, %v2435
        %2438 = vbcast.lane.b32.xlu0 %v2436, 256
        %v2439 = vpop.permute.xlu0 %2438
        %s2441 = sor.u32 256, 8
        %2442 = vbcast.lane.b32.xlu0 %v2436, %s2441
        %v2443 = vpop.permute.xlu0 %2442
        %s2445 = sor.u32 256, 16
        %2446 = vbcast.lane.b32.xlu0 %v2436, %s2445
        %v2447 = vpop.permute.xlu0 %2446
        %s2449 = sor.u32 256, 24
        %2450 = vbcast.lane.b32.xlu0 %v2436, %s2449
        %v2451 = vpop.permute.xlu0 %2450
        %s2453 = sor.u32 256, 32
        %2454 = vbcast.lane.b32.xlu0 %v2436, %s2453
        %v2455 = vpop.permute.xlu0 %2454
        %s2457 = sor.u32 256, 40
        %2458 = vbcast.lane.b32.xlu0 %v2436, %s2457
        %v2459 = vpop.permute.xlu0 %2458
        %s2461 = sor.u32 256, 48
        %2462 = vbcast.lane.b32.xlu0 %v2436, %s2461
        %v2463 = vpop.permute.xlu0 %2462
        %s2465 = sor.u32 256, 56
        %2466 = vbcast.lane.b32.xlu0 %v2436, %s2465
        %v2467 = vpop.permute.xlu0 %2466
        %v2468 = vlaneseq
        %v2469 = vshrl.u32 %v2468, 7
        %v2470 = vsub.s32 4, %v2469
        %v2471 = vrot.slane %v1404, %v2470
        %2473 = vbcast.lane.b32.xlu0 %v2471, 256
        %v2474 = vpop.permute.xlu0 %2473
        %s2476 = sor.u32 256, 8
        %2477 = vbcast.lane.b32.xlu0 %v2471, %s2476
        %v2478 = vpop.permute.xlu0 %2477
        %s2480 = sor.u32 256, 16
        %2481 = vbcast.lane.b32.xlu0 %v2471, %s2480
        %v2482 = vpop.permute.xlu0 %2481
        %s2484 = sor.u32 256, 24
        %2485 = vbcast.lane.b32.xlu0 %v2471, %s2484
        %v2486 = vpop.permute.xlu0 %2485
        %s2488 = sor.u32 256, 32
        %2489 = vbcast.lane.b32.xlu0 %v2471, %s2488
        %v2490 = vpop.permute.xlu0 %2489
        %s2492 = sor.u32 256, 40
        %2493 = vbcast.lane.b32.xlu0 %v2471, %s2492
        %v2494 = vpop.permute.xlu0 %2493
        %s2496 = sor.u32 256, 48
        %2497 = vbcast.lane.b32.xlu0 %v2471, %s2496
        %v2498 = vpop.permute.xlu0 %2497
        %s2500 = sor.u32 256, 56
        %2501 = vbcast.lane.b32.xlu0 %v2471, %s2500
        %v2502 = vpop.permute.xlu0 %2501
        %v2503 = vlaneseq
        %v2504 = vshrl.u32 %v2503, 7
        %v2505 = vsub.s32 5, %v2504
        %v2506 = vrot.slane %v1404, %v2505
        %2508 = vbcast.lane.b32.xlu0 %v2506, 256
        %v2509 = vpop.permute.xlu0 %2508
        %s2511 = sor.u32 256, 8
        %2512 = vbcast.lane.b32.xlu0 %v2506, %s2511
        %v2513 = vpop.permute.xlu0 %2512
        %s2515 = sor.u32 256, 16
        %2516 = vbcast.lane.b32.xlu0 %v2506, %s2515
        %v2517 = vpop.permute.xlu0 %2516
        %s2519 = sor.u32 256, 24
        %2520 = vbcast.lane.b32.xlu0 %v2506, %s2519
        %v2521 = vpop.permute.xlu0 %2520
        %s2523 = sor.u32 256, 32
        %2524 = vbcast.lane.b32.xlu0 %v2506, %s2523
        %v2525 = vpop.permute.xlu0 %2524
        %s2527 = sor.u32 256, 40
        %2528 = vbcast.lane.b32.xlu0 %v2506, %s2527
        %v2529 = vpop.permute.xlu0 %2528
        %s2531 = sor.u32 256, 48
        %2532 = vbcast.lane.b32.xlu0 %v2506, %s2531
        %v2533 = vpop.permute.xlu0 %2532
        %s2535 = sor.u32 256, 56
        %2536 = vbcast.lane.b32.xlu0 %v2506, %s2535
        %v2537 = vpop.permute.xlu0 %2536
        %v2538 = vlaneseq
        %v2539 = vshrl.u32 %v2538, 7
        %v2540 = vsub.s32 6, %v2539
        %v2541 = vrot.slane %v1404, %v2540
        %2543 = vbcast.lane.b32.xlu0 %v2541, 256
        %v2544 = vpop.permute.xlu0 %2543
        %s2546 = sor.u32 256, 8
        %2547 = vbcast.lane.b32.xlu0 %v2541, %s2546
        %v2548 = vpop.permute.xlu0 %2547
        %s2550 = sor.u32 256, 16
        %2551 = vbcast.lane.b32.xlu0 %v2541, %s2550
        %v2552 = vpop.permute.xlu0 %2551
        %s2554 = sor.u32 256, 24
        %2555 = vbcast.lane.b32.xlu0 %v2541, %s2554
        %v2556 = vpop.permute.xlu0 %2555
        %s2558 = sor.u32 256, 32
        %2559 = vbcast.lane.b32.xlu0 %v2541, %s2558
        %v2560 = vpop.permute.xlu0 %2559
        %s2562 = sor.u32 256, 40
        %2563 = vbcast.lane.b32.xlu0 %v2541, %s2562
        %v2564 = vpop.permute.xlu0 %2563
        %s2566 = sor.u32 256, 48
        %2567 = vbcast.lane.b32.xlu0 %v2541, %s2566
        %v2568 = vpop.permute.xlu0 %2567
        %s2570 = sor.u32 256, 56
        %2571 = vbcast.lane.b32.xlu0 %v2541, %s2570
        %v2572 = vpop.permute.xlu0 %2571
        %v2573 = vlaneseq
        %v2574 = vshrl.u32 %v2573, 7
        %v2575 = vsub.s32 7, %v2574
        %v2576 = vrot.slane %v1404, %v2575
        %2578 = vbcast.lane.b32.xlu0 %v2576, 256
        %v2579 = vpop.permute.xlu0 %2578
        %s2581 = sor.u32 256, 8
        %2582 = vbcast.lane.b32.xlu0 %v2576, %s2581
        %v2583 = vpop.permute.xlu0 %2582
        %s2585 = sor.u32 256, 16
        %2586 = vbcast.lane.b32.xlu0 %v2576, %s2585
        %v2587 = vpop.permute.xlu0 %2586
        %s2589 = sor.u32 256, 24
        %2590 = vbcast.lane.b32.xlu0 %v2576, %s2589
        %v2591 = vpop.permute.xlu0 %2590
        %s2593 = sor.u32 256, 32
        %2594 = vbcast.lane.b32.xlu0 %v2576, %s2593
        %v2595 = vpop.permute.xlu0 %2594
        %s2597 = sor.u32 256, 40
        %2598 = vbcast.lane.b32.xlu0 %v2576, %s2597
        %v2599 = vpop.permute.xlu0 %2598
        %s2601 = sor.u32 256, 48
        %2602 = vbcast.lane.b32.xlu0 %v2576, %s2601
        %v2603 = vpop.permute.xlu0 %2602
        %s2605 = sor.u32 256, 56
        %2606 = vbcast.lane.b32.xlu0 %v2576, %s2605
        %v2607 = vpop.permute.xlu0 %2606
        %v2736 = vadd.f32 %v1664, %v2054
        %v2737 = vadd.f32 %v1667, %v2058
        %v2738 = vadd.f32 %v1670, %v2062
        %v2739 = vadd.f32 %v1673, %v2066
        %v2740 = vadd.f32 %v1676, %v2070
        %v2741 = vadd.f32 %v1679, %v2074
        %v2742 = vadd.f32 %v1682, %v2078
        %v2743 = vadd.f32 %v1685, %v2082
        %v2744 = vadd.f32 %v1688, %v2089
        %v2745 = vadd.f32 %v1691, %v2093
        %v2746 = vadd.f32 %v1694, %v2097
        %v2747 = vadd.f32 %v1697, %v2101
        %v2748 = vadd.f32 %v1700, %v2105
        %v2749 = vadd.f32 %v1703, %v2109
        %v2750 = vadd.f32 %v1706, %v2113
        %v2751 = vadd.f32 %v1709, %v2117
        %v2752 = vadd.f32 %v1712, %v2124
        %v2753 = vadd.f32 %v1715, %v2128
        %v2754 = vadd.f32 %v1718, %v2132
        %v2755 = vadd.f32 %v1721, %v2136
        %v2756 = vadd.f32 %v1724, %v2140
        %v2757 = vadd.f32 %v1727, %v2144
        %v2758 = vadd.f32 %v1730, %v2148
        %v2759 = vadd.f32 %v1733, %v2152
        %v2760 = vadd.f32 %v1736, %v2159
        %v2761 = vadd.f32 %v1739, %v2163
        %v2762 = vadd.f32 %v1742, %v2167
        %v2763 = vadd.f32 %v1745, %v2171
        %v2764 = vadd.f32 %v1748, %v2175
        %v2765 = vadd.f32 %v1751, %v2179
        %v2766 = vadd.f32 %v1754, %v2183
        %v2767 = vadd.f32 %v1757, %v2187
        %v2768 = vadd.f32 %v1760, %v2194
        %v2769 = vadd.f32 %v1763, %v2198
        %v2770 = vadd.f32 %v1766, %v2202
        %v2771 = vadd.f32 %v1769, %v2206
        %v2772 = vadd.f32 %v1772, %v2210
        %v2773 = vadd.f32 %v1775, %v2214
        %v2774 = vadd.f32 %v1778, %v2218
        %v2775 = vadd.f32 %v1781, %v2222
        %v2776 = vadd.f32 %v1784, %v2229
        %v2777 = vadd.f32 %v1787, %v2233
        %v2778 = vadd.f32 %v1790, %v2237
        %v2779 = vadd.f32 %v1793, %v2241
        %v2780 = vadd.f32 %v1796, %v2245
        %v2781 = vadd.f32 %v1799, %v2249
        %v2782 = vadd.f32 %v1802, %v2253
        %v2783 = vadd.f32 %v1805, %v2257
        %v2784 = vadd.f32 %v1808, %v2264
        %v2785 = vadd.f32 %v1811, %v2268
        %v2786 = vadd.f32 %v1814, %v2272
        %v2787 = vadd.f32 %v1817, %v2276
        %v2788 = vadd.f32 %v1820, %v2280
        %v2789 = vadd.f32 %v1823, %v2284
        %v2790 = vadd.f32 %v1826, %v2288
        %v2791 = vadd.f32 %v1829, %v2292
        %v2792 = vadd.f32 %v1832, %v2299
        %v2793 = vadd.f32 %v1835, %v2303
        %v2794 = vadd.f32 %v1838, %v2307
        %v2795 = vadd.f32 %v1841, %v2311
        %v2796 = vadd.f32 %v1844, %v2315
        %v2797 = vadd.f32 %v1847, %v2319
        %v2798 = vadd.f32 %v1850, %v2323
        %v2799 = vadd.f32 %v1853, %v2327
        %v2800 = vadd.f32 %v1856, %v2334
        %v2801 = vadd.f32 %v1859, %v2338
        %v2802 = vadd.f32 %v1862, %v2342
        %v2803 = vadd.f32 %v1865, %v2346
        %v2804 = vadd.f32 %v1868, %v2350
        %v2805 = vadd.f32 %v1871, %v2354
        %v2806 = vadd.f32 %v1874, %v2358
        %v2807 = vadd.f32 %v1877, %v2362
        %v2808 = vadd.f32 %v1880, %v2369
        %v2809 = vadd.f32 %v1883, %v2373
        %v2810 = vadd.f32 %v1886, %v2377
        %v2811 = vadd.f32 %v1889, %v2381
        %v2812 = vadd.f32 %v1892, %v2385
        %v2813 = vadd.f32 %v1895, %v2389
        %v2814 = vadd.f32 %v1898, %v2393
        %v2815 = vadd.f32 %v1901, %v2397
        %v2816 = vadd.f32 %v1904, %v2404
        %v2817 = vadd.f32 %v1907, %v2408
        %v2818 = vadd.f32 %v1910, %v2412
        %v2819 = vadd.f32 %v1913, %v2416
        %v2820 = vadd.f32 %v1916, %v2420
        %v2821 = vadd.f32 %v1919, %v2424
        %v2822 = vadd.f32 %v1922, %v2428
        %v2823 = vadd.f32 %v1925, %v2432
        %v2824 = vadd.f32 %v1928, %v2439
        %v2825 = vadd.f32 %v1931, %v2443
        %v2826 = vadd.f32 %v1934, %v2447
        %v2827 = vadd.f32 %v1937, %v2451
        %v2828 = vadd.f32 %v1940, %v2455
        %v2829 = vadd.f32 %v1943, %v2459
        %v2830 = vadd.f32 %v1946, %v2463
        %v2831 = vadd.f32 %v1949, %v2467
        %v2832 = vadd.f32 %v1952, %v2474
        %v2833 = vadd.f32 %v1955, %v2478
        %v2834 = vadd.f32 %v1958, %v2482
        %v2835 = vadd.f32 %v1961, %v2486
        %v2836 = vadd.f32 %v1964, %v2490
        %v2837 = vadd.f32 %v1967, %v2494
        %v2838 = vadd.f32 %v1970, %v2498
        %v2839 = vadd.f32 %v1973, %v2502
        %v2840 = vadd.f32 %v1976, %v2509
        %v2841 = vadd.f32 %v1979, %v2513
        %v2842 = vadd.f32 %v1982, %v2517
        %v2843 = vadd.f32 %v1985, %v2521
        %v2844 = vadd.f32 %v1988, %v2525
        %v2845 = vadd.f32 %v1991, %v2529
        %v2846 = vadd.f32 %v1994, %v2533
        %v2847 = vadd.f32 %v1997, %v2537
        %v2848 = vadd.f32 %v2000, %v2544
        %v2849 = vadd.f32 %v2003, %v2548
        %v2850 = vadd.f32 %v2006, %v2552
        %v2851 = vadd.f32 %v2009, %v2556
        %v2852 = vadd.f32 %v2012, %v2560
        %v2853 = vadd.f32 %v2015, %v2564
        %v2854 = vadd.f32 %v2018, %v2568
        %v2855 = vadd.f32 %v2021, %v2572
        %v2856 = vadd.f32 %v2024, %v2579
        %v2857 = vadd.f32 %v2027, %v2583
        %v2858 = vadd.f32 %v2030, %v2587
        %v2859 = vadd.f32 %v2033, %v2591
        %v2860 = vadd.f32 %v2036, %v2595
        %v2861 = vadd.f32 %v2039, %v2599
        %v2862 = vadd.f32 %v2042, %v2603
        %v2863 = vadd.f32 %v2045, %v2607
        %2992 = vset.pattern.permute.xlu0 0
        %2993 = vperm.xlu0 %2992, %v2736
        %v2994 = vpop.permute.xlu0 %2993
        %2995 = vset.pattern.permute.xlu0 0
        %2996 = vperm.xlu0 %2995, %v2737
        %v2997 = vpop.permute.xlu0 %2996
        %2998 = vset.pattern.permute.xlu0 0
        %2999 = vperm.xlu0 %2998, %v2738
        %v3000 = vpop.permute.xlu0 %2999
        %3001 = vset.pattern.permute.xlu0 0
        %3002 = vperm.xlu0 %3001, %v2739
        %v3003 = vpop.permute.xlu0 %3002
        %3004 = vset.pattern.permute.xlu0 0
        %3005 = vperm.xlu0 %3004, %v2740
        %v3006 = vpop.permute.xlu0 %3005
        %3007 = vset.pattern.permute.xlu0 0
        %3008 = vperm.xlu0 %3007, %v2741
        %v3009 = vpop.permute.xlu0 %3008
        %3010 = vset.pattern.permute.xlu0 0
        %3011 = vperm.xlu0 %3010, %v2742
        %v3012 = vpop.permute.xlu0 %3011
        %3013 = vset.pattern.permute.xlu0 0
        %3014 = vperm.xlu0 %3013, %v2743
        %v3015 = vpop.permute.xlu0 %3014
        %3016 = vset.pattern.permute.xlu0 0
        %3017 = vperm.xlu0 %3016, %v2744
        %v3018 = vpop.permute.xlu0 %3017
        %3019 = vset.pattern.permute.xlu0 0
        %3020 = vperm.xlu0 %3019, %v2745
        %v3021 = vpop.permute.xlu0 %3020
        %3022 = vset.pattern.permute.xlu0 0
        %3023 = vperm.xlu0 %3022, %v2746
        %v3024 = vpop.permute.xlu0 %3023
        %3025 = vset.pattern.permute.xlu0 0
        %3026 = vperm.xlu0 %3025, %v2747
        %v3027 = vpop.permute.xlu0 %3026
        %3028 = vset.pattern.permute.xlu0 0
        %3029 = vperm.xlu0 %3028, %v2748
        %v3030 = vpop.permute.xlu0 %3029
        %3031 = vset.pattern.permute.xlu0 0
        %3032 = vperm.xlu0 %3031, %v2749
        %v3033 = vpop.permute.xlu0 %3032
        %3034 = vset.pattern.permute.xlu0 0
        %3035 = vperm.xlu0 %3034, %v2750
        %v3036 = vpop.permute.xlu0 %3035
        %3037 = vset.pattern.permute.xlu0 0
        %3038 = vperm.xlu0 %3037, %v2751
        %v3039 = vpop.permute.xlu0 %3038
        %3040 = vset.pattern.permute.xlu0 0
        %3041 = vperm.xlu0 %3040, %v2752
        %v3042 = vpop.permute.xlu0 %3041
        %3043 = vset.pattern.permute.xlu0 0
        %3044 = vperm.xlu0 %3043, %v2753
        %v3045 = vpop.permute.xlu0 %3044
        %3046 = vset.pattern.permute.xlu0 0
        %3047 = vperm.xlu0 %3046, %v2754
        %v3048 = vpop.permute.xlu0 %3047
        %3049 = vset.pattern.permute.xlu0 0
        %3050 = vperm.xlu0 %3049, %v2755
        %v3051 = vpop.permute.xlu0 %3050
        %3052 = vset.pattern.permute.xlu0 0
        %3053 = vperm.xlu0 %3052, %v2756
        %v3054 = vpop.permute.xlu0 %3053
        %3055 = vset.pattern.permute.xlu0 0
        %3056 = vperm.xlu0 %3055, %v2757
        %v3057 = vpop.permute.xlu0 %3056
        %3058 = vset.pattern.permute.xlu0 0
        %3059 = vperm.xlu0 %3058, %v2758
        %v3060 = vpop.permute.xlu0 %3059
        %3061 = vset.pattern.permute.xlu0 0
        %3062 = vperm.xlu0 %3061, %v2759
        %v3063 = vpop.permute.xlu0 %3062
        %3064 = vset.pattern.permute.xlu0 0
        %3065 = vperm.xlu0 %3064, %v2760
        %v3066 = vpop.permute.xlu0 %3065
        %3067 = vset.pattern.permute.xlu0 0
        %3068 = vperm.xlu0 %3067, %v2761
        %v3069 = vpop.permute.xlu0 %3068
        %3070 = vset.pattern.permute.xlu0 0
        %3071 = vperm.xlu0 %3070, %v2762
        %v3072 = vpop.permute.xlu0 %3071
        %3073 = vset.pattern.permute.xlu0 0
        %3074 = vperm.xlu0 %3073, %v2763
        %v3075 = vpop.permute.xlu0 %3074
        %3076 = vset.pattern.permute.xlu0 0
        %3077 = vperm.xlu0 %3076, %v2764
        %v3078 = vpop.permute.xlu0 %3077
        %3079 = vset.pattern.permute.xlu0 0
        %3080 = vperm.xlu0 %3079, %v2765
        %v3081 = vpop.permute.xlu0 %3080
        %3082 = vset.pattern.permute.xlu0 0
        %3083 = vperm.xlu0 %3082, %v2766
        %v3084 = vpop.permute.xlu0 %3083
        %3085 = vset.pattern.permute.xlu0 0
        %3086 = vperm.xlu0 %3085, %v2767
        %v3087 = vpop.permute.xlu0 %3086
        %3088 = vset.pattern.permute.xlu0 0
        %3089 = vperm.xlu0 %3088, %v2768
        %v3090 = vpop.permute.xlu0 %3089
        %3091 = vset.pattern.permute.xlu0 0
        %3092 = vperm.xlu0 %3091, %v2769
        %v3093 = vpop.permute.xlu0 %3092
        %3094 = vset.pattern.permute.xlu0 0
        %3095 = vperm.xlu0 %3094, %v2770
        %v3096 = vpop.permute.xlu0 %3095
        %3097 = vset.pattern.permute.xlu0 0
        %3098 = vperm.xlu0 %3097, %v2771
        %v3099 = vpop.permute.xlu0 %3098
        %3100 = vset.pattern.permute.xlu0 0
        %3101 = vperm.xlu0 %3100, %v2772
        %v3102 = vpop.permute.xlu0 %3101
        %3103 = vset.pattern.permute.xlu0 0
        %3104 = vperm.xlu0 %3103, %v2773
        %v3105 = vpop.permute.xlu0 %3104
        %3106 = vset.pattern.permute.xlu0 0
        %3107 = vperm.xlu0 %3106, %v2774
        %v3108 = vpop.permute.xlu0 %3107
        %3109 = vset.pattern.permute.xlu0 0
        %3110 = vperm.xlu0 %3109, %v2775
        %v3111 = vpop.permute.xlu0 %3110
        %3112 = vset.pattern.permute.xlu0 0
        %3113 = vperm.xlu0 %3112, %v2776
        %v3114 = vpop.permute.xlu0 %3113
        %3115 = vset.pattern.permute.xlu0 0
        %3116 = vperm.xlu0 %3115, %v2777
        %v3117 = vpop.permute.xlu0 %3116
        %3118 = vset.pattern.permute.xlu0 0
        %3119 = vperm.xlu0 %3118, %v2778
        %v3120 = vpop.permute.xlu0 %3119
        %3121 = vset.pattern.permute.xlu0 0
        %3122 = vperm.xlu0 %3121, %v2779
        %v3123 = vpop.permute.xlu0 %3122
        %3124 = vset.pattern.permute.xlu0 0
        %3125 = vperm.xlu0 %3124, %v2780
        %v3126 = vpop.permute.xlu0 %3125
        %3127 = vset.pattern.permute.xlu0 0
        %3128 = vperm.xlu0 %3127, %v2781
        %v3129 = vpop.permute.xlu0 %3128
        %3130 = vset.pattern.permute.xlu0 0
        %3131 = vperm.xlu0 %3130, %v2782
        %v3132 = vpop.permute.xlu0 %3131
        %3133 = vset.pattern.permute.xlu0 0
        %3134 = vperm.xlu0 %3133, %v2783
        %v3135 = vpop.permute.xlu0 %3134
        %3136 = vset.pattern.permute.xlu0 0
        %3137 = vperm.xlu0 %3136, %v2784
        %v3138 = vpop.permute.xlu0 %3137
        %3139 = vset.pattern.permute.xlu0 0
        %3140 = vperm.xlu0 %3139, %v2785
        %v3141 = vpop.permute.xlu0 %3140
        %3142 = vset.pattern.permute.xlu0 0
        %3143 = vperm.xlu0 %3142, %v2786
        %v3144 = vpop.permute.xlu0 %3143
        %3145 = vset.pattern.permute.xlu0 0
        %3146 = vperm.xlu0 %3145, %v2787
        %v3147 = vpop.permute.xlu0 %3146
        %3148 = vset.pattern.permute.xlu0 0
        %3149 = vperm.xlu0 %3148, %v2788
        %v3150 = vpop.permute.xlu0 %3149
        %3151 = vset.pattern.permute.xlu0 0
        %3152 = vperm.xlu0 %3151, %v2789
        %v3153 = vpop.permute.xlu0 %3152
        %3154 = vset.pattern.permute.xlu0 0
        %3155 = vperm.xlu0 %3154, %v2790
        %v3156 = vpop.permute.xlu0 %3155
        %3157 = vset.pattern.permute.xlu0 0
        %3158 = vperm.xlu0 %3157, %v2791
        %v3159 = vpop.permute.xlu0 %3158
        %3160 = vset.pattern.permute.xlu0 0
        %3161 = vperm.xlu0 %3160, %v2792
        %v3162 = vpop.permute.xlu0 %3161
        %3163 = vset.pattern.permute.xlu0 0
        %3164 = vperm.xlu0 %3163, %v2793
        %v3165 = vpop.permute.xlu0 %3164
        %3166 = vset.pattern.permute.xlu0 0
        %3167 = vperm.xlu0 %3166, %v2794
        %v3168 = vpop.permute.xlu0 %3167
        %3169 = vset.pattern.permute.xlu0 0
        %3170 = vperm.xlu0 %3169, %v2795
        %v3171 = vpop.permute.xlu0 %3170
        %3172 = vset.pattern.permute.xlu0 0
        %3173 = vperm.xlu0 %3172, %v2796
        %v3174 = vpop.permute.xlu0 %3173
        %3175 = vset.pattern.permute.xlu0 0
        %3176 = vperm.xlu0 %3175, %v2797
        %v3177 = vpop.permute.xlu0 %3176
        %3178 = vset.pattern.permute.xlu0 0
        %3179 = vperm.xlu0 %3178, %v2798
        %v3180 = vpop.permute.xlu0 %3179
        %3181 = vset.pattern.permute.xlu0 0
        %3182 = vperm.xlu0 %3181, %v2799
        %v3183 = vpop.permute.xlu0 %3182
        %3184 = vset.pattern.permute.xlu0 0
        %3185 = vperm.xlu0 %3184, %v2800
        %v3186 = vpop.permute.xlu0 %3185
        %3187 = vset.pattern.permute.xlu0 0
        %3188 = vperm.xlu0 %3187, %v2801
        %v3189 = vpop.permute.xlu0 %3188
        %3190 = vset.pattern.permute.xlu0 0
        %3191 = vperm.xlu0 %3190, %v2802
        %v3192 = vpop.permute.xlu0 %3191
        %3193 = vset.pattern.permute.xlu0 0
        %3194 = vperm.xlu0 %3193, %v2803
        %v3195 = vpop.permute.xlu0 %3194
        %3196 = vset.pattern.permute.xlu0 0
        %3197 = vperm.xlu0 %3196, %v2804
        %v3198 = vpop.permute.xlu0 %3197
        %3199 = vset.pattern.permute.xlu0 0
        %3200 = vperm.xlu0 %3199, %v2805
        %v3201 = vpop.permute.xlu0 %3200
        %3202 = vset.pattern.permute.xlu0 0
        %3203 = vperm.xlu0 %3202, %v2806
        %v3204 = vpop.permute.xlu0 %3203
        %3205 = vset.pattern.permute.xlu0 0
        %3206 = vperm.xlu0 %3205, %v2807
        %v3207 = vpop.permute.xlu0 %3206
        %3208 = vset.pattern.permute.xlu0 0
        %3209 = vperm.xlu0 %3208, %v2808
        %v3210 = vpop.permute.xlu0 %3209
        %3211 = vset.pattern.permute.xlu0 0
        %3212 = vperm.xlu0 %3211, %v2809
        %v3213 = vpop.permute.xlu0 %3212
        %3214 = vset.pattern.permute.xlu0 0
        %3215 = vperm.xlu0 %3214, %v2810
        %v3216 = vpop.permute.xlu0 %3215
        %3217 = vset.pattern.permute.xlu0 0
        %3218 = vperm.xlu0 %3217, %v2811
        %v3219 = vpop.permute.xlu0 %3218
        %3220 = vset.pattern.permute.xlu0 0
        %3221 = vperm.xlu0 %3220, %v2812
        %v3222 = vpop.permute.xlu0 %3221
        %3223 = vset.pattern.permute.xlu0 0
        %3224 = vperm.xlu0 %3223, %v2813
        %v3225 = vpop.permute.xlu0 %3224
        %3226 = vset.pattern.permute.xlu0 0
        %3227 = vperm.xlu0 %3226, %v2814
        %v3228 = vpop.permute.xlu0 %3227
        %3229 = vset.pattern.permute.xlu0 0
        %3230 = vperm.xlu0 %3229, %v2815
        %v3231 = vpop.permute.xlu0 %3230
        %3232 = vset.pattern.permute.xlu0 0
        %3233 = vperm.xlu0 %3232, %v2816
        %v3234 = vpop.permute.xlu0 %3233
        %3235 = vset.pattern.permute.xlu0 0
        %3236 = vperm.xlu0 %3235, %v2817
        %v3237 = vpop.permute.xlu0 %3236
        %3238 = vset.pattern.permute.xlu0 0
        %3239 = vperm.xlu0 %3238, %v2818
        %v3240 = vpop.permute.xlu0 %3239
        %3241 = vset.pattern.permute.xlu0 0
        %3242 = vperm.xlu0 %3241, %v2819
        %v3243 = vpop.permute.xlu0 %3242
        %3244 = vset.pattern.permute.xlu0 0
        %3245 = vperm.xlu0 %3244, %v2820
        %v3246 = vpop.permute.xlu0 %3245
        %3247 = vset.pattern.permute.xlu0 0
        %3248 = vperm.xlu0 %3247, %v2821
        %v3249 = vpop.permute.xlu0 %3248
        %3250 = vset.pattern.permute.xlu0 0
        %3251 = vperm.xlu0 %3250, %v2822
        %v3252 = vpop.permute.xlu0 %3251
        %3253 = vset.pattern.permute.xlu0 0
        %3254 = vperm.xlu0 %3253, %v2823
        %v3255 = vpop.permute.xlu0 %3254
        %3256 = vset.pattern.permute.xlu0 0
        %3257 = vperm.xlu0 %3256, %v2824
        %v3258 = vpop.permute.xlu0 %3257
        %3259 = vset.pattern.permute.xlu0 0
        %3260 = vperm.xlu0 %3259, %v2825
        %v3261 = vpop.permute.xlu0 %3260
        %3262 = vset.pattern.permute.xlu0 0
        %3263 = vperm.xlu0 %3262, %v2826
        %v3264 = vpop.permute.xlu0 %3263
        %3265 = vset.pattern.permute.xlu0 0
        %3266 = vperm.xlu0 %3265, %v2827
        %v3267 = vpop.permute.xlu0 %3266
        %3268 = vset.pattern.permute.xlu0 0
        %3269 = vperm.xlu0 %3268, %v2828
        %v3270 = vpop.permute.xlu0 %3269
        %3271 = vset.pattern.permute.xlu0 0
        %3272 = vperm.xlu0 %3271, %v2829
        %v3273 = vpop.permute.xlu0 %3272
        %3274 = vset.pattern.permute.xlu0 0
        %3275 = vperm.xlu0 %3274, %v2830
        %v3276 = vpop.permute.xlu0 %3275
        %3277 = vset.pattern.permute.xlu0 0
        %3278 = vperm.xlu0 %3277, %v2831
        %v3279 = vpop.permute.xlu0 %3278
        %3280 = vset.pattern.permute.xlu0 0
        %3281 = vperm.xlu0 %3280, %v2832
        %v3282 = vpop.permute.xlu0 %3281
        %3283 = vset.pattern.permute.xlu0 0
        %3284 = vperm.xlu0 %3283, %v2833
        %v3285 = vpop.permute.xlu0 %3284
        %3286 = vset.pattern.permute.xlu0 0
        %3287 = vperm.xlu0 %3286, %v2834
        %v3288 = vpop.permute.xlu0 %3287
        %3289 = vset.pattern.permute.xlu0 0
        %3290 = vperm.xlu0 %3289, %v2835
        %v3291 = vpop.permute.xlu0 %3290
        %3292 = vset.pattern.permute.xlu0 0
        %3293 = vperm.xlu0 %3292, %v2836
        %v3294 = vpop.permute.xlu0 %3293
        %3295 = vset.pattern.permute.xlu0 0
        %3296 = vperm.xlu0 %3295, %v2837
        %v3297 = vpop.permute.xlu0 %3296
        %3298 = vset.pattern.permute.xlu0 0
        %3299 = vperm.xlu0 %3298, %v2838
        %v3300 = vpop.permute.xlu0 %3299
        %3301 = vset.pattern.permute.xlu0 0
        %3302 = vperm.xlu0 %3301, %v2839
        %v3303 = vpop.permute.xlu0 %3302
        %3304 = vset.pattern.permute.xlu0 0
        %3305 = vperm.xlu0 %3304, %v2840
        %v3306 = vpop.permute.xlu0 %3305
        %3307 = vset.pattern.permute.xlu0 0
        %3308 = vperm.xlu0 %3307, %v2841
        %v3309 = vpop.permute.xlu0 %3308
        %3310 = vset.pattern.permute.xlu0 0
        %3311 = vperm.xlu0 %3310, %v2842
        %v3312 = vpop.permute.xlu0 %3311
        %3313 = vset.pattern.permute.xlu0 0
        %3314 = vperm.xlu0 %3313, %v2843
        %v3315 = vpop.permute.xlu0 %3314
        %3316 = vset.pattern.permute.xlu0 0
        %3317 = vperm.xlu0 %3316, %v2844
        %v3318 = vpop.permute.xlu0 %3317
        %3319 = vset.pattern.permute.xlu0 0
        %3320 = vperm.xlu0 %3319, %v2845
        %v3321 = vpop.permute.xlu0 %3320
        %3322 = vset.pattern.permute.xlu0 0
        %3323 = vperm.xlu0 %3322, %v2846
        %v3324 = vpop.permute.xlu0 %3323
        %3325 = vset.pattern.permute.xlu0 0
        %3326 = vperm.xlu0 %3325, %v2847
        %v3327 = vpop.permute.xlu0 %3326
        %3328 = vset.pattern.permute.xlu0 0
        %3329 = vperm.xlu0 %3328, %v2848
        %v3330 = vpop.permute.xlu0 %3329
        %3331 = vset.pattern.permute.xlu0 0
        %3332 = vperm.xlu0 %3331, %v2849
        %v3333 = vpop.permute.xlu0 %3332
        %3334 = vset.pattern.permute.xlu0 0
        %3335 = vperm.xlu0 %3334, %v2850
        %v3336 = vpop.permute.xlu0 %3335
        %3337 = vset.pattern.permute.xlu0 0
        %3338 = vperm.xlu0 %3337, %v2851
        %v3339 = vpop.permute.xlu0 %3338
        %3340 = vset.pattern.permute.xlu0 0
        %3341 = vperm.xlu0 %3340, %v2852
        %v3342 = vpop.permute.xlu0 %3341
        %3343 = vset.pattern.permute.xlu0 0
        %3344 = vperm.xlu0 %3343, %v2853
        %v3345 = vpop.permute.xlu0 %3344
        %3346 = vset.pattern.permute.xlu0 0
        %3347 = vperm.xlu0 %3346, %v2854
        %v3348 = vpop.permute.xlu0 %3347
        %3349 = vset.pattern.permute.xlu0 0
        %3350 = vperm.xlu0 %3349, %v2855
        %v3351 = vpop.permute.xlu0 %3350
        %3352 = vset.pattern.permute.xlu0 0
        %3353 = vperm.xlu0 %3352, %v2856
        %v3354 = vpop.permute.xlu0 %3353
        %3355 = vset.pattern.permute.xlu0 0
        %3356 = vperm.xlu0 %3355, %v2857
        %v3357 = vpop.permute.xlu0 %3356
        %3358 = vset.pattern.permute.xlu0 0
        %3359 = vperm.xlu0 %3358, %v2858
        %v3360 = vpop.permute.xlu0 %3359
        %3361 = vset.pattern.permute.xlu0 0
        %3362 = vperm.xlu0 %3361, %v2859
        %v3363 = vpop.permute.xlu0 %3362
        %3364 = vset.pattern.permute.xlu0 0
        %3365 = vperm.xlu0 %3364, %v2860
        %v3366 = vpop.permute.xlu0 %3365
        %3367 = vset.pattern.permute.xlu0 0
        %3368 = vperm.xlu0 %3367, %v2861
        %v3369 = vpop.permute.xlu0 %3368
        %3370 = vset.pattern.permute.xlu0 0
        %3371 = vperm.xlu0 %3370, %v2862
        %v3372 = vpop.permute.xlu0 %3371
        %3373 = vset.pattern.permute.xlu0 0
        %3374 = vperm.xlu0 %3373, %v2863
        %v3375 = vpop.permute.xlu0 %3374
        %v3376 = vlaneseq
        %v3377 = vand.u32 %v3376, 127
        %v3378 = vlaneseq
        %v3379 = vshrl.u32 %v3378, 7
        %v3380 = vsub.s32 %v3377, %v3379
        %v3381 = vrot.slane %v2994, %v3380
        %v3382 = vadd.s32 %v3377, 4294967288
        %v3383 = vlaneseq
        %v3384 = vshrl.u32 %v3383, 7
        %v3385 = vsub.s32 %v3382, %v3384
        %v3386 = vrot.slane %v2997, %v3385
        %vm3387 = vcmask 130112
        %v3388 = vsel %vm3387, %v3386, %v3381
        %v3389 = vadd.s32 %v3377, 4294967280
        %v3390 = vlaneseq
        %v3391 = vshrl.u32 %v3390, 7
        %v3392 = vsub.s32 %v3389, %v3391
        %v3393 = vrot.slane %v3000, %v3392
        %vm3394 = vcmask 195712
        %v3395 = vsel %vm3394, %v3393, %v3388
        %v3396 = vadd.s32 %v3377, 4294967272
        %v3397 = vlaneseq
        %v3398 = vshrl.u32 %v3397, 7
        %v3399 = vsub.s32 %v3396, %v3398
        %v3400 = vrot.slane %v3003, %v3399
        %vm3401 = vcmask 261312
        %v3402 = vsel %vm3401, %v3400, %v3395
        %v3403 = vadd.s32 %v3377, 4294967264
        %v3404 = vlaneseq
        %v3405 = vshrl.u32 %v3404, 7
        %v3406 = vsub.s32 %v3403, %v3405
        %v3407 = vrot.slane %v3006, %v3406
        %vm3408 = vcmask 326912
        %v3409 = vsel %vm3408, %v3407, %v3402
        %v3410 = vadd.s32 %v3377, 4294967256
        %v3411 = vlaneseq
        %v3412 = vshrl.u32 %v3411, 7
        %v3413 = vsub.s32 %v3410, %v3412
        %v3414 = vrot.slane %v3009, %v3413
        %vm3415 = vcmask 392512
        %v3416 = vsel %vm3415, %v3414, %v3409
        %v3417 = vadd.s32 %v3377, 4294967248
        %v3418 = vlaneseq
        %v3419 = vshrl.u32 %v3418, 7
        %v3420 = vsub.s32 %v3417, %v3419
        %v3421 = vrot.slane %v3012, %v3420
        %vm3422 = vcmask 458112
        %v3423 = vsel %vm3422, %v3421, %v3416
        %v3424 = vadd.s32 %v3377, 4294967240
        %v3425 = vlaneseq
        %v3426 = vshrl.u32 %v3425, 7
        %v3427 = vsub.s32 %v3424, %v3426
        %v3428 = vrot.slane %v3015, %v3427
        %vm3429 = vcmask 523712
        %v3430 = vsel %vm3429, %v3428, %v3423
        %v3431 = vlaneseq
        %v3432 = vshrl.u32 %v3431, 7
        %v3433 = vsub.s32 %v3377, %v3432
        %v3434 = vrot.slane %v3018, %v3433
        %v3435 = vlaneseq
        %v3436 = vshrl.u32 %v3435, 7
        %v3437 = vsub.s32 %v3382, %v3436
        %v3438 = vrot.slane %v3021, %v3437
        %v3439 = vsel %vm3387, %v3438, %v3434
        %v3440 = vlaneseq
        %v3441 = vshrl.u32 %v3440, 7
        %v3442 = vsub.s32 %v3389, %v3441
        %v3443 = vrot.slane %v3024, %v3442
        %v3444 = vsel %vm3394, %v3443, %v3439
        %v3445 = vlaneseq
        %v3446 = vshrl.u32 %v3445, 7
        %v3447 = vsub.s32 %v3396, %v3446
        %v3448 = vrot.slane %v3027, %v3447
        %v3449 = vsel %vm3401, %v3448, %v3444
        %v3450 = vlaneseq
        %v3451 = vshrl.u32 %v3450, 7
        %v3452 = vsub.s32 %v3403, %v3451
        %v3453 = vrot.slane %v3030, %v3452
        %v3454 = vsel %vm3408, %v3453, %v3449
        %v3455 = vlaneseq
        %v3456 = vshrl.u32 %v3455, 7
        %v3457 = vsub.s32 %v3410, %v3456
        %v3458 = vrot.slane %v3033, %v3457
        %v3459 = vsel %vm3415, %v3458, %v3454
        %v3460 = vlaneseq
        %v3461 = vshrl.u32 %v3460, 7
        %v3462 = vsub.s32 %v3417, %v3461
        %v3463 = vrot.slane %v3036, %v3462
        %v3464 = vsel %vm3422, %v3463, %v3459
        %v3465 = vlaneseq
        %v3466 = vshrl.u32 %v3465, 7
        %v3467 = vsub.s32 %v3424, %v3466
        %v3468 = vrot.slane %v3039, %v3467
        %v3469 = vsel %vm3429, %v3468, %v3464
        %v3470 = vlaneseq
        %v3471 = vshrl.u32 %v3470, 7
        %v3472 = vsub.s32 %v3377, %v3471
        %v3473 = vrot.slane %v3042, %v3472
        %v3474 = vlaneseq
        %v3475 = vshrl.u32 %v3474, 7
        %v3476 = vsub.s32 %v3382, %v3475
        %v3477 = vrot.slane %v3045, %v3476
        %v3478 = vsel %vm3387, %v3477, %v3473
        %v3479 = vlaneseq
        %v3480 = vshrl.u32 %v3479, 7
        %v3481 = vsub.s32 %v3389, %v3480
        %v3482 = vrot.slane %v3048, %v3481
        %v3483 = vsel %vm3394, %v3482, %v3478
        %v3484 = vlaneseq
        %v3485 = vshrl.u32 %v3484, 7
        %v3486 = vsub.s32 %v3396, %v3485
        %v3487 = vrot.slane %v3051, %v3486
        %v3488 = vsel %vm3401, %v3487, %v3483
        %v3489 = vlaneseq
        %v3490 = vshrl.u32 %v3489, 7
        %v3491 = vsub.s32 %v3403, %v3490
        %v3492 = vrot.slane %v3054, %v3491
        %v3493 = vsel %vm3408, %v3492, %v3488
        %v3494 = vlaneseq
        %v3495 = vshrl.u32 %v3494, 7
        %v3496 = vsub.s32 %v3410, %v3495
        %v3497 = vrot.slane %v3057, %v3496
        %v3498 = vsel %vm3415, %v3497, %v3493
        %v3499 = vlaneseq
        %v3500 = vshrl.u32 %v3499, 7
        %v3501 = vsub.s32 %v3417, %v3500
        %v3502 = vrot.slane %v3060, %v3501
        %v3503 = vsel %vm3422, %v3502, %v3498
        %v3504 = vlaneseq
        %v3505 = vshrl.u32 %v3504, 7
        %v3506 = vsub.s32 %v3424, %v3505
        %v3507 = vrot.slane %v3063, %v3506
        %v3508 = vsel %vm3429, %v3507, %v3503
        %v3509 = vlaneseq
        %v3510 = vshrl.u32 %v3509, 7
        %v3511 = vsub.s32 %v3377, %v3510
        %v3512 = vrot.slane %v3066, %v3511
        %v3513 = vlaneseq
        %v3514 = vshrl.u32 %v3513, 7
        %v3515 = vsub.s32 %v3382, %v3514
        %v3516 = vrot.slane %v3069, %v3515
        %v3517 = vsel %vm3387, %v3516, %v3512
        %v3518 = vlaneseq
        %v3519 = vshrl.u32 %v3518, 7
        %v3520 = vsub.s32 %v3389, %v3519
        %v3521 = vrot.slane %v3072, %v3520
        %v3522 = vsel %vm3394, %v3521, %v3517
        %v3523 = vlaneseq
        %v3524 = vshrl.u32 %v3523, 7
        %v3525 = vsub.s32 %v3396, %v3524
        %v3526 = vrot.slane %v3075, %v3525
        %v3527 = vsel %vm3401, %v3526, %v3522
        %v3528 = vlaneseq
        %v3529 = vshrl.u32 %v3528, 7
        %v3530 = vsub.s32 %v3403, %v3529
        %v3531 = vrot.slane %v3078, %v3530
        %v3532 = vsel %vm3408, %v3531, %v3527
        %v3533 = vlaneseq
        %v3534 = vshrl.u32 %v3533, 7
        %v3535 = vsub.s32 %v3410, %v3534
        %v3536 = vrot.slane %v3081, %v3535
        %v3537 = vsel %vm3415, %v3536, %v3532
        %v3538 = vlaneseq
        %v3539 = vshrl.u32 %v3538, 7
        %v3540 = vsub.s32 %v3417, %v3539
        %v3541 = vrot.slane %v3084, %v3540
        %v3542 = vsel %vm3422, %v3541, %v3537
        %v3543 = vlaneseq
        %v3544 = vshrl.u32 %v3543, 7
        %v3545 = vsub.s32 %v3424, %v3544
        %v3546 = vrot.slane %v3087, %v3545
        %v3547 = vsel %vm3429, %v3546, %v3542
        %v3548 = vlaneseq
        %v3549 = vshrl.u32 %v3548, 7
        %v3550 = vsub.s32 %v3377, %v3549
        %v3551 = vrot.slane %v3090, %v3550
        %v3552 = vlaneseq
        %v3553 = vshrl.u32 %v3552, 7
        %v3554 = vsub.s32 %v3382, %v3553
        %v3555 = vrot.slane %v3093, %v3554
        %v3556 = vsel %vm3387, %v3555, %v3551
        %v3557 = vlaneseq
        %v3558 = vshrl.u32 %v3557, 7
        %v3559 = vsub.s32 %v3389, %v3558
        %v3560 = vrot.slane %v3096, %v3559
        %v3561 = vsel %vm3394, %v3560, %v3556
        %v3562 = vlaneseq
        %v3563 = vshrl.u32 %v3562, 7
        %v3564 = vsub.s32 %v3396, %v3563
        %v3565 = vrot.slane %v3099, %v3564
        %v3566 = vsel %vm3401, %v3565, %v3561
        %v3567 = vlaneseq
        %v3568 = vshrl.u32 %v3567, 7
        %v3569 = vsub.s32 %v3403, %v3568
        %v3570 = vrot.slane %v3102, %v3569
        %v3571 = vsel %vm3408, %v3570, %v3566
        %v3572 = vlaneseq
        %v3573 = vshrl.u32 %v3572, 7
        %v3574 = vsub.s32 %v3410, %v3573
        %v3575 = vrot.slane %v3105, %v3574
        %v3576 = vsel %vm3415, %v3575, %v3571
        %v3577 = vlaneseq
        %v3578 = vshrl.u32 %v3577, 7
        %v3579 = vsub.s32 %v3417, %v3578
        %v3580 = vrot.slane %v3108, %v3579
        %v3581 = vsel %vm3422, %v3580, %v3576
        %v3582 = vlaneseq
        %v3583 = vshrl.u32 %v3582, 7
        %v3584 = vsub.s32 %v3424, %v3583
        %v3585 = vrot.slane %v3111, %v3584
        %v3586 = vsel %vm3429, %v3585, %v3581
        %v3587 = vlaneseq
        %v3588 = vshrl.u32 %v3587, 7
        %v3589 = vsub.s32 %v3377, %v3588
        %v3590 = vrot.slane %v3114, %v3589
        %v3591 = vlaneseq
        %v3592 = vshrl.u32 %v3591, 7
        %v3593 = vsub.s32 %v3382, %v3592
        %v3594 = vrot.slane %v3117, %v3593
        %v3595 = vsel %vm3387, %v3594, %v3590
        %v3596 = vlaneseq
        %v3597 = vshrl.u32 %v3596, 7
        %v3598 = vsub.s32 %v3389, %v3597
        %v3599 = vrot.slane %v3120, %v3598
        %v3600 = vsel %vm3394, %v3599, %v3595
        %v3601 = vlaneseq
        %v3602 = vshrl.u32 %v3601, 7
        %v3603 = vsub.s32 %v3396, %v3602
        %v3604 = vrot.slane %v3123, %v3603
        %v3605 = vsel %vm3401, %v3604, %v3600
        %v3606 = vlaneseq
        %v3607 = vshrl.u32 %v3606, 7
        %v3608 = vsub.s32 %v3403, %v3607
        %v3609 = vrot.slane %v3126, %v3608
        %v3610 = vsel %vm3408, %v3609, %v3605
        %v3611 = vlaneseq
        %v3612 = vshrl.u32 %v3611, 7
        %v3613 = vsub.s32 %v3410, %v3612
        %v3614 = vrot.slane %v3129, %v3613
        %v3615 = vsel %vm3415, %v3614, %v3610
        %v3616 = vlaneseq
        %v3617 = vshrl.u32 %v3616, 7
        %v3618 = vsub.s32 %v3417, %v3617
        %v3619 = vrot.slane %v3132, %v3618
        %v3620 = vsel %vm3422, %v3619, %v3615
        %v3621 = vlaneseq
        %v3622 = vshrl.u32 %v3621, 7
        %v3623 = vsub.s32 %v3424, %v3622
        %v3624 = vrot.slane %v3135, %v3623
        %v3625 = vsel %vm3429, %v3624, %v3620
        %v3626 = vlaneseq
        %v3627 = vshrl.u32 %v3626, 7
        %v3628 = vsub.s32 %v3377, %v3627
        %v3629 = vrot.slane %v3138, %v3628
        %v3630 = vlaneseq
        %v3631 = vshrl.u32 %v3630, 7
        %v3632 = vsub.s32 %v3382, %v3631
        %v3633 = vrot.slane %v3141, %v3632
        %v3634 = vsel %vm3387, %v3633, %v3629
        %v3635 = vlaneseq
        %v3636 = vshrl.u32 %v3635, 7
        %v3637 = vsub.s32 %v3389, %v3636
        %v3638 = vrot.slane %v3144, %v3637
        %v3639 = vsel %vm3394, %v3638, %v3634
        %v3640 = vlaneseq
        %v3641 = vshrl.u32 %v3640, 7
        %v3642 = vsub.s32 %v3396, %v3641
        %v3643 = vrot.slane %v3147, %v3642
        %v3644 = vsel %vm3401, %v3643, %v3639
        %v3645 = vlaneseq
        %v3646 = vshrl.u32 %v3645, 7
        %v3647 = vsub.s32 %v3403, %v3646
        %v3648 = vrot.slane %v3150, %v3647
        %v3649 = vsel %vm3408, %v3648, %v3644
        %v3650 = vlaneseq
        %v3651 = vshrl.u32 %v3650, 7
        %v3652 = vsub.s32 %v3410, %v3651
        %v3653 = vrot.slane %v3153, %v3652
        %v3654 = vsel %vm3415, %v3653, %v3649
        %v3655 = vlaneseq
        %v3656 = vshrl.u32 %v3655, 7
        %v3657 = vsub.s32 %v3417, %v3656
        %v3658 = vrot.slane %v3156, %v3657
        %v3659 = vsel %vm3422, %v3658, %v3654
        %v3660 = vlaneseq
        %v3661 = vshrl.u32 %v3660, 7
        %v3662 = vsub.s32 %v3424, %v3661
        %v3663 = vrot.slane %v3159, %v3662
        %v3664 = vsel %vm3429, %v3663, %v3659
        %v3665 = vlaneseq
        %v3666 = vshrl.u32 %v3665, 7
        %v3667 = vsub.s32 %v3377, %v3666
        %v3668 = vrot.slane %v3162, %v3667
        %v3669 = vlaneseq
        %v3670 = vshrl.u32 %v3669, 7
        %v3671 = vsub.s32 %v3382, %v3670
        %v3672 = vrot.slane %v3165, %v3671
        %v3673 = vsel %vm3387, %v3672, %v3668
        %v3674 = vlaneseq
        %v3675 = vshrl.u32 %v3674, 7
        %v3676 = vsub.s32 %v3389, %v3675
        %v3677 = vrot.slane %v3168, %v3676
        %v3678 = vsel %vm3394, %v3677, %v3673
        %v3679 = vlaneseq
        %v3680 = vshrl.u32 %v3679, 7
        %v3681 = vsub.s32 %v3396, %v3680
        %v3682 = vrot.slane %v3171, %v3681
        %v3683 = vsel %vm3401, %v3682, %v3678
        %v3684 = vlaneseq
        %v3685 = vshrl.u32 %v3684, 7
        %v3686 = vsub.s32 %v3403, %v3685
        %v3687 = vrot.slane %v3174, %v3686
        %v3688 = vsel %vm3408, %v3687, %v3683
        %v3689 = vlaneseq
        %v3690 = vshrl.u32 %v3689, 7
        %v3691 = vsub.s32 %v3410, %v3690
        %v3692 = vrot.slane %v3177, %v3691
        %v3693 = vsel %vm3415, %v3692, %v3688
        %v3694 = vlaneseq
        %v3695 = vshrl.u32 %v3694, 7
        %v3696 = vsub.s32 %v3417, %v3695
        %v3697 = vrot.slane %v3180, %v3696
        %v3698 = vsel %vm3422, %v3697, %v3693
        %v3699 = vlaneseq
        %v3700 = vshrl.u32 %v3699, 7
        %v3701 = vsub.s32 %v3424, %v3700
        %v3702 = vrot.slane %v3183, %v3701
        %v3703 = vsel %vm3429, %v3702, %v3698
        %v3704 = vlaneseq
        %v3705 = vshrl.u32 %v3704, 7
        %v3706 = vsub.s32 %v3377, %v3705
        %v3707 = vrot.slane %v3186, %v3706
        %v3708 = vlaneseq
        %v3709 = vshrl.u32 %v3708, 7
        %v3710 = vsub.s32 %v3382, %v3709
        %v3711 = vrot.slane %v3189, %v3710
        %v3712 = vsel %vm3387, %v3711, %v3707
        %v3713 = vlaneseq
        %v3714 = vshrl.u32 %v3713, 7
        %v3715 = vsub.s32 %v3389, %v3714
        %v3716 = vrot.slane %v3192, %v3715
        %v3717 = vsel %vm3394, %v3716, %v3712
        %v3718 = vlaneseq
        %v3719 = vshrl.u32 %v3718, 7
        %v3720 = vsub.s32 %v3396, %v3719
        %v3721 = vrot.slane %v3195, %v3720
        %v3722 = vsel %vm3401, %v3721, %v3717
        %v3723 = vlaneseq
        %v3724 = vshrl.u32 %v3723, 7
        %v3725 = vsub.s32 %v3403, %v3724
        %v3726 = vrot.slane %v3198, %v3725
        %v3727 = vsel %vm3408, %v3726, %v3722
        %v3728 = vlaneseq
        %v3729 = vshrl.u32 %v3728, 7
        %v3730 = vsub.s32 %v3410, %v3729
        %v3731 = vrot.slane %v3201, %v3730
        %v3732 = vsel %vm3415, %v3731, %v3727
        %v3733 = vlaneseq
        %v3734 = vshrl.u32 %v3733, 7
        %v3735 = vsub.s32 %v3417, %v3734
        %v3736 = vrot.slane %v3204, %v3735
        %v3737 = vsel %vm3422, %v3736, %v3732
        %v3738 = vlaneseq
        %v3739 = vshrl.u32 %v3738, 7
        %v3740 = vsub.s32 %v3424, %v3739
        %v3741 = vrot.slane %v3207, %v3740
        %v3742 = vsel %vm3429, %v3741, %v3737
        %v3743 = vlaneseq
        %v3744 = vshrl.u32 %v3743, 7
        %v3745 = vsub.s32 %v3377, %v3744
        %v3746 = vrot.slane %v3210, %v3745
        %v3747 = vlaneseq
        %v3748 = vshrl.u32 %v3747, 7
        %v3749 = vsub.s32 %v3382, %v3748
        %v3750 = vrot.slane %v3213, %v3749
        %v3751 = vsel %vm3387, %v3750, %v3746
        %v3752 = vlaneseq
        %v3753 = vshrl.u32 %v3752, 7
        %v3754 = vsub.s32 %v3389, %v3753
        %v3755 = vrot.slane %v3216, %v3754
        %v3756 = vsel %vm3394, %v3755, %v3751
        %v3757 = vlaneseq
        %v3758 = vshrl.u32 %v3757, 7
        %v3759 = vsub.s32 %v3396, %v3758
        %v3760 = vrot.slane %v3219, %v3759
        %v3761 = vsel %vm3401, %v3760, %v3756
        %v3762 = vlaneseq
        %v3763 = vshrl.u32 %v3762, 7
        %v3764 = vsub.s32 %v3403, %v3763
        %v3765 = vrot.slane %v3222, %v3764
        %v3766 = vsel %vm3408, %v3765, %v3761
        %v3767 = vlaneseq
        %v3768 = vshrl.u32 %v3767, 7
        %v3769 = vsub.s32 %v3410, %v3768
        %v3770 = vrot.slane %v3225, %v3769
        %v3771 = vsel %vm3415, %v3770, %v3766
        %v3772 = vlaneseq
        %v3773 = vshrl.u32 %v3772, 7
        %v3774 = vsub.s32 %v3417, %v3773
        %v3775 = vrot.slane %v3228, %v3774
        %v3776 = vsel %vm3422, %v3775, %v3771
        %v3777 = vlaneseq
        %v3778 = vshrl.u32 %v3777, 7
        %v3779 = vsub.s32 %v3424, %v3778
        %v3780 = vrot.slane %v3231, %v3779
        %v3781 = vsel %vm3429, %v3780, %v3776
        %v3782 = vlaneseq
        %v3783 = vshrl.u32 %v3782, 7
        %v3784 = vsub.s32 %v3377, %v3783
        %v3785 = vrot.slane %v3234, %v3784
        %v3786 = vlaneseq
        %v3787 = vshrl.u32 %v3786, 7
        %v3788 = vsub.s32 %v3382, %v3787
        %v3789 = vrot.slane %v3237, %v3788
        %v3790 = vsel %vm3387, %v3789, %v3785
        %v3791 = vlaneseq
        %v3792 = vshrl.u32 %v3791, 7
        %v3793 = vsub.s32 %v3389, %v3792
        %v3794 = vrot.slane %v3240, %v3793
        %v3795 = vsel %vm3394, %v3794, %v3790
        %v3796 = vlaneseq
        %v3797 = vshrl.u32 %v3796, 7
        %v3798 = vsub.s32 %v3396, %v3797
        %v3799 = vrot.slane %v3243, %v3798
        %v3800 = vsel %vm3401, %v3799, %v3795
        %v3801 = vlaneseq
        %v3802 = vshrl.u32 %v3801, 7
        %v3803 = vsub.s32 %v3403, %v3802
        %v3804 = vrot.slane %v3246, %v3803
        %v3805 = vsel %vm3408, %v3804, %v3800
        %v3806 = vlaneseq
        %v3807 = vshrl.u32 %v3806, 7
        %v3808 = vsub.s32 %v3410, %v3807
        %v3809 = vrot.slane %v3249, %v3808
        %v3810 = vsel %vm3415, %v3809, %v3805
        %v3811 = vlaneseq
        %v3812 = vshrl.u32 %v3811, 7
        %v3813 = vsub.s32 %v3417, %v3812
        %v3814 = vrot.slane %v3252, %v3813
        %v3815 = vsel %vm3422, %v3814, %v3810
        %v3816 = vlaneseq
        %v3817 = vshrl.u32 %v3816, 7
        %v3818 = vsub.s32 %v3424, %v3817
        %v3819 = vrot.slane %v3255, %v3818
        %v3820 = vsel %vm3429, %v3819, %v3815
        %v3821 = vlaneseq
        %v3822 = vshrl.u32 %v3821, 7
        %v3823 = vsub.s32 %v3377, %v3822
        %v3824 = vrot.slane %v3258, %v3823
        %v3825 = vlaneseq
        %v3826 = vshrl.u32 %v3825, 7
        %v3827 = vsub.s32 %v3382, %v3826
        %v3828 = vrot.slane %v3261, %v3827
        %v3829 = vsel %vm3387, %v3828, %v3824
        %v3830 = vlaneseq
        %v3831 = vshrl.u32 %v3830, 7
        %v3832 = vsub.s32 %v3389, %v3831
        %v3833 = vrot.slane %v3264, %v3832
        %v3834 = vsel %vm3394, %v3833, %v3829
        %v3835 = vlaneseq
        %v3836 = vshrl.u32 %v3835, 7
        %v3837 = vsub.s32 %v3396, %v3836
        %v3838 = vrot.slane %v3267, %v3837
        %v3839 = vsel %vm3401, %v3838, %v3834
        %v3840 = vlaneseq
        %v3841 = vshrl.u32 %v3840, 7
        %v3842 = vsub.s32 %v3403, %v3841
        %v3843 = vrot.slane %v3270, %v3842
        %v3844 = vsel %vm3408, %v3843, %v3839
        %v3845 = vlaneseq
        %v3846 = vshrl.u32 %v3845, 7
        %v3847 = vsub.s32 %v3410, %v3846
        %v3848 = vrot.slane %v3273, %v3847
        %v3849 = vsel %vm3415, %v3848, %v3844
        %v3850 = vlaneseq
        %v3851 = vshrl.u32 %v3850, 7
        %v3852 = vsub.s32 %v3417, %v3851
        %v3853 = vrot.slane %v3276, %v3852
        %v3854 = vsel %vm3422, %v3853, %v3849
        %v3855 = vlaneseq
        %v3856 = vshrl.u32 %v3855, 7
        %v3857 = vsub.s32 %v3424, %v3856
        %v3858 = vrot.slane %v3279, %v3857
        %v3859 = vsel %vm3429, %v3858, %v3854
        %v3860 = vlaneseq
        %v3861 = vshrl.u32 %v3860, 7
        %v3862 = vsub.s32 %v3377, %v3861
        %v3863 = vrot.slane %v3282, %v3862
        %v3864 = vlaneseq
        %v3865 = vshrl.u32 %v3864, 7
        %v3866 = vsub.s32 %v3382, %v3865
        %v3867 = vrot.slane %v3285, %v3866
        %v3868 = vsel %vm3387, %v3867, %v3863
        %v3869 = vlaneseq
        %v3870 = vshrl.u32 %v3869, 7
        %v3871 = vsub.s32 %v3389, %v3870
        %v3872 = vrot.slane %v3288, %v3871
        %v3873 = vsel %vm3394, %v3872, %v3868
        %v3874 = vlaneseq
        %v3875 = vshrl.u32 %v3874, 7
        %v3876 = vsub.s32 %v3396, %v3875
        %v3877 = vrot.slane %v3291, %v3876
        %v3878 = vsel %vm3401, %v3877, %v3873
        %v3879 = vlaneseq
        %v3880 = vshrl.u32 %v3879, 7
        %v3881 = vsub.s32 %v3403, %v3880
        %v3882 = vrot.slane %v3294, %v3881
        %v3883 = vsel %vm3408, %v3882, %v3878
        %v3884 = vlaneseq
        %v3885 = vshrl.u32 %v3884, 7
        %v3886 = vsub.s32 %v3410, %v3885
        %v3887 = vrot.slane %v3297, %v3886
        %v3888 = vsel %vm3415, %v3887, %v3883
        %v3889 = vlaneseq
        %v3890 = vshrl.u32 %v3889, 7
        %v3891 = vsub.s32 %v3417, %v3890
        %v3892 = vrot.slane %v3300, %v3891
        %v3893 = vsel %vm3422, %v3892, %v3888
        %v3894 = vlaneseq
        %v3895 = vshrl.u32 %v3894, 7
        %v3896 = vsub.s32 %v3424, %v3895
        %v3897 = vrot.slane %v3303, %v3896
        %v3898 = vsel %vm3429, %v3897, %v3893
        %v3899 = vlaneseq
        %v3900 = vshrl.u32 %v3899, 7
        %v3901 = vsub.s32 %v3377, %v3900
        %v3902 = vrot.slane %v3306, %v3901
        %v3903 = vlaneseq
        %v3904 = vshrl.u32 %v3903, 7
        %v3905 = vsub.s32 %v3382, %v3904
        %v3906 = vrot.slane %v3309, %v3905
        %v3907 = vsel %vm3387, %v3906, %v3902
        %v3908 = vlaneseq
        %v3909 = vshrl.u32 %v3908, 7
        %v3910 = vsub.s32 %v3389, %v3909
        %v3911 = vrot.slane %v3312, %v3910
        %v3912 = vsel %vm3394, %v3911, %v3907
        %v3913 = vlaneseq
        %v3914 = vshrl.u32 %v3913, 7
        %v3915 = vsub.s32 %v3396, %v3914
        %v3916 = vrot.slane %v3315, %v3915
        %v3917 = vsel %vm3401, %v3916, %v3912
        %v3918 = vlaneseq
        %v3919 = vshrl.u32 %v3918, 7
        %v3920 = vsub.s32 %v3403, %v3919
        %v3921 = vrot.slane %v3318, %v3920
        %v3922 = vsel %vm3408, %v3921, %v3917
        %v3923 = vlaneseq
        %v3924 = vshrl.u32 %v3923, 7
        %v3925 = vsub.s32 %v3410, %v3924
        %v3926 = vrot.slane %v3321, %v3925
        %v3927 = vsel %vm3415, %v3926, %v3922
        %v3928 = vlaneseq
        %v3929 = vshrl.u32 %v3928, 7
        %v3930 = vsub.s32 %v3417, %v3929
        %v3931 = vrot.slane %v3324, %v3930
        %v3932 = vsel %vm3422, %v3931, %v3927
        %v3933 = vlaneseq
        %v3934 = vshrl.u32 %v3933, 7
        %v3935 = vsub.s32 %v3424, %v3934
        %v3936 = vrot.slane %v3327, %v3935
        %v3937 = vsel %vm3429, %v3936, %v3932
        %v3938 = vlaneseq
        %v3939 = vshrl.u32 %v3938, 7
        %v3940 = vsub.s32 %v3377, %v3939
        %v3941 = vrot.slane %v3330, %v3940
        %v3942 = vlaneseq
        %v3943 = vshrl.u32 %v3942, 7
        %v3944 = vsub.s32 %v3382, %v3943
        %v3945 = vrot.slane %v3333, %v3944
        %v3946 = vsel %vm3387, %v3945, %v3941
        %v3947 = vlaneseq
        %v3948 = vshrl.u32 %v3947, 7
        %v3949 = vsub.s32 %v3389, %v3948
        %v3950 = vrot.slane %v3336, %v3949
        %v3951 = vsel %vm3394, %v3950, %v3946
        %v3952 = vlaneseq
        %v3953 = vshrl.u32 %v3952, 7
        %v3954 = vsub.s32 %v3396, %v3953
        %v3955 = vrot.slane %v3339, %v3954
        %v3956 = vsel %vm3401, %v3955, %v3951
        %v3957 = vlaneseq
        %v3958 = vshrl.u32 %v3957, 7
        %v3959 = vsub.s32 %v3403, %v3958
        %v3960 = vrot.slane %v3342, %v3959
        %v3961 = vsel %vm3408, %v3960, %v3956
        %v3962 = vlaneseq
        %v3963 = vshrl.u32 %v3962, 7
        %v3964 = vsub.s32 %v3410, %v3963
        %v3965 = vrot.slane %v3345, %v3964
        %v3966 = vsel %vm3415, %v3965, %v3961
        %v3967 = vlaneseq
        %v3968 = vshrl.u32 %v3967, 7
        %v3969 = vsub.s32 %v3417, %v3968
        %v3970 = vrot.slane %v3348, %v3969
        %v3971 = vsel %vm3422, %v3970, %v3966
        %v3972 = vlaneseq
        %v3973 = vshrl.u32 %v3972, 7
        %v3974 = vsub.s32 %v3424, %v3973
        %v3975 = vrot.slane %v3351, %v3974
        %v3976 = vsel %vm3429, %v3975, %v3971
        %v3977 = vlaneseq
        %v3978 = vshrl.u32 %v3977, 7
        %v3979 = vsub.s32 %v3377, %v3978
        %v3980 = vrot.slane %v3354, %v3979
        %v3981 = vlaneseq
        %v3982 = vshrl.u32 %v3981, 7
        %v3983 = vsub.s32 %v3382, %v3982
        %v3984 = vrot.slane %v3357, %v3983
        %v3985 = vsel %vm3387, %v3984, %v3980
        %v3986 = vlaneseq
        %v3987 = vshrl.u32 %v3986, 7
        %v3988 = vsub.s32 %v3389, %v3987
        %v3989 = vrot.slane %v3360, %v3988
        %v3990 = vsel %vm3394, %v3989, %v3985
        %v3991 = vlaneseq
        %v3992 = vshrl.u32 %v3991, 7
        %v3993 = vsub.s32 %v3396, %v3992
        %v3994 = vrot.slane %v3363, %v3993
        %v3995 = vsel %vm3401, %v3994, %v3990
        %v3996 = vlaneseq
        %v3997 = vshrl.u32 %v3996, 7
        %v3998 = vsub.s32 %v3403, %v3997
        %v3999 = vrot.slane %v3366, %v3998
        %v4000 = vsel %vm3408, %v3999, %v3995
        %v4001 = vlaneseq
        %v4002 = vshrl.u32 %v4001, 7
        %v4003 = vsub.s32 %v3410, %v4002
        %v4004 = vrot.slane %v3369, %v4003
        %v4005 = vsel %vm3415, %v4004, %v4000
        %v4006 = vlaneseq
        %v4007 = vshrl.u32 %v4006, 7
        %v4008 = vsub.s32 %v3417, %v4007
        %v4009 = vrot.slane %v3372, %v4008
        %v4010 = vsel %vm3422, %v4009, %v4005
        %v4011 = vlaneseq
        %v4012 = vshrl.u32 %v4011, 7
        %v4013 = vsub.s32 %v3424, %v4012
        %v4014 = vrot.slane %v3375, %v4013
        %v4015 = vsel %vm3429, %v4014, %v4010
        %vm4016 = vcmask 1041409
        %v4017 = vsel %vm4016, %v3469, %v3430
        %vm4018 = vcmask 1042434
        %v4019 = vsel %vm4018, %v3508, %v4017
        %vm4020 = vcmask 1043459
        %v4021 = vsel %vm4020, %v3547, %v4019
        %vm4022 = vcmask 1044484
        %v4023 = vsel %vm4022, %v3586, %v4021
        %vm4024 = vcmask 1045509
        %v4025 = vsel %vm4024, %v3625, %v4023
        %vm4026 = vcmask 1046534
        %v4027 = vsel %vm4026, %v3664, %v4025
        %vm4028 = vcmask 1047559
        %v4029 = vsel %vm4028, %v3703, %v4027
        %v4030 = vsel %vm4016, %v3781, %v3742
        %v4031 = vsel %vm4018, %v3820, %v4030
        %v4032 = vsel %vm4020, %v3859, %v4031
        %v4033 = vsel %vm4022, %v3898, %v4032
        %v4034 = vsel %vm4024, %v3937, %v4033
        %v4035 = vsel %vm4026, %v3976, %v4034
        %v4036 = vsel %vm4028, %v4015, %v4035
        %4039 = vst.msk [vmem:[%s1259] sm:$0xff] %vm1661, %v4029
        %4040 = vst.msk [vmem:[%s1259 + $0x8] sm:$0xff] %vm1661, %v4036
        %s4041 = scalar_lea.vmem %s1228, 1024 [#allocation2]
        %v4042 = vld [vmem:[%s4041] sm:$0xff]
        %v4043 = vld [vmem:[%s4041 + $0x8] sm:$0xff]
        %v4044 = vld [vmem:[%s4041 + $0x10] sm:$0xff]
        %v4045 = vld [vmem:[%s4041 + $0x18] sm:$0xff]
        %v4046 = vld [vmem:[%s4041 + $0x20] sm:$0xff]
        %v4047 = vld [vmem:[%s4041 + $0x28] sm:$0xff]
        %v4048 = vld [vmem:[%s4041 + $0x30] sm:$0xff]
        %v4049 = vld [vmem:[%s4041 + $0x38] sm:$0xff]
        %v4050 = vld [vmem:[%s4041 + $0x40] sm:$0xff]
        %v4051 = vld [vmem:[%s4041 + $0x48] sm:$0xff]
        %v4052 = vld [vmem:[%s4041 + $0x50] sm:$0xff]
        %v4053 = vld [vmem:[%s4041 + $0x58] sm:$0xff]
        %v4054 = vld [vmem:[%s4041 + $0x60] sm:$0xff]
        %v4055 = vld [vmem:[%s4041 + $0x68] sm:$0xff]
        %v4056 = vld [vmem:[%s4041 + $0x70] sm:$0xff]
        %v4057 = vld [vmem:[%s4041 + $0x78] sm:$0xff]
        %v4058 = vld [vmem:[%s4041 + $0x80] sm:$0xff]
        %v4059 = vld [vmem:[%s4041 + $0x88] sm:$0xff]
        %v4060 = vld [vmem:[%s4041 + $0x90] sm:$0xff]
        %v4061 = vld [vmem:[%s4041 + $0x98] sm:$0xff]
        %v4062 = vld [vmem:[%s4041 + $0xa0] sm:$0xff]
        %v4063 = vld [vmem:[%s4041 + $0xa8] sm:$0xff]
        %v4064 = vld [vmem:[%s4041 + $0xb0] sm:$0xff]
        %v4065 = vld [vmem:[%s4041 + $0xb8] sm:$0xff]
        %v4066 = vld [vmem:[%s4041 + $0xc0] sm:$0xff]
        %v4067 = vld [vmem:[%s4041 + $0xc8] sm:$0xff]
        %v4068 = vld [vmem:[%s4041 + $0xd0] sm:$0xff]
        %v4069 = vld [vmem:[%s4041 + $0xd8] sm:$0xff]
        %v4070 = vld [vmem:[%s4041 + $0xe0] sm:$0xff]
        %v4071 = vld [vmem:[%s4041 + $0xe8] sm:$0xff]
        %v4072 = vld [vmem:[%s4041 + $0xf0] sm:$0xff]
        %v4073 = vld [vmem:[%s4041 + $0xf8] sm:$0xff]
        %v4074 = vld [vmem:[%s4041 + $0x100] sm:$0xff]
        %v4075 = vld [vmem:[%s4041 + $0x108] sm:$0xff]
        %v4076 = vld [vmem:[%s4041 + $0x110] sm:$0xff]
        %v4077 = vld [vmem:[%s4041 + $0x118] sm:$0xff]
        %v4078 = vld [vmem:[%s4041 + $0x120] sm:$0xff]
        %v4079 = vld [vmem:[%s4041 + $0x128] sm:$0xff]
        %v4080 = vld [vmem:[%s4041 + $0x130] sm:$0xff]
        %v4081 = vld [vmem:[%s4041 + $0x138] sm:$0xff]
        %v4082 = vld [vmem:[%s4041 + $0x140] sm:$0xff]
        %v4083 = vld [vmem:[%s4041 + $0x148] sm:$0xff]
        %v4084 = vld [vmem:[%s4041 + $0x150] sm:$0xff]
        %v4085 = vld [vmem:[%s4041 + $0x158] sm:$0xff]
        %v4086 = vld [vmem:[%s4041 + $0x160] sm:$0xff]
        %v4087 = vld [vmem:[%s4041 + $0x168] sm:$0xff]
        %v4088 = vld [vmem:[%s4041 + $0x170] sm:$0xff]
        %v4089 = vld [vmem:[%s4041 + $0x178] sm:$0xff]
        %v4090 = vld [vmem:[%s4041 + $0x180] sm:$0xff]
        %v4091 = vld [vmem:[%s4041 + $0x188] sm:$0xff]
        %v4092 = vld [vmem:[%s4041 + $0x190] sm:$0xff]
        %v4093 = vld [vmem:[%s4041 + $0x198] sm:$0xff]
        %v4094 = vld [vmem:[%s4041 + $0x1a0] sm:$0xff]
        %v4095 = vld [vmem:[%s4041 + $0x1a8] sm:$0xff]
        %v4096 = vld [vmem:[%s4041 + $0x1b0] sm:$0xff]
        %v4097 = vld [vmem:[%s4041 + $0x1b8] sm:$0xff]
        %v4098 = vld [vmem:[%s4041 + $0x1c0] sm:$0xff]
        %v4099 = vld [vmem:[%s4041 + $0x1c8] sm:$0xff]
        %v4100 = vld [vmem:[%s4041 + $0x1d0] sm:$0xff]
        %v4101 = vld [vmem:[%s4041 + $0x1d8] sm:$0xff]
        %v4102 = vld [vmem:[%s4041 + $0x1e0] sm:$0xff]
        %v4103 = vld [vmem:[%s4041 + $0x1e8] sm:$0xff]
        %v4104 = vld [vmem:[%s4041 + $0x1f0] sm:$0xff]
        %v4105 = vld [vmem:[%s4041 + $0x1f8] sm:$0xff]
        %v4106 = vld [vmem:[%s4041 + $0x200] sm:$0xff]
        %v4107 = vld [vmem:[%s4041 + $0x208] sm:$0xff]
        %v4108 = vld [vmem:[%s4041 + $0x210] sm:$0xff]
        %v4109 = vld [vmem:[%s4041 + $0x218] sm:$0xff]
        %v4110 = vld [vmem:[%s4041 + $0x220] sm:$0xff]
        %v4111 = vld [vmem:[%s4041 + $0x228] sm:$0xff]
        %v4112 = vld [vmem:[%s4041 + $0x230] sm:$0xff]
        %v4113 = vld [vmem:[%s4041 + $0x238] sm:$0xff]
        %v4114 = vld [vmem:[%s4041 + $0x240] sm:$0xff]
        %v4115 = vld [vmem:[%s4041 + $0x248] sm:$0xff]
        %v4116 = vld [vmem:[%s4041 + $0x250] sm:$0xff]
        %v4117 = vld [vmem:[%s4041 + $0x258] sm:$0xff]
        %v4118 = vld [vmem:[%s4041 + $0x260] sm:$0xff]
        %v4119 = vld [vmem:[%s4041 + $0x268] sm:$0xff]
        %v4120 = vld [vmem:[%s4041 + $0x270] sm:$0xff]
        %v4121 = vld [vmem:[%s4041 + $0x278] sm:$0xff]
        %v4122 = vld [vmem:[%s4041 + $0x280] sm:$0xff]
        %v4123 = vld [vmem:[%s4041 + $0x288] sm:$0xff]
        %v4124 = vld [vmem:[%s4041 + $0x290] sm:$0xff]
        %v4125 = vld [vmem:[%s4041 + $0x298] sm:$0xff]
        %v4126 = vld [vmem:[%s4041 + $0x2a0] sm:$0xff]
        %v4127 = vld [vmem:[%s4041 + $0x2a8] sm:$0xff]
        %v4128 = vld [vmem:[%s4041 + $0x2b0] sm:$0xff]
        %v4129 = vld [vmem:[%s4041 + $0x2b8] sm:$0xff]
        %v4130 = vld [vmem:[%s4041 + $0x2c0] sm:$0xff]
        %v4131 = vld [vmem:[%s4041 + $0x2c8] sm:$0xff]
        %v4132 = vld [vmem:[%s4041 + $0x2d0] sm:$0xff]
        %v4133 = vld [vmem:[%s4041 + $0x2d8] sm:$0xff]
        %v4134 = vld [vmem:[%s4041 + $0x2e0] sm:$0xff]
        %v4135 = vld [vmem:[%s4041 + $0x2e8] sm:$0xff]
        %v4136 = vld [vmem:[%s4041 + $0x2f0] sm:$0xff]
        %v4137 = vld [vmem:[%s4041 + $0x2f8] sm:$0xff]
        %v4138 = vld [vmem:[%s4041 + $0x300] sm:$0xff]
        %v4139 = vld [vmem:[%s4041 + $0x308] sm:$0xff]
        %v4140 = vld [vmem:[%s4041 + $0x310] sm:$0xff]
        %v4141 = vld [vmem:[%s4041 + $0x318] sm:$0xff]
        %v4142 = vld [vmem:[%s4041 + $0x320] sm:$0xff]
        %v4143 = vld [vmem:[%s4041 + $0x328] sm:$0xff]
        %v4144 = vld [vmem:[%s4041 + $0x330] sm:$0xff]
        %v4145 = vld [vmem:[%s4041 + $0x338] sm:$0xff]
        %v4146 = vld [vmem:[%s4041 + $0x340] sm:$0xff]
        %v4147 = vld [vmem:[%s4041 + $0x348] sm:$0xff]
        %v4148 = vld [vmem:[%s4041 + $0x350] sm:$0xff]
        %v4149 = vld [vmem:[%s4041 + $0x358] sm:$0xff]
        %v4150 = vld [vmem:[%s4041 + $0x360] sm:$0xff]
        %v4151 = vld [vmem:[%s4041 + $0x368] sm:$0xff]
        %v4152 = vld [vmem:[%s4041 + $0x370] sm:$0xff]
        %v4153 = vld [vmem:[%s4041 + $0x378] sm:$0xff]
        %v4154 = vld [vmem:[%s4041 + $0x380] sm:$0xff]
        %v4155 = vld [vmem:[%s4041 + $0x388] sm:$0xff]
        %v4156 = vld [vmem:[%s4041 + $0x390] sm:$0xff]
        %v4157 = vld [vmem:[%s4041 + $0x398] sm:$0xff]
        %v4158 = vld [vmem:[%s4041 + $0x3a0] sm:$0xff]
        %v4159 = vld [vmem:[%s4041 + $0x3a8] sm:$0xff]
        %v4160 = vld [vmem:[%s4041 + $0x3b0] sm:$0xff]
        %v4161 = vld [vmem:[%s4041 + $0x3b8] sm:$0xff]
        %v4162 = vld [vmem:[%s4041 + $0x3c0] sm:$0xff]
        %v4163 = vld [vmem:[%s4041 + $0x3c8] sm:$0xff]
        %v4164 = vld [vmem:[%s4041 + $0x3d0] sm:$0xff]
        %v4165 = vld [vmem:[%s4041 + $0x3d8] sm:$0xff]
        %v4166 = vld [vmem:[%s4041 + $0x3e0] sm:$0xff]
        %v4167 = vld [vmem:[%s4041 + $0x3e8] sm:$0xff]
        %v4168 = vld [vmem:[%s4041 + $0x3f0] sm:$0xff]
        %v4169 = vld [vmem:[%s4041 + $0x3f8] sm:$0xff]
        %v4170 = vmul.f32 %v4042, %v1275
        %v4171 = vmul.f32 %v4043, %v1276
        %v4172 = vmul.f32 %v4044, %v1277
        %v4173 = vmul.f32 %v4045, %v1278
        %v4174 = vmul.f32 %v4046, %v1279
        %v4175 = vmul.f32 %v4047, %v1280
        %v4176 = vmul.f32 %v4048, %v1281
        %v4177 = vmul.f32 %v4049, %v1282
        %v4178 = vmul.f32 %v4050, %v1283
        %v4179 = vmul.f32 %v4051, %v1284
        %v4180 = vmul.f32 %v4052, %v1285
        %v4181 = vmul.f32 %v4053, %v1286
        %v4182 = vmul.f32 %v4054, %v1287
        %v4183 = vmul.f32 %v4055, %v1288
        %v4184 = vmul.f32 %v4056, %v1289
        %v4185 = vmul.f32 %v4057, %v1290
        %v4186 = vmul.f32 %v4058, %v1291
        %v4187 = vmul.f32 %v4059, %v1292
        %v4188 = vmul.f32 %v4060, %v1293
        %v4189 = vmul.f32 %v4061, %v1294
        %v4190 = vmul.f32 %v4062, %v1295
        %v4191 = vmul.f32 %v4063, %v1296
        %v4192 = vmul.f32 %v4064, %v1297
        %v4193 = vmul.f32 %v4065, %v1298
        %v4194 = vmul.f32 %v4066, %v1299
        %v4195 = vmul.f32 %v4067, %v1300
        %v4196 = vmul.f32 %v4068, %v1301
        %v4197 = vmul.f32 %v4069, %v1302
        %v4198 = vmul.f32 %v4070, %v1303
        %v4199 = vmul.f32 %v4071, %v1304
        %v4200 = vmul.f32 %v4072, %v1305
        %v4201 = vmul.f32 %v4073, %v1306
        %v4202 = vmul.f32 %v4074, %v1307
        %v4203 = vmul.f32 %v4075, %v1308
        %v4204 = vmul.f32 %v4076, %v1309
        %v4205 = vmul.f32 %v4077, %v1310
        %v4206 = vmul.f32 %v4078, %v1311
        %v4207 = vmul.f32 %v4079, %v1312
        %v4208 = vmul.f32 %v4080, %v1313
        %v4209 = vmul.f32 %v4081, %v1314
        %v4210 = vmul.f32 %v4082, %v1315
        %v4211 = vmul.f32 %v4083, %v1316
        %v4212 = vmul.f32 %v4084, %v1317
        %v4213 = vmul.f32 %v4085, %v1318
        %v4214 = vmul.f32 %v4086, %v1319
        %v4215 = vmul.f32 %v4087, %v1320
        %v4216 = vmul.f32 %v4088, %v1321
        %v4217 = vmul.f32 %v4089, %v1322
        %v4218 = vmul.f32 %v4090, %v1323
        %v4219 = vmul.f32 %v4091, %v1324
        %v4220 = vmul.f32 %v4092, %v1325
        %v4221 = vmul.f32 %v4093, %v1326
        %v4222 = vmul.f32 %v4094, %v1327
        %v4223 = vmul.f32 %v4095, %v1328
        %v4224 = vmul.f32 %v4096, %v1329
        %v4225 = vmul.f32 %v4097, %v1330
        %v4226 = vmul.f32 %v4098, %v1331
        %v4227 = vmul.f32 %v4099, %v1332
        %v4228 = vmul.f32 %v4100, %v1333
        %v4229 = vmul.f32 %v4101, %v1334
        %v4230 = vmul.f32 %v4102, %v1335
        %v4231 = vmul.f32 %v4103, %v1336
        %v4232 = vmul.f32 %v4104, %v1337
        %v4233 = vmul.f32 %v4105, %v1338
        %v4234 = vmul.f32 %v4106, %v1339
        %v4235 = vmul.f32 %v4107, %v1340
        %v4236 = vmul.f32 %v4108, %v1341
        %v4237 = vmul.f32 %v4109, %v1342
        %v4238 = vmul.f32 %v4110, %v1343
        %v4239 = vmul.f32 %v4111, %v1344
        %v4240 = vmul.f32 %v4112, %v1345
        %v4241 = vmul.f32 %v4113, %v1346
        %v4242 = vmul.f32 %v4114, %v1347
        %v4243 = vmul.f32 %v4115, %v1348
        %v4244 = vmul.f32 %v4116, %v1349
        %v4245 = vmul.f32 %v4117, %v1350
        %v4246 = vmul.f32 %v4118, %v1351
        %v4247 = vmul.f32 %v4119, %v1352
        %v4248 = vmul.f32 %v4120, %v1353
        %v4249 = vmul.f32 %v4121, %v1354
        %v4250 = vmul.f32 %v4122, %v1355
        %v4251 = vmul.f32 %v4123, %v1356
        %v4252 = vmul.f32 %v4124, %v1357
        %v4253 = vmul.f32 %v4125, %v1358
        %v4254 = vmul.f32 %v4126, %v1359
        %v4255 = vmul.f32 %v4127, %v1360
        %v4256 = vmul.f32 %v4128, %v1361
        %v4257 = vmul.f32 %v4129, %v1362
        %v4258 = vmul.f32 %v4130, %v1363
        %v4259 = vmul.f32 %v4131, %v1364
        %v4260 = vmul.f32 %v4132, %v1365
        %v4261 = vmul.f32 %v4133, %v1366
        %v4262 = vmul.f32 %v4134, %v1367
        %v4263 = vmul.f32 %v4135, %v1368
        %v4264 = vmul.f32 %v4136, %v1369
        %v4265 = vmul.f32 %v4137, %v1370
        %v4266 = vmul.f32 %v4138, %v1371
        %v4267 = vmul.f32 %v4139, %v1372
        %v4268 = vmul.f32 %v4140, %v1373
        %v4269 = vmul.f32 %v4141, %v1374
        %v4270 = vmul.f32 %v4142, %v1375
        %v4271 = vmul.f32 %v4143, %v1376
        %v4272 = vmul.f32 %v4144, %v1377
        %v4273 = vmul.f32 %v4145, %v1378
        %v4274 = vmul.f32 %v4146, %v1379
        %v4275 = vmul.f32 %v4147, %v1380
        %v4276 = vmul.f32 %v4148, %v1381
        %v4277 = vmul.f32 %v4149, %v1382
        %v4278 = vmul.f32 %v4150, %v1383
        %v4279 = vmul.f32 %v4151, %v1384
        %v4280 = vmul.f32 %v4152, %v1385
        %v4281 = vmul.f32 %v4153, %v1386
        %v4282 = vmul.f32 %v4154, %v1387
        %v4283 = vmul.f32 %v4155, %v1388
        %v4284 = vmul.f32 %v4156, %v1389
        %v4285 = vmul.f32 %v4157, %v1390
        %v4286 = vmul.f32 %v4158, %v1391
        %v4287 = vmul.f32 %v4159, %v1392
        %v4288 = vmul.f32 %v4160, %v1393
        %v4289 = vmul.f32 %v4161, %v1394
        %v4290 = vmul.f32 %v4162, %v1395
        %v4291 = vmul.f32 %v4163, %v1396
        %v4292 = vmul.f32 %v4164, %v1397
        %v4293 = vmul.f32 %v4165, %v1398
        %v4294 = vmul.f32 %v4166, %v1399
        %v4295 = vmul.f32 %v4167, %v1400
        %v4296 = vmul.f32 %v4168, %v1401
        %v4297 = vmul.f32 %v4169, %v1402
        %v4298 = vsel %vm1661, %v4170, 0.0
        %4299 = vadd.xlane.f32.xlu0 %v4298
        %v4300 = vpop.xlane.xlu0 %4299
        %v4301 = vsel %vm1661, %v4171, 0.0
        %4302 = vadd.xlane.f32.xlu0 %v4301
        %v4303 = vpop.xlane.xlu0 %4302
        %v4304 = vsel %vm1661, %v4172, 0.0
        %4305 = vadd.xlane.f32.xlu0 %v4304
        %v4306 = vpop.xlane.xlu0 %4305
        %v4307 = vsel %vm1661, %v4173, 0.0
        %4308 = vadd.xlane.f32.xlu0 %v4307
        %v4309 = vpop.xlane.xlu0 %4308
        %v4310 = vsel %vm1661, %v4174, 0.0
        %4311 = vadd.xlane.f32.xlu0 %v4310
        %v4312 = vpop.xlane.xlu0 %4311
        %v4313 = vsel %vm1661, %v4175, 0.0
        %4314 = vadd.xlane.f32.xlu0 %v4313
        %v4315 = vpop.xlane.xlu0 %4314
        %v4316 = vsel %vm1661, %v4176, 0.0
        %4317 = vadd.xlane.f32.xlu0 %v4316
        %v4318 = vpop.xlane.xlu0 %4317
        %v4319 = vsel %vm1661, %v4177, 0.0
        %4320 = vadd.xlane.f32.xlu0 %v4319
        %v4321 = vpop.xlane.xlu0 %4320
        %v4322 = vsel %vm1661, %v4178, 0.0
        %4323 = vadd.xlane.f32.xlu0 %v4322
        %v4324 = vpop.xlane.xlu0 %4323
        %v4325 = vsel %vm1661, %v4179, 0.0
        %4326 = vadd.xlane.f32.xlu0 %v4325
        %v4327 = vpop.xlane.xlu0 %4326
        %v4328 = vsel %vm1661, %v4180, 0.0
        %4329 = vadd.xlane.f32.xlu0 %v4328
        %v4330 = vpop.xlane.xlu0 %4329
        %v4331 = vsel %vm1661, %v4181, 0.0
        %4332 = vadd.xlane.f32.xlu0 %v4331
        %v4333 = vpop.xlane.xlu0 %4332
        %v4334 = vsel %vm1661, %v4182, 0.0
        %4335 = vadd.xlane.f32.xlu0 %v4334
        %v4336 = vpop.xlane.xlu0 %4335
        %v4337 = vsel %vm1661, %v4183, 0.0
        %4338 = vadd.xlane.f32.xlu0 %v4337
        %v4339 = vpop.xlane.xlu0 %4338
        %v4340 = vsel %vm1661, %v4184, 0.0
        %4341 = vadd.xlane.f32.xlu0 %v4340
        %v4342 = vpop.xlane.xlu0 %4341
        %v4343 = vsel %vm1661, %v4185, 0.0
        %4344 = vadd.xlane.f32.xlu0 %v4343
        %v4345 = vpop.xlane.xlu0 %4344
        %v4346 = vsel %vm1661, %v4186, 0.0
        %4347 = vadd.xlane.f32.xlu0 %v4346
        %v4348 = vpop.xlane.xlu0 %4347
        %v4349 = vsel %vm1661, %v4187, 0.0
        %4350 = vadd.xlane.f32.xlu0 %v4349
        %v4351 = vpop.xlane.xlu0 %4350
        %v4352 = vsel %vm1661, %v4188, 0.0
        %4353 = vadd.xlane.f32.xlu0 %v4352
        %v4354 = vpop.xlane.xlu0 %4353
        %v4355 = vsel %vm1661, %v4189, 0.0
        %4356 = vadd.xlane.f32.xlu0 %v4355
        %v4357 = vpop.xlane.xlu0 %4356
        %v4358 = vsel %vm1661, %v4190, 0.0
        %4359 = vadd.xlane.f32.xlu0 %v4358
        %v4360 = vpop.xlane.xlu0 %4359
        %v4361 = vsel %vm1661, %v4191, 0.0
        %4362 = vadd.xlane.f32.xlu0 %v4361
        %v4363 = vpop.xlane.xlu0 %4362
        %v4364 = vsel %vm1661, %v4192, 0.0
        %4365 = vadd.xlane.f32.xlu0 %v4364
        %v4366 = vpop.xlane.xlu0 %4365
        %v4367 = vsel %vm1661, %v4193, 0.0
        %4368 = vadd.xlane.f32.xlu0 %v4367
        %v4369 = vpop.xlane.xlu0 %4368
        %v4370 = vsel %vm1661, %v4194, 0.0
        %4371 = vadd.xlane.f32.xlu0 %v4370
        %v4372 = vpop.xlane.xlu0 %4371
        %v4373 = vsel %vm1661, %v4195, 0.0
        %4374 = vadd.xlane.f32.xlu0 %v4373
        %v4375 = vpop.xlane.xlu0 %4374
        %v4376 = vsel %vm1661, %v4196, 0.0
        %4377 = vadd.xlane.f32.xlu0 %v4376
        %v4378 = vpop.xlane.xlu0 %4377
        %v4379 = vsel %vm1661, %v4197, 0.0
        %4380 = vadd.xlane.f32.xlu0 %v4379
        %v4381 = vpop.xlane.xlu0 %4380
        %v4382 = vsel %vm1661, %v4198, 0.0
        %4383 = vadd.xlane.f32.xlu0 %v4382
        %v4384 = vpop.xlane.xlu0 %4383
        %v4385 = vsel %vm1661, %v4199, 0.0
        %4386 = vadd.xlane.f32.xlu0 %v4385
        %v4387 = vpop.xlane.xlu0 %4386
        %v4388 = vsel %vm1661, %v4200, 0.0
        %4389 = vadd.xlane.f32.xlu0 %v4388
        %v4390 = vpop.xlane.xlu0 %4389
        %v4391 = vsel %vm1661, %v4201, 0.0
        %4392 = vadd.xlane.f32.xlu0 %v4391
        %v4393 = vpop.xlane.xlu0 %4392
        %v4394 = vsel %vm1661, %v4202, 0.0
        %4395 = vadd.xlane.f32.xlu0 %v4394
        %v4396 = vpop.xlane.xlu0 %4395
        %v4397 = vsel %vm1661, %v4203, 0.0
        %4398 = vadd.xlane.f32.xlu0 %v4397
        %v4399 = vpop.xlane.xlu0 %4398
        %v4400 = vsel %vm1661, %v4204, 0.0
        %4401 = vadd.xlane.f32.xlu0 %v4400
        %v4402 = vpop.xlane.xlu0 %4401
        %v4403 = vsel %vm1661, %v4205, 0.0
        %4404 = vadd.xlane.f32.xlu0 %v4403
        %v4405 = vpop.xlane.xlu0 %4404
        %v4406 = vsel %vm1661, %v4206, 0.0
        %4407 = vadd.xlane.f32.xlu0 %v4406
        %v4408 = vpop.xlane.xlu0 %4407
        %v4409 = vsel %vm1661, %v4207, 0.0
        %4410 = vadd.xlane.f32.xlu0 %v4409
        %v4411 = vpop.xlane.xlu0 %4410
        %v4412 = vsel %vm1661, %v4208, 0.0
        %4413 = vadd.xlane.f32.xlu0 %v4412
        %v4414 = vpop.xlane.xlu0 %4413
        %v4415 = vsel %vm1661, %v4209, 0.0
        %4416 = vadd.xlane.f32.xlu0 %v4415
        %v4417 = vpop.xlane.xlu0 %4416
        %v4418 = vsel %vm1661, %v4210, 0.0
        %4419 = vadd.xlane.f32.xlu0 %v4418
        %v4420 = vpop.xlane.xlu0 %4419
        %v4421 = vsel %vm1661, %v4211, 0.0
        %4422 = vadd.xlane.f32.xlu0 %v4421
        %v4423 = vpop.xlane.xlu0 %4422
        %v4424 = vsel %vm1661, %v4212, 0.0
        %4425 = vadd.xlane.f32.xlu0 %v4424
        %v4426 = vpop.xlane.xlu0 %4425
        %v4427 = vsel %vm1661, %v4213, 0.0
        %4428 = vadd.xlane.f32.xlu0 %v4427
        %v4429 = vpop.xlane.xlu0 %4428
        %v4430 = vsel %vm1661, %v4214, 0.0
        %4431 = vadd.xlane.f32.xlu0 %v4430
        %v4432 = vpop.xlane.xlu0 %4431
        %v4433 = vsel %vm1661, %v4215, 0.0
        %4434 = vadd.xlane.f32.xlu0 %v4433
        %v4435 = vpop.xlane.xlu0 %4434
        %v4436 = vsel %vm1661, %v4216, 0.0
        %4437 = vadd.xlane.f32.xlu0 %v4436
        %v4438 = vpop.xlane.xlu0 %4437
        %v4439 = vsel %vm1661, %v4217, 0.0
        %4440 = vadd.xlane.f32.xlu0 %v4439
        %v4441 = vpop.xlane.xlu0 %4440
        %v4442 = vsel %vm1661, %v4218, 0.0
        %4443 = vadd.xlane.f32.xlu0 %v4442
        %v4444 = vpop.xlane.xlu0 %4443
        %v4445 = vsel %vm1661, %v4219, 0.0
        %4446 = vadd.xlane.f32.xlu0 %v4445
        %v4447 = vpop.xlane.xlu0 %4446
        %v4448 = vsel %vm1661, %v4220, 0.0
        %4449 = vadd.xlane.f32.xlu0 %v4448
        %v4450 = vpop.xlane.xlu0 %4449
        %v4451 = vsel %vm1661, %v4221, 0.0
        %4452 = vadd.xlane.f32.xlu0 %v4451
        %v4453 = vpop.xlane.xlu0 %4452
        %v4454 = vsel %vm1661, %v4222, 0.0
        %4455 = vadd.xlane.f32.xlu0 %v4454
        %v4456 = vpop.xlane.xlu0 %4455
        %v4457 = vsel %vm1661, %v4223, 0.0
        %4458 = vadd.xlane.f32.xlu0 %v4457
        %v4459 = vpop.xlane.xlu0 %4458
        %v4460 = vsel %vm1661, %v4224, 0.0
        %4461 = vadd.xlane.f32.xlu0 %v4460
        %v4462 = vpop.xlane.xlu0 %4461
        %v4463 = vsel %vm1661, %v4225, 0.0
        %4464 = vadd.xlane.f32.xlu0 %v4463
        %v4465 = vpop.xlane.xlu0 %4464
        %v4466 = vsel %vm1661, %v4226, 0.0
        %4467 = vadd.xlane.f32.xlu0 %v4466
        %v4468 = vpop.xlane.xlu0 %4467
        %v4469 = vsel %vm1661, %v4227, 0.0
        %4470 = vadd.xlane.f32.xlu0 %v4469
        %v4471 = vpop.xlane.xlu0 %4470
        %v4472 = vsel %vm1661, %v4228, 0.0
        %4473 = vadd.xlane.f32.xlu0 %v4472
        %v4474 = vpop.xlane.xlu0 %4473
        %v4475 = vsel %vm1661, %v4229, 0.0
        %4476 = vadd.xlane.f32.xlu0 %v4475
        %v4477 = vpop.xlane.xlu0 %4476
        %v4478 = vsel %vm1661, %v4230, 0.0
        %4479 = vadd.xlane.f32.xlu0 %v4478
        %v4480 = vpop.xlane.xlu0 %4479
        %v4481 = vsel %vm1661, %v4231, 0.0
        %4482 = vadd.xlane.f32.xlu0 %v4481
        %v4483 = vpop.xlane.xlu0 %4482
        %v4484 = vsel %vm1661, %v4232, 0.0
        %4485 = vadd.xlane.f32.xlu0 %v4484
        %v4486 = vpop.xlane.xlu0 %4485
        %v4487 = vsel %vm1661, %v4233, 0.0
        %4488 = vadd.xlane.f32.xlu0 %v4487
        %v4489 = vpop.xlane.xlu0 %4488
        %v4490 = vsel %vm1661, %v4234, 0.0
        %4491 = vadd.xlane.f32.xlu0 %v4490
        %v4492 = vpop.xlane.xlu0 %4491
        %v4493 = vsel %vm1661, %v4235, 0.0
        %4494 = vadd.xlane.f32.xlu0 %v4493
        %v4495 = vpop.xlane.xlu0 %4494
        %v4496 = vsel %vm1661, %v4236, 0.0
        %4497 = vadd.xlane.f32.xlu0 %v4496
        %v4498 = vpop.xlane.xlu0 %4497
        %v4499 = vsel %vm1661, %v4237, 0.0
        %4500 = vadd.xlane.f32.xlu0 %v4499
        %v4501 = vpop.xlane.xlu0 %4500
        %v4502 = vsel %vm1661, %v4238, 0.0
        %4503 = vadd.xlane.f32.xlu0 %v4502
        %v4504 = vpop.xlane.xlu0 %4503
        %v4505 = vsel %vm1661, %v4239, 0.0
        %4506 = vadd.xlane.f32.xlu0 %v4505
        %v4507 = vpop.xlane.xlu0 %4506
        %v4508 = vsel %vm1661, %v4240, 0.0
        %4509 = vadd.xlane.f32.xlu0 %v4508
        %v4510 = vpop.xlane.xlu0 %4509
        %v4511 = vsel %vm1661, %v4241, 0.0
        %4512 = vadd.xlane.f32.xlu0 %v4511
        %v4513 = vpop.xlane.xlu0 %4512
        %v4514 = vsel %vm1661, %v4242, 0.0
        %4515 = vadd.xlane.f32.xlu0 %v4514
        %v4516 = vpop.xlane.xlu0 %4515
        %v4517 = vsel %vm1661, %v4243, 0.0
        %4518 = vadd.xlane.f32.xlu0 %v4517
        %v4519 = vpop.xlane.xlu0 %4518
        %v4520 = vsel %vm1661, %v4244, 0.0
        %4521 = vadd.xlane.f32.xlu0 %v4520
        %v4522 = vpop.xlane.xlu0 %4521
        %v4523 = vsel %vm1661, %v4245, 0.0
        %4524 = vadd.xlane.f32.xlu0 %v4523
        %v4525 = vpop.xlane.xlu0 %4524
        %v4526 = vsel %vm1661, %v4246, 0.0
        %4527 = vadd.xlane.f32.xlu0 %v4526
        %v4528 = vpop.xlane.xlu0 %4527
        %v4529 = vsel %vm1661, %v4247, 0.0
        %4530 = vadd.xlane.f32.xlu0 %v4529
        %v4531 = vpop.xlane.xlu0 %4530
        %v4532 = vsel %vm1661, %v4248, 0.0
        %4533 = vadd.xlane.f32.xlu0 %v4532
        %v4534 = vpop.xlane.xlu0 %4533
        %v4535 = vsel %vm1661, %v4249, 0.0
        %4536 = vadd.xlane.f32.xlu0 %v4535
        %v4537 = vpop.xlane.xlu0 %4536
        %v4538 = vsel %vm1661, %v4250, 0.0
        %4539 = vadd.xlane.f32.xlu0 %v4538
        %v4540 = vpop.xlane.xlu0 %4539
        %v4541 = vsel %vm1661, %v4251, 0.0
        %4542 = vadd.xlane.f32.xlu0 %v4541
        %v4543 = vpop.xlane.xlu0 %4542
        %v4544 = vsel %vm1661, %v4252, 0.0
        %4545 = vadd.xlane.f32.xlu0 %v4544
        %v4546 = vpop.xlane.xlu0 %4545
        %v4547 = vsel %vm1661, %v4253, 0.0
        %4548 = vadd.xlane.f32.xlu0 %v4547
        %v4549 = vpop.xlane.xlu0 %4548
        %v4550 = vsel %vm1661, %v4254, 0.0
        %4551 = vadd.xlane.f32.xlu0 %v4550
        %v4552 = vpop.xlane.xlu0 %4551
        %v4553 = vsel %vm1661, %v4255, 0.0
        %4554 = vadd.xlane.f32.xlu0 %v4553
        %v4555 = vpop.xlane.xlu0 %4554
        %v4556 = vsel %vm1661, %v4256, 0.0
        %4557 = vadd.xlane.f32.xlu0 %v4556
        %v4558 = vpop.xlane.xlu0 %4557
        %v4559 = vsel %vm1661, %v4257, 0.0
        %4560 = vadd.xlane.f32.xlu0 %v4559
        %v4561 = vpop.xlane.xlu0 %4560
        %v4562 = vsel %vm1661, %v4258, 0.0
        %4563 = vadd.xlane.f32.xlu0 %v4562
        %v4564 = vpop.xlane.xlu0 %4563
        %v4565 = vsel %vm1661, %v4259, 0.0
        %4566 = vadd.xlane.f32.xlu0 %v4565
        %v4567 = vpop.xlane.xlu0 %4566
        %v4568 = vsel %vm1661, %v4260, 0.0
        %4569 = vadd.xlane.f32.xlu0 %v4568
        %v4570 = vpop.xlane.xlu0 %4569
        %v4571 = vsel %vm1661, %v4261, 0.0
        %4572 = vadd.xlane.f32.xlu0 %v4571
        %v4573 = vpop.xlane.xlu0 %4572
        %v4574 = vsel %vm1661, %v4262, 0.0
        %4575 = vadd.xlane.f32.xlu0 %v4574
        %v4576 = vpop.xlane.xlu0 %4575
        %v4577 = vsel %vm1661, %v4263, 0.0
        %4578 = vadd.xlane.f32.xlu0 %v4577
        %v4579 = vpop.xlane.xlu0 %4578
        %v4580 = vsel %vm1661, %v4264, 0.0
        %4581 = vadd.xlane.f32.xlu0 %v4580
        %v4582 = vpop.xlane.xlu0 %4581
        %v4583 = vsel %vm1661, %v4265, 0.0
        %4584 = vadd.xlane.f32.xlu0 %v4583
        %v4585 = vpop.xlane.xlu0 %4584
        %v4586 = vsel %vm1661, %v4266, 0.0
        %4587 = vadd.xlane.f32.xlu0 %v4586
        %v4588 = vpop.xlane.xlu0 %4587
        %v4589 = vsel %vm1661, %v4267, 0.0
        %4590 = vadd.xlane.f32.xlu0 %v4589
        %v4591 = vpop.xlane.xlu0 %4590
        %v4592 = vsel %vm1661, %v4268, 0.0
        %4593 = vadd.xlane.f32.xlu0 %v4592
        %v4594 = vpop.xlane.xlu0 %4593
        %v4595 = vsel %vm1661, %v4269, 0.0
        %4596 = vadd.xlane.f32.xlu0 %v4595
        %v4597 = vpop.xlane.xlu0 %4596
        %v4598 = vsel %vm1661, %v4270, 0.0
        %4599 = vadd.xlane.f32.xlu0 %v4598
        %v4600 = vpop.xlane.xlu0 %4599
        %v4601 = vsel %vm1661, %v4271, 0.0
        %4602 = vadd.xlane.f32.xlu0 %v4601
        %v4603 = vpop.xlane.xlu0 %4602
        %v4604 = vsel %vm1661, %v4272, 0.0
        %4605 = vadd.xlane.f32.xlu0 %v4604
        %v4606 = vpop.xlane.xlu0 %4605
        %v4607 = vsel %vm1661, %v4273, 0.0
        %4608 = vadd.xlane.f32.xlu0 %v4607
        %v4609 = vpop.xlane.xlu0 %4608
        %v4610 = vsel %vm1661, %v4274, 0.0
        %4611 = vadd.xlane.f32.xlu0 %v4610
        %v4612 = vpop.xlane.xlu0 %4611
        %v4613 = vsel %vm1661, %v4275, 0.0
        %4614 = vadd.xlane.f32.xlu0 %v4613
        %v4615 = vpop.xlane.xlu0 %4614
        %v4616 = vsel %vm1661, %v4276, 0.0
        %4617 = vadd.xlane.f32.xlu0 %v4616
        %v4618 = vpop.xlane.xlu0 %4617
        %v4619 = vsel %vm1661, %v4277, 0.0
        %4620 = vadd.xlane.f32.xlu0 %v4619
        %v4621 = vpop.xlane.xlu0 %4620
        %v4622 = vsel %vm1661, %v4278, 0.0
        %4623 = vadd.xlane.f32.xlu0 %v4622
        %v4624 = vpop.xlane.xlu0 %4623
        %v4625 = vsel %vm1661, %v4279, 0.0
        %4626 = vadd.xlane.f32.xlu0 %v4625
        %v4627 = vpop.xlane.xlu0 %4626
        %v4628 = vsel %vm1661, %v4280, 0.0
        %4629 = vadd.xlane.f32.xlu0 %v4628
        %v4630 = vpop.xlane.xlu0 %4629
        %v4631 = vsel %vm1661, %v4281, 0.0
        %4632 = vadd.xlane.f32.xlu0 %v4631
        %v4633 = vpop.xlane.xlu0 %4632
        %v4634 = vsel %vm1661, %v4282, 0.0
        %4635 = vadd.xlane.f32.xlu0 %v4634
        %v4636 = vpop.xlane.xlu0 %4635
        %v4637 = vsel %vm1661, %v4283, 0.0
        %4638 = vadd.xlane.f32.xlu0 %v4637
        %v4639 = vpop.xlane.xlu0 %4638
        %v4640 = vsel %vm1661, %v4284, 0.0
        %4641 = vadd.xlane.f32.xlu0 %v4640
        %v4642 = vpop.xlane.xlu0 %4641
        %v4643 = vsel %vm1661, %v4285, 0.0
        %4644 = vadd.xlane.f32.xlu0 %v4643
        %v4645 = vpop.xlane.xlu0 %4644
        %v4646 = vsel %vm1661, %v4286, 0.0
        %4647 = vadd.xlane.f32.xlu0 %v4646
        %v4648 = vpop.xlane.xlu0 %4647
        %v4649 = vsel %vm1661, %v4287, 0.0
        %4650 = vadd.xlane.f32.xlu0 %v4649
        %v4651 = vpop.xlane.xlu0 %4650
        %v4652 = vsel %vm1661, %v4288, 0.0
        %4653 = vadd.xlane.f32.xlu0 %v4652
        %v4654 = vpop.xlane.xlu0 %4653
        %v4655 = vsel %vm1661, %v4289, 0.0
        %4656 = vadd.xlane.f32.xlu0 %v4655
        %v4657 = vpop.xlane.xlu0 %4656
        %v4658 = vsel %vm1661, %v4290, 0.0
        %4659 = vadd.xlane.f32.xlu0 %v4658
        %v4660 = vpop.xlane.xlu0 %4659
        %v4661 = vsel %vm1661, %v4291, 0.0
        %4662 = vadd.xlane.f32.xlu0 %v4661
        %v4663 = vpop.xlane.xlu0 %4662
        %v4664 = vsel %vm1661, %v4292, 0.0
        %4665 = vadd.xlane.f32.xlu0 %v4664
        %v4666 = vpop.xlane.xlu0 %4665
        %v4667 = vsel %vm1661, %v4293, 0.0
        %4668 = vadd.xlane.f32.xlu0 %v4667
        %v4669 = vpop.xlane.xlu0 %4668
        %v4670 = vsel %vm1661, %v4294, 0.0
        %4671 = vadd.xlane.f32.xlu0 %v4670
        %v4672 = vpop.xlane.xlu0 %4671
        %v4673 = vsel %vm1661, %v4295, 0.0
        %4674 = vadd.xlane.f32.xlu0 %v4673
        %v4675 = vpop.xlane.xlu0 %4674
        %v4676 = vsel %vm1661, %v4296, 0.0
        %4677 = vadd.xlane.f32.xlu0 %v4676
        %v4678 = vpop.xlane.xlu0 %4677
        %v4679 = vsel %vm1661, %v4297, 0.0
        %4680 = vadd.xlane.f32.xlu0 %v4679
        %v4681 = vpop.xlane.xlu0 %4680
        %v4682 = vadd.f32 %v4300, %v2054
        %v4683 = vadd.f32 %v4303, %v2058
        %v4684 = vadd.f32 %v4306, %v2062
        %v4685 = vadd.f32 %v4309, %v2066
        %v4686 = vadd.f32 %v4312, %v2070
        %v4687 = vadd.f32 %v4315, %v2074
        %v4688 = vadd.f32 %v4318, %v2078
        %v4689 = vadd.f32 %v4321, %v2082
        %v4690 = vadd.f32 %v4324, %v2089
        %v4691 = vadd.f32 %v4327, %v2093
        %v4692 = vadd.f32 %v4330, %v2097
        %v4693 = vadd.f32 %v4333, %v2101
        %v4694 = vadd.f32 %v4336, %v2105
        %v4695 = vadd.f32 %v4339, %v2109
        %v4696 = vadd.f32 %v4342, %v2113
        %v4697 = vadd.f32 %v4345, %v2117
        %v4698 = vadd.f32 %v4348, %v2124
        %v4699 = vadd.f32 %v4351, %v2128
        %v4700 = vadd.f32 %v4354, %v2132
        %v4701 = vadd.f32 %v4357, %v2136
        %v4702 = vadd.f32 %v4360, %v2140
        %v4703 = vadd.f32 %v4363, %v2144
        %v4704 = vadd.f32 %v4366, %v2148
        %v4705 = vadd.f32 %v4369, %v2152
        %v4706 = vadd.f32 %v4372, %v2159
        %v4707 = vadd.f32 %v4375, %v2163
        %v4708 = vadd.f32 %v4378, %v2167
        %v4709 = vadd.f32 %v4381, %v2171
        %v4710 = vadd.f32 %v4384, %v2175
        %v4711 = vadd.f32 %v4387, %v2179
        %v4712 = vadd.f32 %v4390, %v2183
        %v4713 = vadd.f32 %v4393, %v2187
        %v4714 = vadd.f32 %v4396, %v2194
        %v4715 = vadd.f32 %v4399, %v2198
        %v4716 = vadd.f32 %v4402, %v2202
        %v4717 = vadd.f32 %v4405, %v2206
        %v4718 = vadd.f32 %v4408, %v2210
        %v4719 = vadd.f32 %v4411, %v2214
        %v4720 = vadd.f32 %v4414, %v2218
        %v4721 = vadd.f32 %v4417, %v2222
        %v4722 = vadd.f32 %v4420, %v2229
        %v4723 = vadd.f32 %v4423, %v2233
        %v4724 = vadd.f32 %v4426, %v2237
        %v4725 = vadd.f32 %v4429, %v2241
        %v4726 = vadd.f32 %v4432, %v2245
        %v4727 = vadd.f32 %v4435, %v2249
        %v4728 = vadd.f32 %v4438, %v2253
        %v4729 = vadd.f32 %v4441, %v2257
        %v4730 = vadd.f32 %v4444, %v2264
        %v4731 = vadd.f32 %v4447, %v2268
        %v4732 = vadd.f32 %v4450, %v2272
        %v4733 = vadd.f32 %v4453, %v2276
        %v4734 = vadd.f32 %v4456, %v2280
        %v4735 = vadd.f32 %v4459, %v2284
        %v4736 = vadd.f32 %v4462, %v2288
        %v4737 = vadd.f32 %v4465, %v2292
        %v4738 = vadd.f32 %v4468, %v2299
        %v4739 = vadd.f32 %v4471, %v2303
        %v4740 = vadd.f32 %v4474, %v2307
        %v4741 = vadd.f32 %v4477, %v2311
        %v4742 = vadd.f32 %v4480, %v2315
        %v4743 = vadd.f32 %v4483, %v2319
        %v4744 = vadd.f32 %v4486, %v2323
        %v4745 = vadd.f32 %v4489, %v2327
        %v4746 = vadd.f32 %v4492, %v2334
        %v4747 = vadd.f32 %v4495, %v2338
        %v4748 = vadd.f32 %v4498, %v2342
        %v4749 = vadd.f32 %v4501, %v2346
        %v4750 = vadd.f32 %v4504, %v2350
        %v4751 = vadd.f32 %v4507, %v2354
        %v4752 = vadd.f32 %v4510, %v2358
        %v4753 = vadd.f32 %v4513, %v2362
        %v4754 = vadd.f32 %v4516, %v2369
        %v4755 = vadd.f32 %v4519, %v2373
        %v4756 = vadd.f32 %v4522, %v2377
        %v4757 = vadd.f32 %v4525, %v2381
        %v4758 = vadd.f32 %v4528, %v2385
        %v4759 = vadd.f32 %v4531, %v2389
        %v4760 = vadd.f32 %v4534, %v2393
        %v4761 = vadd.f32 %v4537, %v2397
        %v4762 = vadd.f32 %v4540, %v2404
        %v4763 = vadd.f32 %v4543, %v2408
        %v4764 = vadd.f32 %v4546, %v2412
        %v4765 = vadd.f32 %v4549, %v2416
        %v4766 = vadd.f32 %v4552, %v2420
        %v4767 = vadd.f32 %v4555, %v2424
        %v4768 = vadd.f32 %v4558, %v2428
        %v4769 = vadd.f32 %v4561, %v2432
        %v4770 = vadd.f32 %v4564, %v2439
        %v4771 = vadd.f32 %v4567, %v2443
        %v4772 = vadd.f32 %v4570, %v2447
        %v4773 = vadd.f32 %v4573, %v2451
        %v4774 = vadd.f32 %v4576, %v2455
        %v4775 = vadd.f32 %v4579, %v2459
        %v4776 = vadd.f32 %v4582, %v2463
        %v4777 = vadd.f32 %v4585, %v2467
        %v4778 = vadd.f32 %v4588, %v2474
        %v4779 = vadd.f32 %v4591, %v2478
        %v4780 = vadd.f32 %v4594, %v2482
        %v4781 = vadd.f32 %v4597, %v2486
        %v4782 = vadd.f32 %v4600, %v2490
        %v4783 = vadd.f32 %v4603, %v2494
        %v4784 = vadd.f32 %v4606, %v2498
        %v4785 = vadd.f32 %v4609, %v2502
        %v4786 = vadd.f32 %v4612, %v2509
        %v4787 = vadd.f32 %v4615, %v2513
        %v4788 = vadd.f32 %v4618, %v2517
        %v4789 = vadd.f32 %v4621, %v2521
        %v4790 = vadd.f32 %v4624, %v2525
        %v4791 = vadd.f32 %v4627, %v2529
        %v4792 = vadd.f32 %v4630, %v2533
        %v4793 = vadd.f32 %v4633, %v2537
        %v4794 = vadd.f32 %v4636, %v2544
        %v4795 = vadd.f32 %v4639, %v2548
        %v4796 = vadd.f32 %v4642, %v2552
        %v4797 = vadd.f32 %v4645, %v2556
        %v4798 = vadd.f32 %v4648, %v2560
        %v4799 = vadd.f32 %v4651, %v2564
        %v4800 = vadd.f32 %v4654, %v2568
        %v4801 = vadd.f32 %v4657, %v2572
        %v4802 = vadd.f32 %v4660, %v2579
        %v4803 = vadd.f32 %v4663, %v2583
        %v4804 = vadd.f32 %v4666, %v2587
        %v4805 = vadd.f32 %v4669, %v2591
        %v4806 = vadd.f32 %v4672, %v2595
        %v4807 = vadd.f32 %v4675, %v2599
        %v4808 = vadd.f32 %v4678, %v2603
        %v4809 = vadd.f32 %v4681, %v2607
        %4938 = vset.pattern.permute.xlu0 0
        %4939 = vperm.xlu0 %4938, %v4682
        %v4940 = vpop.permute.xlu0 %4939
        %4941 = vset.pattern.permute.xlu0 0
        %4942 = vperm.xlu0 %4941, %v4683
        %v4943 = vpop.permute.xlu0 %4942
        %4944 = vset.pattern.permute.xlu0 0
        %4945 = vperm.xlu0 %4944, %v4684
        %v4946 = vpop.permute.xlu0 %4945
        %4947 = vset.pattern.permute.xlu0 0
        %4948 = vperm.xlu0 %4947, %v4685
        %v4949 = vpop.permute.xlu0 %4948
        %4950 = vset.pattern.permute.xlu0 0
        %4951 = vperm.xlu0 %4950, %v4686
        %v4952 = vpop.permute.xlu0 %4951
        %4953 = vset.pattern.permute.xlu0 0
        %4954 = vperm.xlu0 %4953, %v4687
        %v4955 = vpop.permute.xlu0 %4954
        %4956 = vset.pattern.permute.xlu0 0
        %4957 = vperm.xlu0 %4956, %v4688
        %v4958 = vpop.permute.xlu0 %4957
        %4959 = vset.pattern.permute.xlu0 0
        %4960 = vperm.xlu0 %4959, %v4689
        %v4961 = vpop.permute.xlu0 %4960
        %4962 = vset.pattern.permute.xlu0 0
        %4963 = vperm.xlu0 %4962, %v4690
        %v4964 = vpop.permute.xlu0 %4963
        %4965 = vset.pattern.permute.xlu0 0
        %4966 = vperm.xlu0 %4965, %v4691
        %v4967 = vpop.permute.xlu0 %4966
        %4968 = vset.pattern.permute.xlu0 0
        %4969 = vperm.xlu0 %4968, %v4692
        %v4970 = vpop.permute.xlu0 %4969
        %4971 = vset.pattern.permute.xlu0 0
        %4972 = vperm.xlu0 %4971, %v4693
        %v4973 = vpop.permute.xlu0 %4972
        %4974 = vset.pattern.permute.xlu0 0
        %4975 = vperm.xlu0 %4974, %v4694
        %v4976 = vpop.permute.xlu0 %4975
        %4977 = vset.pattern.permute.xlu0 0
        %4978 = vperm.xlu0 %4977, %v4695
        %v4979 = vpop.permute.xlu0 %4978
        %4980 = vset.pattern.permute.xlu0 0
        %4981 = vperm.xlu0 %4980, %v4696
        %v4982 = vpop.permute.xlu0 %4981
        %4983 = vset.pattern.permute.xlu0 0
        %4984 = vperm.xlu0 %4983, %v4697
        %v4985 = vpop.permute.xlu0 %4984
        %4986 = vset.pattern.permute.xlu0 0
        %4987 = vperm.xlu0 %4986, %v4698
        %v4988 = vpop.permute.xlu0 %4987
        %4989 = vset.pattern.permute.xlu0 0
        %4990 = vperm.xlu0 %4989, %v4699
        %v4991 = vpop.permute.xlu0 %4990
        %4992 = vset.pattern.permute.xlu0 0
        %4993 = vperm.xlu0 %4992, %v4700
        %v4994 = vpop.permute.xlu0 %4993
        %4995 = vset.pattern.permute.xlu0 0
        %4996 = vperm.xlu0 %4995, %v4701
        %v4997 = vpop.permute.xlu0 %4996
        %4998 = vset.pattern.permute.xlu0 0
        %4999 = vperm.xlu0 %4998, %v4702
        %v5000 = vpop.permute.xlu0 %4999
        %5001 = vset.pattern.permute.xlu0 0
        %5002 = vperm.xlu0 %5001, %v4703
        %v5003 = vpop.permute.xlu0 %5002
        %5004 = vset.pattern.permute.xlu0 0
        %5005 = vperm.xlu0 %5004, %v4704
        %v5006 = vpop.permute.xlu0 %5005
        %5007 = vset.pattern.permute.xlu0 0
        %5008 = vperm.xlu0 %5007, %v4705
        %v5009 = vpop.permute.xlu0 %5008
        %5010 = vset.pattern.permute.xlu0 0
        %5011 = vperm.xlu0 %5010, %v4706
        %v5012 = vpop.permute.xlu0 %5011
        %5013 = vset.pattern.permute.xlu0 0
        %5014 = vperm.xlu0 %5013, %v4707
        %v5015 = vpop.permute.xlu0 %5014
        %5016 = vset.pattern.permute.xlu0 0
        %5017 = vperm.xlu0 %5016, %v4708
        %v5018 = vpop.permute.xlu0 %5017
        %5019 = vset.pattern.permute.xlu0 0
        %5020 = vperm.xlu0 %5019, %v4709
        %v5021 = vpop.permute.xlu0 %5020
        %5022 = vset.pattern.permute.xlu0 0
        %5023 = vperm.xlu0 %5022, %v4710
        %v5024 = vpop.permute.xlu0 %5023
        %5025 = vset.pattern.permute.xlu0 0
        %5026 = vperm.xlu0 %5025, %v4711
        %v5027 = vpop.permute.xlu0 %5026
        %5028 = vset.pattern.permute.xlu0 0
        %5029 = vperm.xlu0 %5028, %v4712
        %v5030 = vpop.permute.xlu0 %5029
        %5031 = vset.pattern.permute.xlu0 0
        %5032 = vperm.xlu0 %5031, %v4713
        %v5033 = vpop.permute.xlu0 %5032
        %5034 = vset.pattern.permute.xlu0 0
        %5035 = vperm.xlu0 %5034, %v4714
        %v5036 = vpop.permute.xlu0 %5035
        %5037 = vset.pattern.permute.xlu0 0
        %5038 = vperm.xlu0 %5037, %v4715
        %v5039 = vpop.permute.xlu0 %5038
        %5040 = vset.pattern.permute.xlu0 0
        %5041 = vperm.xlu0 %5040, %v4716
        %v5042 = vpop.permute.xlu0 %5041
        %5043 = vset.pattern.permute.xlu0 0
        %5044 = vperm.xlu0 %5043, %v4717
        %v5045 = vpop.permute.xlu0 %5044
        %5046 = vset.pattern.permute.xlu0 0
        %5047 = vperm.xlu0 %5046, %v4718
        %v5048 = vpop.permute.xlu0 %5047
        %5049 = vset.pattern.permute.xlu0 0
        %5050 = vperm.xlu0 %5049, %v4719
        %v5051 = vpop.permute.xlu0 %5050
        %5052 = vset.pattern.permute.xlu0 0
        %5053 = vperm.xlu0 %5052, %v4720
        %v5054 = vpop.permute.xlu0 %5053
        %5055 = vset.pattern.permute.xlu0 0
        %5056 = vperm.xlu0 %5055, %v4721
        %v5057 = vpop.permute.xlu0 %5056
        %5058 = vset.pattern.permute.xlu0 0
        %5059 = vperm.xlu0 %5058, %v4722
        %v5060 = vpop.permute.xlu0 %5059
        %5061 = vset.pattern.permute.xlu0 0
        %5062 = vperm.xlu0 %5061, %v4723
        %v5063 = vpop.permute.xlu0 %5062
        %5064 = vset.pattern.permute.xlu0 0
        %5065 = vperm.xlu0 %5064, %v4724
        %v5066 = vpop.permute.xlu0 %5065
        %5067 = vset.pattern.permute.xlu0 0
        %5068 = vperm.xlu0 %5067, %v4725
        %v5069 = vpop.permute.xlu0 %5068
        %5070 = vset.pattern.permute.xlu0 0
        %5071 = vperm.xlu0 %5070, %v4726
        %v5072 = vpop.permute.xlu0 %5071
        %5073 = vset.pattern.permute.xlu0 0
        %5074 = vperm.xlu0 %5073, %v4727
        %v5075 = vpop.permute.xlu0 %5074
        %5076 = vset.pattern.permute.xlu0 0
        %5077 = vperm.xlu0 %5076, %v4728
        %v5078 = vpop.permute.xlu0 %5077
        %5079 = vset.pattern.permute.xlu0 0
        %5080 = vperm.xlu0 %5079, %v4729
        %v5081 = vpop.permute.xlu0 %5080
        %5082 = vset.pattern.permute.xlu0 0
        %5083 = vperm.xlu0 %5082, %v4730
        %v5084 = vpop.permute.xlu0 %5083
        %5085 = vset.pattern.permute.xlu0 0
        %5086 = vperm.xlu0 %5085, %v4731
        %v5087 = vpop.permute.xlu0 %5086
        %5088 = vset.pattern.permute.xlu0 0
        %5089 = vperm.xlu0 %5088, %v4732
        %v5090 = vpop.permute.xlu0 %5089
        %5091 = vset.pattern.permute.xlu0 0
        %5092 = vperm.xlu0 %5091, %v4733
        %v5093 = vpop.permute.xlu0 %5092
        %5094 = vset.pattern.permute.xlu0 0
        %5095 = vperm.xlu0 %5094, %v4734
        %v5096 = vpop.permute.xlu0 %5095
        %5097 = vset.pattern.permute.xlu0 0
        %5098 = vperm.xlu0 %5097, %v4735
        %v5099 = vpop.permute.xlu0 %5098
        %5100 = vset.pattern.permute.xlu0 0
        %5101 = vperm.xlu0 %5100, %v4736
        %v5102 = vpop.permute.xlu0 %5101
        %5103 = vset.pattern.permute.xlu0 0
        %5104 = vperm.xlu0 %5103, %v4737
        %v5105 = vpop.permute.xlu0 %5104
        %5106 = vset.pattern.permute.xlu0 0
        %5107 = vperm.xlu0 %5106, %v4738
        %v5108 = vpop.permute.xlu0 %5107
        %5109 = vset.pattern.permute.xlu0 0
        %5110 = vperm.xlu0 %5109, %v4739
        %v5111 = vpop.permute.xlu0 %5110
        %5112 = vset.pattern.permute.xlu0 0
        %5113 = vperm.xlu0 %5112, %v4740
        %v5114 = vpop.permute.xlu0 %5113
        %5115 = vset.pattern.permute.xlu0 0
        %5116 = vperm.xlu0 %5115, %v4741
        %v5117 = vpop.permute.xlu0 %5116
        %5118 = vset.pattern.permute.xlu0 0
        %5119 = vperm.xlu0 %5118, %v4742
        %v5120 = vpop.permute.xlu0 %5119
        %5121 = vset.pattern.permute.xlu0 0
        %5122 = vperm.xlu0 %5121, %v4743
        %v5123 = vpop.permute.xlu0 %5122
        %5124 = vset.pattern.permute.xlu0 0
        %5125 = vperm.xlu0 %5124, %v4744
        %v5126 = vpop.permute.xlu0 %5125
        %5127 = vset.pattern.permute.xlu0 0
        %5128 = vperm.xlu0 %5127, %v4745
        %v5129 = vpop.permute.xlu0 %5128
        %5130 = vset.pattern.permute.xlu0 0
        %5131 = vperm.xlu0 %5130, %v4746
        %v5132 = vpop.permute.xlu0 %5131
        %5133 = vset.pattern.permute.xlu0 0
        %5134 = vperm.xlu0 %5133, %v4747
        %v5135 = vpop.permute.xlu0 %5134
        %5136 = vset.pattern.permute.xlu0 0
        %5137 = vperm.xlu0 %5136, %v4748
        %v5138 = vpop.permute.xlu0 %5137
        %5139 = vset.pattern.permute.xlu0 0
        %5140 = vperm.xlu0 %5139, %v4749
        %v5141 = vpop.permute.xlu0 %5140
        %5142 = vset.pattern.permute.xlu0 0
        %5143 = vperm.xlu0 %5142, %v4750
        %v5144 = vpop.permute.xlu0 %5143
        %5145 = vset.pattern.permute.xlu0 0
        %5146 = vperm.xlu0 %5145, %v4751
        %v5147 = vpop.permute.xlu0 %5146
        %5148 = vset.pattern.permute.xlu0 0
        %5149 = vperm.xlu0 %5148, %v4752
        %v5150 = vpop.permute.xlu0 %5149
        %5151 = vset.pattern.permute.xlu0 0
        %5152 = vperm.xlu0 %5151, %v4753
        %v5153 = vpop.permute.xlu0 %5152
        %5154 = vset.pattern.permute.xlu0 0
        %5155 = vperm.xlu0 %5154, %v4754
        %v5156 = vpop.permute.xlu0 %5155
        %5157 = vset.pattern.permute.xlu0 0
        %5158 = vperm.xlu0 %5157, %v4755
        %v5159 = vpop.permute.xlu0 %5158
        %5160 = vset.pattern.permute.xlu0 0
        %5161 = vperm.xlu0 %5160, %v4756
        %v5162 = vpop.permute.xlu0 %5161
        %5163 = vset.pattern.permute.xlu0 0
        %5164 = vperm.xlu0 %5163, %v4757
        %v5165 = vpop.permute.xlu0 %5164
        %5166 = vset.pattern.permute.xlu0 0
        %5167 = vperm.xlu0 %5166, %v4758
        %v5168 = vpop.permute.xlu0 %5167
        %5169 = vset.pattern.permute.xlu0 0
        %5170 = vperm.xlu0 %5169, %v4759
        %v5171 = vpop.permute.xlu0 %5170
        %5172 = vset.pattern.permute.xlu0 0
        %5173 = vperm.xlu0 %5172, %v4760
        %v5174 = vpop.permute.xlu0 %5173
        %5175 = vset.pattern.permute.xlu0 0
        %5176 = vperm.xlu0 %5175, %v4761
        %v5177 = vpop.permute.xlu0 %5176
        %5178 = vset.pattern.permute.xlu0 0
        %5179 = vperm.xlu0 %5178, %v4762
        %v5180 = vpop.permute.xlu0 %5179
        %5181 = vset.pattern.permute.xlu0 0
        %5182 = vperm.xlu0 %5181, %v4763
        %v5183 = vpop.permute.xlu0 %5182
        %5184 = vset.pattern.permute.xlu0 0
        %5185 = vperm.xlu0 %5184, %v4764
        %v5186 = vpop.permute.xlu0 %5185
        %5187 = vset.pattern.permute.xlu0 0
        %5188 = vperm.xlu0 %5187, %v4765
        %v5189 = vpop.permute.xlu0 %5188
        %5190 = vset.pattern.permute.xlu0 0
        %5191 = vperm.xlu0 %5190, %v4766
        %v5192 = vpop.permute.xlu0 %5191
        %5193 = vset.pattern.permute.xlu0 0
        %5194 = vperm.xlu0 %5193, %v4767
        %v5195 = vpop.permute.xlu0 %5194
        %5196 = vset.pattern.permute.xlu0 0
        %5197 = vperm.xlu0 %5196, %v4768
        %v5198 = vpop.permute.xlu0 %5197
        %5199 = vset.pattern.permute.xlu0 0
        %5200 = vperm.xlu0 %5199, %v4769
        %v5201 = vpop.permute.xlu0 %5200
        %5202 = vset.pattern.permute.xlu0 0
        %5203 = vperm.xlu0 %5202, %v4770
        %v5204 = vpop.permute.xlu0 %5203
        %5205 = vset.pattern.permute.xlu0 0
        %5206 = vperm.xlu0 %5205, %v4771
        %v5207 = vpop.permute.xlu0 %5206
        %5208 = vset.pattern.permute.xlu0 0
        %5209 = vperm.xlu0 %5208, %v4772
        %v5210 = vpop.permute.xlu0 %5209
        %5211 = vset.pattern.permute.xlu0 0
        %5212 = vperm.xlu0 %5211, %v4773
        %v5213 = vpop.permute.xlu0 %5212
        %5214 = vset.pattern.permute.xlu0 0
        %5215 = vperm.xlu0 %5214, %v4774
        %v5216 = vpop.permute.xlu0 %5215
        %5217 = vset.pattern.permute.xlu0 0
        %5218 = vperm.xlu0 %5217, %v4775
        %v5219 = vpop.permute.xlu0 %5218
        %5220 = vset.pattern.permute.xlu0 0
        %5221 = vperm.xlu0 %5220, %v4776
        %v5222 = vpop.permute.xlu0 %5221
        %5223 = vset.pattern.permute.xlu0 0
        %5224 = vperm.xlu0 %5223, %v4777
        %v5225 = vpop.permute.xlu0 %5224
        %5226 = vset.pattern.permute.xlu0 0
        %5227 = vperm.xlu0 %5226, %v4778
        %v5228 = vpop.permute.xlu0 %5227
        %5229 = vset.pattern.permute.xlu0 0
        %5230 = vperm.xlu0 %5229, %v4779
        %v5231 = vpop.permute.xlu0 %5230
        %5232 = vset.pattern.permute.xlu0 0
        %5233 = vperm.xlu0 %5232, %v4780
        %v5234 = vpop.permute.xlu0 %5233
        %5235 = vset.pattern.permute.xlu0 0
        %5236 = vperm.xlu0 %5235, %v4781
        %v5237 = vpop.permute.xlu0 %5236
        %5238 = vset.pattern.permute.xlu0 0
        %5239 = vperm.xlu0 %5238, %v4782
        %v5240 = vpop.permute.xlu0 %5239
        %5241 = vset.pattern.permute.xlu0 0
        %5242 = vperm.xlu0 %5241, %v4783
        %v5243 = vpop.permute.xlu0 %5242
        %5244 = vset.pattern.permute.xlu0 0
        %5245 = vperm.xlu0 %5244, %v4784
        %v5246 = vpop.permute.xlu0 %5245
        %5247 = vset.pattern.permute.xlu0 0
        %5248 = vperm.xlu0 %5247, %v4785
        %v5249 = vpop.permute.xlu0 %5248
        %5250 = vset.pattern.permute.xlu0 0
        %5251 = vperm.xlu0 %5250, %v4786
        %v5252 = vpop.permute.xlu0 %5251
        %5253 = vset.pattern.permute.xlu0 0
        %5254 = vperm.xlu0 %5253, %v4787
        %v5255 = vpop.permute.xlu0 %5254
        %5256 = vset.pattern.permute.xlu0 0
        %5257 = vperm.xlu0 %5256, %v4788
        %v5258 = vpop.permute.xlu0 %5257
        %5259 = vset.pattern.permute.xlu0 0
        %5260 = vperm.xlu0 %5259, %v4789
        %v5261 = vpop.permute.xlu0 %5260
        %5262 = vset.pattern.permute.xlu0 0
        %5263 = vperm.xlu0 %5262, %v4790
        %v5264 = vpop.permute.xlu0 %5263
        %5265 = vset.pattern.permute.xlu0 0
        %5266 = vperm.xlu0 %5265, %v4791
        %v5267 = vpop.permute.xlu0 %5266
        %5268 = vset.pattern.permute.xlu0 0
        %5269 = vperm.xlu0 %5268, %v4792
        %v5270 = vpop.permute.xlu0 %5269
        %5271 = vset.pattern.permute.xlu0 0
        %5272 = vperm.xlu0 %5271, %v4793
        %v5273 = vpop.permute.xlu0 %5272
        %5274 = vset.pattern.permute.xlu0 0
        %5275 = vperm.xlu0 %5274, %v4794
        %v5276 = vpop.permute.xlu0 %5275
        %5277 = vset.pattern.permute.xlu0 0
        %5278 = vperm.xlu0 %5277, %v4795
        %v5279 = vpop.permute.xlu0 %5278
        %5280 = vset.pattern.permute.xlu0 0
        %5281 = vperm.xlu0 %5280, %v4796
        %v5282 = vpop.permute.xlu0 %5281
        %5283 = vset.pattern.permute.xlu0 0
        %5284 = vperm.xlu0 %5283, %v4797
        %v5285 = vpop.permute.xlu0 %5284
        %5286 = vset.pattern.permute.xlu0 0
        %5287 = vperm.xlu0 %5286, %v4798
        %v5288 = vpop.permute.xlu0 %5287
        %5289 = vset.pattern.permute.xlu0 0
        %5290 = vperm.xlu0 %5289, %v4799
        %v5291 = vpop.permute.xlu0 %5290
        %5292 = vset.pattern.permute.xlu0 0
        %5293 = vperm.xlu0 %5292, %v4800
        %v5294 = vpop.permute.xlu0 %5293
        %5295 = vset.pattern.permute.xlu0 0
        %5296 = vperm.xlu0 %5295, %v4801
        %v5297 = vpop.permute.xlu0 %5296
        %5298 = vset.pattern.permute.xlu0 0
        %5299 = vperm.xlu0 %5298, %v4802
        %v5300 = vpop.permute.xlu0 %5299
        %5301 = vset.pattern.permute.xlu0 0
        %5302 = vperm.xlu0 %5301, %v4803
        %v5303 = vpop.permute.xlu0 %5302
        %5304 = vset.pattern.permute.xlu0 0
        %5305 = vperm.xlu0 %5304, %v4804
        %v5306 = vpop.permute.xlu0 %5305
        %5307 = vset.pattern.permute.xlu0 0
        %5308 = vperm.xlu0 %5307, %v4805
        %v5309 = vpop.permute.xlu0 %5308
        %5310 = vset.pattern.permute.xlu0 0
        %5311 = vperm.xlu0 %5310, %v4806
        %v5312 = vpop.permute.xlu0 %5311
        %5313 = vset.pattern.permute.xlu0 0
        %5314 = vperm.xlu0 %5313, %v4807
        %v5315 = vpop.permute.xlu0 %5314
        %5316 = vset.pattern.permute.xlu0 0
        %5317 = vperm.xlu0 %5316, %v4808
        %v5318 = vpop.permute.xlu0 %5317
        %5319 = vset.pattern.permute.xlu0 0
        %5320 = vperm.xlu0 %5319, %v4809
        %v5321 = vpop.permute.xlu0 %5320
        %v5322 = vlaneseq
        %v5323 = vshrl.u32 %v5322, 7
        %v5324 = vsub.s32 %v3377, %v5323
        %v5325 = vrot.slane %v4940, %v5324
        %v5326 = vlaneseq
        %v5327 = vshrl.u32 %v5326, 7
        %v5328 = vsub.s32 %v3382, %v5327
        %v5329 = vrot.slane %v4943, %v5328
        %v5330 = vsel %vm3387, %v5329, %v5325
        %v5331 = vlaneseq
        %v5332 = vshrl.u32 %v5331, 7
        %v5333 = vsub.s32 %v3389, %v5332
        %v5334 = vrot.slane %v4946, %v5333
        %v5335 = vsel %vm3394, %v5334, %v5330
        %v5336 = vlaneseq
        %v5337 = vshrl.u32 %v5336, 7
        %v5338 = vsub.s32 %v3396, %v5337
        %v5339 = vrot.slane %v4949, %v5338
        %v5340 = vsel %vm3401, %v5339, %v5335
        %v5341 = vlaneseq
        %v5342 = vshrl.u32 %v5341, 7
        %v5343 = vsub.s32 %v3403, %v5342
        %v5344 = vrot.slane %v4952, %v5343
        %v5345 = vsel %vm3408, %v5344, %v5340
        %v5346 = vlaneseq
        %v5347 = vshrl.u32 %v5346, 7
        %v5348 = vsub.s32 %v3410, %v5347
        %v5349 = vrot.slane %v4955, %v5348
        %v5350 = vsel %vm3415, %v5349, %v5345
        %v5351 = vlaneseq
        %v5352 = vshrl.u32 %v5351, 7
        %v5353 = vsub.s32 %v3417, %v5352
        %v5354 = vrot.slane %v4958, %v5353
        %v5355 = vsel %vm3422, %v5354, %v5350
        %v5356 = vlaneseq
        %v5357 = vshrl.u32 %v5356, 7
        %v5358 = vsub.s32 %v3424, %v5357
        %v5359 = vrot.slane %v4961, %v5358
        %v5360 = vsel %vm3429, %v5359, %v5355
        %v5361 = vlaneseq
        %v5362 = vshrl.u32 %v5361, 7
        %v5363 = vsub.s32 %v3377, %v5362
        %v5364 = vrot.slane %v4964, %v5363
        %v5365 = vlaneseq
        %v5366 = vshrl.u32 %v5365, 7
        %v5367 = vsub.s32 %v3382, %v5366
        %v5368 = vrot.slane %v4967, %v5367
        %v5369 = vsel %vm3387, %v5368, %v5364
        %v5370 = vlaneseq
        %v5371 = vshrl.u32 %v5370, 7
        %v5372 = vsub.s32 %v3389, %v5371
        %v5373 = vrot.slane %v4970, %v5372
        %v5374 = vsel %vm3394, %v5373, %v5369
        %v5375 = vlaneseq
        %v5376 = vshrl.u32 %v5375, 7
        %v5377 = vsub.s32 %v3396, %v5376
        %v5378 = vrot.slane %v4973, %v5377
        %v5379 = vsel %vm3401, %v5378, %v5374
        %v5380 = vlaneseq
        %v5381 = vshrl.u32 %v5380, 7
        %v5382 = vsub.s32 %v3403, %v5381
        %v5383 = vrot.slane %v4976, %v5382
        %v5384 = vsel %vm3408, %v5383, %v5379
        %v5385 = vlaneseq
        %v5386 = vshrl.u32 %v5385, 7
        %v5387 = vsub.s32 %v3410, %v5386
        %v5388 = vrot.slane %v4979, %v5387
        %v5389 = vsel %vm3415, %v5388, %v5384
        %v5390 = vlaneseq
        %v5391 = vshrl.u32 %v5390, 7
        %v5392 = vsub.s32 %v3417, %v5391
        %v5393 = vrot.slane %v4982, %v5392
        %v5394 = vsel %vm3422, %v5393, %v5389
        %v5395 = vlaneseq
        %v5396 = vshrl.u32 %v5395, 7
        %v5397 = vsub.s32 %v3424, %v5396
        %v5398 = vrot.slane %v4985, %v5397
        %v5399 = vsel %vm3429, %v5398, %v5394
        %v5400 = vlaneseq
        %v5401 = vshrl.u32 %v5400, 7
        %v5402 = vsub.s32 %v3377, %v5401
        %v5403 = vrot.slane %v4988, %v5402
        %v5404 = vlaneseq
        %v5405 = vshrl.u32 %v5404, 7
        %v5406 = vsub.s32 %v3382, %v5405
        %v5407 = vrot.slane %v4991, %v5406
        %v5408 = vsel %vm3387, %v5407, %v5403
        %v5409 = vlaneseq
        %v5410 = vshrl.u32 %v5409, 7
        %v5411 = vsub.s32 %v3389, %v5410
        %v5412 = vrot.slane %v4994, %v5411
        %v5413 = vsel %vm3394, %v5412, %v5408
        %v5414 = vlaneseq
        %v5415 = vshrl.u32 %v5414, 7
        %v5416 = vsub.s32 %v3396, %v5415
        %v5417 = vrot.slane %v4997, %v5416
        %v5418 = vsel %vm3401, %v5417, %v5413
        %v5419 = vlaneseq
        %v5420 = vshrl.u32 %v5419, 7
        %v5421 = vsub.s32 %v3403, %v5420
        %v5422 = vrot.slane %v5000, %v5421
        %v5423 = vsel %vm3408, %v5422, %v5418
        %v5424 = vlaneseq
        %v5425 = vshrl.u32 %v5424, 7
        %v5426 = vsub.s32 %v3410, %v5425
        %v5427 = vrot.slane %v5003, %v5426
        %v5428 = vsel %vm3415, %v5427, %v5423
        %v5429 = vlaneseq
        %v5430 = vshrl.u32 %v5429, 7
        %v5431 = vsub.s32 %v3417, %v5430
        %v5432 = vrot.slane %v5006, %v5431
        %v5433 = vsel %vm3422, %v5432, %v5428
        %v5434 = vlaneseq
        %v5435 = vshrl.u32 %v5434, 7
        %v5436 = vsub.s32 %v3424, %v5435
        %v5437 = vrot.slane %v5009, %v5436
        %v5438 = vsel %vm3429, %v5437, %v5433
        %v5439 = vlaneseq
        %v5440 = vshrl.u32 %v5439, 7
        %v5441 = vsub.s32 %v3377, %v5440
        %v5442 = vrot.slane %v5012, %v5441
        %v5443 = vlaneseq
        %v5444 = vshrl.u32 %v5443, 7
        %v5445 = vsub.s32 %v3382, %v5444
        %v5446 = vrot.slane %v5015, %v5445
        %v5447 = vsel %vm3387, %v5446, %v5442
        %v5448 = vlaneseq
        %v5449 = vshrl.u32 %v5448, 7
        %v5450 = vsub.s32 %v3389, %v5449
        %v5451 = vrot.slane %v5018, %v5450
        %v5452 = vsel %vm3394, %v5451, %v5447
        %v5453 = vlaneseq
        %v5454 = vshrl.u32 %v5453, 7
        %v5455 = vsub.s32 %v3396, %v5454
        %v5456 = vrot.slane %v5021, %v5455
        %v5457 = vsel %vm3401, %v5456, %v5452
        %v5458 = vlaneseq
        %v5459 = vshrl.u32 %v5458, 7
        %v5460 = vsub.s32 %v3403, %v5459
        %v5461 = vrot.slane %v5024, %v5460
        %v5462 = vsel %vm3408, %v5461, %v5457
        %v5463 = vlaneseq
        %v5464 = vshrl.u32 %v5463, 7
        %v5465 = vsub.s32 %v3410, %v5464
        %v5466 = vrot.slane %v5027, %v5465
        %v5467 = vsel %vm3415, %v5466, %v5462
        %v5468 = vlaneseq
        %v5469 = vshrl.u32 %v5468, 7
        %v5470 = vsub.s32 %v3417, %v5469
        %v5471 = vrot.slane %v5030, %v5470
        %v5472 = vsel %vm3422, %v5471, %v5467
        %v5473 = vlaneseq
        %v5474 = vshrl.u32 %v5473, 7
        %v5475 = vsub.s32 %v3424, %v5474
        %v5476 = vrot.slane %v5033, %v5475
        %v5477 = vsel %vm3429, %v5476, %v5472
        %v5478 = vlaneseq
        %v5479 = vshrl.u32 %v5478, 7
        %v5480 = vsub.s32 %v3377, %v5479
        %v5481 = vrot.slane %v5036, %v5480
        %v5482 = vlaneseq
        %v5483 = vshrl.u32 %v5482, 7
        %v5484 = vsub.s32 %v3382, %v5483
        %v5485 = vrot.slane %v5039, %v5484
        %v5486 = vsel %vm3387, %v5485, %v5481
        %v5487 = vlaneseq
        %v5488 = vshrl.u32 %v5487, 7
        %v5489 = vsub.s32 %v3389, %v5488
        %v5490 = vrot.slane %v5042, %v5489
        %v5491 = vsel %vm3394, %v5490, %v5486
        %v5492 = vlaneseq
        %v5493 = vshrl.u32 %v5492, 7
        %v5494 = vsub.s32 %v3396, %v5493
        %v5495 = vrot.slane %v5045, %v5494
        %v5496 = vsel %vm3401, %v5495, %v5491
        %v5497 = vlaneseq
        %v5498 = vshrl.u32 %v5497, 7
        %v5499 = vsub.s32 %v3403, %v5498
        %v5500 = vrot.slane %v5048, %v5499
        %v5501 = vsel %vm3408, %v5500, %v5496
        %v5502 = vlaneseq
        %v5503 = vshrl.u32 %v5502, 7
        %v5504 = vsub.s32 %v3410, %v5503
        %v5505 = vrot.slane %v5051, %v5504
        %v5506 = vsel %vm3415, %v5505, %v5501
        %v5507 = vlaneseq
        %v5508 = vshrl.u32 %v5507, 7
        %v5509 = vsub.s32 %v3417, %v5508
        %v5510 = vrot.slane %v5054, %v5509
        %v5511 = vsel %vm3422, %v5510, %v5506
        %v5512 = vlaneseq
        %v5513 = vshrl.u32 %v5512, 7
        %v5514 = vsub.s32 %v3424, %v5513
        %v5515 = vrot.slane %v5057, %v5514
        %v5516 = vsel %vm3429, %v5515, %v5511
        %v5517 = vlaneseq
        %v5518 = vshrl.u32 %v5517, 7
        %v5519 = vsub.s32 %v3377, %v5518
        %v5520 = vrot.slane %v5060, %v5519
        %v5521 = vlaneseq
        %v5522 = vshrl.u32 %v5521, 7
        %v5523 = vsub.s32 %v3382, %v5522
        %v5524 = vrot.slane %v5063, %v5523
        %v5525 = vsel %vm3387, %v5524, %v5520
        %v5526 = vlaneseq
        %v5527 = vshrl.u32 %v5526, 7
        %v5528 = vsub.s32 %v3389, %v5527
        %v5529 = vrot.slane %v5066, %v5528
        %v5530 = vsel %vm3394, %v5529, %v5525
        %v5531 = vlaneseq
        %v5532 = vshrl.u32 %v5531, 7
        %v5533 = vsub.s32 %v3396, %v5532
        %v5534 = vrot.slane %v5069, %v5533
        %v5535 = vsel %vm3401, %v5534, %v5530
        %v5536 = vlaneseq
        %v5537 = vshrl.u32 %v5536, 7
        %v5538 = vsub.s32 %v3403, %v5537
        %v5539 = vrot.slane %v5072, %v5538
        %v5540 = vsel %vm3408, %v5539, %v5535
        %v5541 = vlaneseq
        %v5542 = vshrl.u32 %v5541, 7
        %v5543 = vsub.s32 %v3410, %v5542
        %v5544 = vrot.slane %v5075, %v5543
        %v5545 = vsel %vm3415, %v5544, %v5540
        %v5546 = vlaneseq
        %v5547 = vshrl.u32 %v5546, 7
        %v5548 = vsub.s32 %v3417, %v5547
        %v5549 = vrot.slane %v5078, %v5548
        %v5550 = vsel %vm3422, %v5549, %v5545
        %v5551 = vlaneseq
        %v5552 = vshrl.u32 %v5551, 7
        %v5553 = vsub.s32 %v3424, %v5552
        %v5554 = vrot.slane %v5081, %v5553
        %v5555 = vsel %vm3429, %v5554, %v5550
        %v5556 = vlaneseq
        %v5557 = vshrl.u32 %v5556, 7
        %v5558 = vsub.s32 %v3377, %v5557
        %v5559 = vrot.slane %v5084, %v5558
        %v5560 = vlaneseq
        %v5561 = vshrl.u32 %v5560, 7
        %v5562 = vsub.s32 %v3382, %v5561
        %v5563 = vrot.slane %v5087, %v5562
        %v5564 = vsel %vm3387, %v5563, %v5559
        %v5565 = vlaneseq
        %v5566 = vshrl.u32 %v5565, 7
        %v5567 = vsub.s32 %v3389, %v5566
        %v5568 = vrot.slane %v5090, %v5567
        %v5569 = vsel %vm3394, %v5568, %v5564
        %v5570 = vlaneseq
        %v5571 = vshrl.u32 %v5570, 7
        %v5572 = vsub.s32 %v3396, %v5571
        %v5573 = vrot.slane %v5093, %v5572
        %v5574 = vsel %vm3401, %v5573, %v5569
        %v5575 = vlaneseq
        %v5576 = vshrl.u32 %v5575, 7
        %v5577 = vsub.s32 %v3403, %v5576
        %v5578 = vrot.slane %v5096, %v5577
        %v5579 = vsel %vm3408, %v5578, %v5574
        %v5580 = vlaneseq
        %v5581 = vshrl.u32 %v5580, 7
        %v5582 = vsub.s32 %v3410, %v5581
        %v5583 = vrot.slane %v5099, %v5582
        %v5584 = vsel %vm3415, %v5583, %v5579
        %v5585 = vlaneseq
        %v5586 = vshrl.u32 %v5585, 7
        %v5587 = vsub.s32 %v3417, %v5586
        %v5588 = vrot.slane %v5102, %v5587
        %v5589 = vsel %vm3422, %v5588, %v5584
        %v5590 = vlaneseq
        %v5591 = vshrl.u32 %v5590, 7
        %v5592 = vsub.s32 %v3424, %v5591
        %v5593 = vrot.slane %v5105, %v5592
        %v5594 = vsel %vm3429, %v5593, %v5589
        %v5595 = vlaneseq
        %v5596 = vshrl.u32 %v5595, 7
        %v5597 = vsub.s32 %v3377, %v5596
        %v5598 = vrot.slane %v5108, %v5597
        %v5599 = vlaneseq
        %v5600 = vshrl.u32 %v5599, 7
        %v5601 = vsub.s32 %v3382, %v5600
        %v5602 = vrot.slane %v5111, %v5601
        %v5603 = vsel %vm3387, %v5602, %v5598
        %v5604 = vlaneseq
        %v5605 = vshrl.u32 %v5604, 7
        %v5606 = vsub.s32 %v3389, %v5605
        %v5607 = vrot.slane %v5114, %v5606
        %v5608 = vsel %vm3394, %v5607, %v5603
        %v5609 = vlaneseq
        %v5610 = vshrl.u32 %v5609, 7
        %v5611 = vsub.s32 %v3396, %v5610
        %v5612 = vrot.slane %v5117, %v5611
        %v5613 = vsel %vm3401, %v5612, %v5608
        %v5614 = vlaneseq
        %v5615 = vshrl.u32 %v5614, 7
        %v5616 = vsub.s32 %v3403, %v5615
        %v5617 = vrot.slane %v5120, %v5616
        %v5618 = vsel %vm3408, %v5617, %v5613
        %v5619 = vlaneseq
        %v5620 = vshrl.u32 %v5619, 7
        %v5621 = vsub.s32 %v3410, %v5620
        %v5622 = vrot.slane %v5123, %v5621
        %v5623 = vsel %vm3415, %v5622, %v5618
        %v5624 = vlaneseq
        %v5625 = vshrl.u32 %v5624, 7
        %v5626 = vsub.s32 %v3417, %v5625
        %v5627 = vrot.slane %v5126, %v5626
        %v5628 = vsel %vm3422, %v5627, %v5623
        %v5629 = vlaneseq
        %v5630 = vshrl.u32 %v5629, 7
        %v5631 = vsub.s32 %v3424, %v5630
        %v5632 = vrot.slane %v5129, %v5631
        %v5633 = vsel %vm3429, %v5632, %v5628
        %v5634 = vlaneseq
        %v5635 = vshrl.u32 %v5634, 7
        %v5636 = vsub.s32 %v3377, %v5635
        %v5637 = vrot.slane %v5132, %v5636
        %v5638 = vlaneseq
        %v5639 = vshrl.u32 %v5638, 7
        %v5640 = vsub.s32 %v3382, %v5639
        %v5641 = vrot.slane %v5135, %v5640
        %v5642 = vsel %vm3387, %v5641, %v5637
        %v5643 = vlaneseq
        %v5644 = vshrl.u32 %v5643, 7
        %v5645 = vsub.s32 %v3389, %v5644
        %v5646 = vrot.slane %v5138, %v5645
        %v5647 = vsel %vm3394, %v5646, %v5642
        %v5648 = vlaneseq
        %v5649 = vshrl.u32 %v5648, 7
        %v5650 = vsub.s32 %v3396, %v5649
        %v5651 = vrot.slane %v5141, %v5650
        %v5652 = vsel %vm3401, %v5651, %v5647
        %v5653 = vlaneseq
        %v5654 = vshrl.u32 %v5653, 7
        %v5655 = vsub.s32 %v3403, %v5654
        %v5656 = vrot.slane %v5144, %v5655
        %v5657 = vsel %vm3408, %v5656, %v5652
        %v5658 = vlaneseq
        %v5659 = vshrl.u32 %v5658, 7
        %v5660 = vsub.s32 %v3410, %v5659
        %v5661 = vrot.slane %v5147, %v5660
        %v5662 = vsel %vm3415, %v5661, %v5657
        %v5663 = vlaneseq
        %v5664 = vshrl.u32 %v5663, 7
        %v5665 = vsub.s32 %v3417, %v5664
        %v5666 = vrot.slane %v5150, %v5665
        %v5667 = vsel %vm3422, %v5666, %v5662
        %v5668 = vlaneseq
        %v5669 = vshrl.u32 %v5668, 7
        %v5670 = vsub.s32 %v3424, %v5669
        %v5671 = vrot.slane %v5153, %v5670
        %v5672 = vsel %vm3429, %v5671, %v5667
        %v5673 = vlaneseq
        %v5674 = vshrl.u32 %v5673, 7
        %v5675 = vsub.s32 %v3377, %v5674
        %v5676 = vrot.slane %v5156, %v5675
        %v5677 = vlaneseq
        %v5678 = vshrl.u32 %v5677, 7
        %v5679 = vsub.s32 %v3382, %v5678
        %v5680 = vrot.slane %v5159, %v5679
        %v5681 = vsel %vm3387, %v5680, %v5676
        %v5682 = vlaneseq
        %v5683 = vshrl.u32 %v5682, 7
        %v5684 = vsub.s32 %v3389, %v5683
        %v5685 = vrot.slane %v5162, %v5684
        %v5686 = vsel %vm3394, %v5685, %v5681
        %v5687 = vlaneseq
        %v5688 = vshrl.u32 %v5687, 7
        %v5689 = vsub.s32 %v3396, %v5688
        %v5690 = vrot.slane %v5165, %v5689
        %v5691 = vsel %vm3401, %v5690, %v5686
        %v5692 = vlaneseq
        %v5693 = vshrl.u32 %v5692, 7
        %v5694 = vsub.s32 %v3403, %v5693
        %v5695 = vrot.slane %v5168, %v5694
        %v5696 = vsel %vm3408, %v5695, %v5691
        %v5697 = vlaneseq
        %v5698 = vshrl.u32 %v5697, 7
        %v5699 = vsub.s32 %v3410, %v5698
        %v5700 = vrot.slane %v5171, %v5699
        %v5701 = vsel %vm3415, %v5700, %v5696
        %v5702 = vlaneseq
        %v5703 = vshrl.u32 %v5702, 7
        %v5704 = vsub.s32 %v3417, %v5703
        %v5705 = vrot.slane %v5174, %v5704
        %v5706 = vsel %vm3422, %v5705, %v5701
        %v5707 = vlaneseq
        %v5708 = vshrl.u32 %v5707, 7
        %v5709 = vsub.s32 %v3424, %v5708
        %v5710 = vrot.slane %v5177, %v5709
        %v5711 = vsel %vm3429, %v5710, %v5706
        %v5712 = vlaneseq
        %v5713 = vshrl.u32 %v5712, 7
        %v5714 = vsub.s32 %v3377, %v5713
        %v5715 = vrot.slane %v5180, %v5714
        %v5716 = vlaneseq
        %v5717 = vshrl.u32 %v5716, 7
        %v5718 = vsub.s32 %v3382, %v5717
        %v5719 = vrot.slane %v5183, %v5718
        %v5720 = vsel %vm3387, %v5719, %v5715
        %v5721 = vlaneseq
        %v5722 = vshrl.u32 %v5721, 7
        %v5723 = vsub.s32 %v3389, %v5722
        %v5724 = vrot.slane %v5186, %v5723
        %v5725 = vsel %vm3394, %v5724, %v5720
        %v5726 = vlaneseq
        %v5727 = vshrl.u32 %v5726, 7
        %v5728 = vsub.s32 %v3396, %v5727
        %v5729 = vrot.slane %v5189, %v5728
        %v5730 = vsel %vm3401, %v5729, %v5725
        %v5731 = vlaneseq
        %v5732 = vshrl.u32 %v5731, 7
        %v5733 = vsub.s32 %v3403, %v5732
        %v5734 = vrot.slane %v5192, %v5733
        %v5735 = vsel %vm3408, %v5734, %v5730
        %v5736 = vlaneseq
        %v5737 = vshrl.u32 %v5736, 7
        %v5738 = vsub.s32 %v3410, %v5737
        %v5739 = vrot.slane %v5195, %v5738
        %v5740 = vsel %vm3415, %v5739, %v5735
        %v5741 = vlaneseq
        %v5742 = vshrl.u32 %v5741, 7
        %v5743 = vsub.s32 %v3417, %v5742
        %v5744 = vrot.slane %v5198, %v5743
        %v5745 = vsel %vm3422, %v5744, %v5740
        %v5746 = vlaneseq
        %v5747 = vshrl.u32 %v5746, 7
        %v5748 = vsub.s32 %v3424, %v5747
        %v5749 = vrot.slane %v5201, %v5748
        %v5750 = vsel %vm3429, %v5749, %v5745
        %v5751 = vlaneseq
        %v5752 = vshrl.u32 %v5751, 7
        %v5753 = vsub.s32 %v3377, %v5752
        %v5754 = vrot.slane %v5204, %v5753
        %v5755 = vlaneseq
        %v5756 = vshrl.u32 %v5755, 7
        %v5757 = vsub.s32 %v3382, %v5756
        %v5758 = vrot.slane %v5207, %v5757
        %v5759 = vsel %vm3387, %v5758, %v5754
        %v5760 = vlaneseq
        %v5761 = vshrl.u32 %v5760, 7
        %v5762 = vsub.s32 %v3389, %v5761
        %v5763 = vrot.slane %v5210, %v5762
        %v5764 = vsel %vm3394, %v5763, %v5759
        %v5765 = vlaneseq
        %v5766 = vshrl.u32 %v5765, 7
        %v5767 = vsub.s32 %v3396, %v5766
        %v5768 = vrot.slane %v5213, %v5767
        %v5769 = vsel %vm3401, %v5768, %v5764
        %v5770 = vlaneseq
        %v5771 = vshrl.u32 %v5770, 7
        %v5772 = vsub.s32 %v3403, %v5771
        %v5773 = vrot.slane %v5216, %v5772
        %v5774 = vsel %vm3408, %v5773, %v5769
        %v5775 = vlaneseq
        %v5776 = vshrl.u32 %v5775, 7
        %v5777 = vsub.s32 %v3410, %v5776
        %v5778 = vrot.slane %v5219, %v5777
        %v5779 = vsel %vm3415, %v5778, %v5774
        %v5780 = vlaneseq
        %v5781 = vshrl.u32 %v5780, 7
        %v5782 = vsub.s32 %v3417, %v5781
        %v5783 = vrot.slane %v5222, %v5782
        %v5784 = vsel %vm3422, %v5783, %v5779
        %v5785 = vlaneseq
        %v5786 = vshrl.u32 %v5785, 7
        %v5787 = vsub.s32 %v3424, %v5786
        %v5788 = vrot.slane %v5225, %v5787
        %v5789 = vsel %vm3429, %v5788, %v5784
        %v5790 = vlaneseq
        %v5791 = vshrl.u32 %v5790, 7
        %v5792 = vsub.s32 %v3377, %v5791
        %v5793 = vrot.slane %v5228, %v5792
        %v5794 = vlaneseq
        %v5795 = vshrl.u32 %v5794, 7
        %v5796 = vsub.s32 %v3382, %v5795
        %v5797 = vrot.slane %v5231, %v5796
        %v5798 = vsel %vm3387, %v5797, %v5793
        %v5799 = vlaneseq
        %v5800 = vshrl.u32 %v5799, 7
        %v5801 = vsub.s32 %v3389, %v5800
        %v5802 = vrot.slane %v5234, %v5801
        %v5803 = vsel %vm3394, %v5802, %v5798
        %v5804 = vlaneseq
        %v5805 = vshrl.u32 %v5804, 7
        %v5806 = vsub.s32 %v3396, %v5805
        %v5807 = vrot.slane %v5237, %v5806
        %v5808 = vsel %vm3401, %v5807, %v5803
        %v5809 = vlaneseq
        %v5810 = vshrl.u32 %v5809, 7
        %v5811 = vsub.s32 %v3403, %v5810
        %v5812 = vrot.slane %v5240, %v5811
        %v5813 = vsel %vm3408, %v5812, %v5808
        %v5814 = vlaneseq
        %v5815 = vshrl.u32 %v5814, 7
        %v5816 = vsub.s32 %v3410, %v5815
        %v5817 = vrot.slane %v5243, %v5816
        %v5818 = vsel %vm3415, %v5817, %v5813
        %v5819 = vlaneseq
        %v5820 = vshrl.u32 %v5819, 7
        %v5821 = vsub.s32 %v3417, %v5820
        %v5822 = vrot.slane %v5246, %v5821
        %v5823 = vsel %vm3422, %v5822, %v5818
        %v5824 = vlaneseq
        %v5825 = vshrl.u32 %v5824, 7
        %v5826 = vsub.s32 %v3424, %v5825
        %v5827 = vrot.slane %v5249, %v5826
        %v5828 = vsel %vm3429, %v5827, %v5823
        %v5829 = vlaneseq
        %v5830 = vshrl.u32 %v5829, 7
        %v5831 = vsub.s32 %v3377, %v5830
        %v5832 = vrot.slane %v5252, %v5831
        %v5833 = vlaneseq
        %v5834 = vshrl.u32 %v5833, 7
        %v5835 = vsub.s32 %v3382, %v5834
        %v5836 = vrot.slane %v5255, %v5835
        %v5837 = vsel %vm3387, %v5836, %v5832
        %v5838 = vlaneseq
        %v5839 = vshrl.u32 %v5838, 7
        %v5840 = vsub.s32 %v3389, %v5839
        %v5841 = vrot.slane %v5258, %v5840
        %v5842 = vsel %vm3394, %v5841, %v5837
        %v5843 = vlaneseq
        %v5844 = vshrl.u32 %v5843, 7
        %v5845 = vsub.s32 %v3396, %v5844
        %v5846 = vrot.slane %v5261, %v5845
        %v5847 = vsel %vm3401, %v5846, %v5842
        %v5848 = vlaneseq
        %v5849 = vshrl.u32 %v5848, 7
        %v5850 = vsub.s32 %v3403, %v5849
        %v5851 = vrot.slane %v5264, %v5850
        %v5852 = vsel %vm3408, %v5851, %v5847
        %v5853 = vlaneseq
        %v5854 = vshrl.u32 %v5853, 7
        %v5855 = vsub.s32 %v3410, %v5854
        %v5856 = vrot.slane %v5267, %v5855
        %v5857 = vsel %vm3415, %v5856, %v5852
        %v5858 = vlaneseq
        %v5859 = vshrl.u32 %v5858, 7
        %v5860 = vsub.s32 %v3417, %v5859
        %v5861 = vrot.slane %v5270, %v5860
        %v5862 = vsel %vm3422, %v5861, %v5857
        %v5863 = vlaneseq
        %v5864 = vshrl.u32 %v5863, 7
        %v5865 = vsub.s32 %v3424, %v5864
        %v5866 = vrot.slane %v5273, %v5865
        %v5867 = vsel %vm3429, %v5866, %v5862
        %v5868 = vlaneseq
        %v5869 = vshrl.u32 %v5868, 7
        %v5870 = vsub.s32 %v3377, %v5869
        %v5871 = vrot.slane %v5276, %v5870
        %v5872 = vlaneseq
        %v5873 = vshrl.u32 %v5872, 7
        %v5874 = vsub.s32 %v3382, %v5873
        %v5875 = vrot.slane %v5279, %v5874
        %v5876 = vsel %vm3387, %v5875, %v5871
        %v5877 = vlaneseq
        %v5878 = vshrl.u32 %v5877, 7
        %v5879 = vsub.s32 %v3389, %v5878
        %v5880 = vrot.slane %v5282, %v5879
        %v5881 = vsel %vm3394, %v5880, %v5876
        %v5882 = vlaneseq
        %v5883 = vshrl.u32 %v5882, 7
        %v5884 = vsub.s32 %v3396, %v5883
        %v5885 = vrot.slane %v5285, %v5884
        %v5886 = vsel %vm3401, %v5885, %v5881
        %v5887 = vlaneseq
        %v5888 = vshrl.u32 %v5887, 7
        %v5889 = vsub.s32 %v3403, %v5888
        %v5890 = vrot.slane %v5288, %v5889
        %v5891 = vsel %vm3408, %v5890, %v5886
        %v5892 = vlaneseq
        %v5893 = vshrl.u32 %v5892, 7
        %v5894 = vsub.s32 %v3410, %v5893
        %v5895 = vrot.slane %v5291, %v5894
        %v5896 = vsel %vm3415, %v5895, %v5891
        %v5897 = vlaneseq
        %v5898 = vshrl.u32 %v5897, 7
        %v5899 = vsub.s32 %v3417, %v5898
        %v5900 = vrot.slane %v5294, %v5899
        %v5901 = vsel %vm3422, %v5900, %v5896
        %v5902 = vlaneseq
        %v5903 = vshrl.u32 %v5902, 7
        %v5904 = vsub.s32 %v3424, %v5903
        %v5905 = vrot.slane %v5297, %v5904
        %v5906 = vsel %vm3429, %v5905, %v5901
        %v5907 = vlaneseq
        %v5908 = vshrl.u32 %v5907, 7
        %v5909 = vsub.s32 %v3377, %v5908
        %v5910 = vrot.slane %v5300, %v5909
        %v5911 = vlaneseq
        %v5912 = vshrl.u32 %v5911, 7
        %v5913 = vsub.s32 %v3382, %v5912
        %v5914 = vrot.slane %v5303, %v5913
        %v5915 = vsel %vm3387, %v5914, %v5910
        %v5916 = vlaneseq
        %v5917 = vshrl.u32 %v5916, 7
        %v5918 = vsub.s32 %v3389, %v5917
        %v5919 = vrot.slane %v5306, %v5918
        %v5920 = vsel %vm3394, %v5919, %v5915
        %v5921 = vlaneseq
        %v5922 = vshrl.u32 %v5921, 7
        %v5923 = vsub.s32 %v3396, %v5922
        %v5924 = vrot.slane %v5309, %v5923
        %v5925 = vsel %vm3401, %v5924, %v5920
        %v5926 = vlaneseq
        %v5927 = vshrl.u32 %v5926, 7
        %v5928 = vsub.s32 %v3403, %v5927
        %v5929 = vrot.slane %v5312, %v5928
        %v5930 = vsel %vm3408, %v5929, %v5925
        %v5931 = vlaneseq
        %v5932 = vshrl.u32 %v5931, 7
        %v5933 = vsub.s32 %v3410, %v5932
        %v5934 = vrot.slane %v5315, %v5933
        %v5935 = vsel %vm3415, %v5934, %v5930
        %v5936 = vlaneseq
        %v5937 = vshrl.u32 %v5936, 7
        %v5938 = vsub.s32 %v3417, %v5937
        %v5939 = vrot.slane %v5318, %v5938
        %v5940 = vsel %vm3422, %v5939, %v5935
        %v5941 = vlaneseq
        %v5942 = vshrl.u32 %v5941, 7
        %v5943 = vsub.s32 %v3424, %v5942
        %v5944 = vrot.slane %v5321, %v5943
        %v5945 = vsel %vm3429, %v5944, %v5940
        %v5946 = vsel %vm4016, %v5399, %v5360
        %v5947 = vsel %vm4018, %v5438, %v5946
        %v5948 = vsel %vm4020, %v5477, %v5947
        %v5949 = vsel %vm4022, %v5516, %v5948
        %v5950 = vsel %vm4024, %v5555, %v5949
        %v5951 = vsel %vm4026, %v5594, %v5950
        %v5952 = vsel %vm4028, %v5633, %v5951
        %v5953 = vsel %vm4016, %v5711, %v5672
        %v5954 = vsel %vm4018, %v5750, %v5953
        %v5955 = vsel %vm4020, %v5789, %v5954
        %v5956 = vsel %vm4022, %v5828, %v5955
        %v5957 = vsel %vm4024, %v5867, %v5956
        %v5958 = vsel %vm4026, %v5906, %v5957
        %v5959 = vsel %vm4028, %v5945, %v5958
        %s5962 = scalar_lea.vmem %s1259, 16 [#allocation3]
        %5963 = vst.msk [vmem:[%s5962] sm:$0xff] %vm1661, %v5952
        %5964 = vst.msk [vmem:[%s5962 + $0x8] sm:$0xff] %vm1661, %v5959
        %s5965 = sand.u32 %s103, 1
        %s5966 = scalar_lea.sflag [#allocation4], %s5965
        %s5967 = sand.u32 %s103, 1
        %s5968 = smul.addr %s5967, 32
        %s5969 = scalar_lea.vmem [#allocation3], %s5968
        // Predicated region
        $region71: #{forward.1} parent=65 // pred_check
          %p5970 = pneg %p113
        $region72: #{forward.1} parent=65 // pred_check_branch
          %5972 = sbr.rel (%p5970) target = $region74
        $region73: #{forward.1} parent=65 // pred_region
          #allocation6 [shape = 'u32[6]{0}', space=smem, size = 0x18, scoped, tag = 'DMA stride descriptor']
          %s5973 = smul.u32 2, %s17
          %s5975 = ssub.s32 512, 512
          %5976 = vsyncadd %s5966, %s5975
          %s5977 = smul.addr %s5973, 128
          %s5978 = scalar_lea.hbm %s3, %s5977
          %s5980 = sshll.u32 1, 14
          %s5981 = sxor.u32 4294967295, %s5980
          %s5984 = sshll.u32 7, 18
          %s5985 = sxor.u32 4294967295, %s5984
          %s5986 = sand.u32 0, %s5985
          %s5988 = sor.u32 %s5986, 0
          %s5989 = sshll.u32 %s5969, 4
          %s5990 = int_to_ptr.vmem [resolvable:$true] %s5989
          %5996 = sst [smem:[#allocation6]] 256
          %s5997 = scalar_lea.smem [#allocation6], 1
          %5998 = sst [smem:[%s5997]] 1024
          %s5999 = scalar_lea.smem [#allocation6], 2
          %6000 = sst [smem:[%s5999]] 2
          %s6001 = scalar_lea.smem [#allocation6], 3
          %6002 = sst [smem:[%s6001]] 128
          %s6003 = scalar_lea.smem [#allocation6], 4
          %6004 = sst [smem:[%s6003]] 128
          %s6005 = scalar_lea.smem [#allocation6], 5
          %6006 = sst [smem:[%s6005]] 8
          %6008 = dma.general %s5990, 512, %s5978, %s5966, 131072, [#allocation6], %s5988, 0
        $region74: #{forward.1} parent=65 // pred_fallthru
          _
      $region66: #{forward.1} parent=5 // pred_fallthru
        _
      %p6009 = scmp.le.s32.totalorder 2, %s12
      // Predicated region
      $region75: #{forward.1} parent=5 // pred_check
        %p6010 = pneg %p6009
      $region76: #{forward.1} parent=5 // pred_check_branch
        %6012 = sbr.rel (%p6010) target = $region78
      $region77: #{forward.1} parent=5 // pred_region
        %s6013 = ssub.s32 %s12, 2
        // Predicated region
        $region79: #{forward.1} parent=77 // pred_check
          %p6014 = pneg %p119
        $region80: #{forward.1} parent=77 // pred_check_branch
          %6016 = sbr.rel (%p6014) target = $region82
        $region81: #{forward.1} parent=77 // pred_region
          %s6017 = sand.u32 %s104, 1
          %s6018 = scalar_lea.sflag [#allocation4], %s6017
          %s6019 = sand.u32 %s104, 1
          %s6020 = smul.addr %s6019, 32
          %s6021 = scalar_lea.vmem [#allocation3], %s6020
          %6022 = dma.done %s6018, 512
        $region82: #{forward.1} parent=77 // pred_fallthru
          _
      $region78: #{forward.1} parent=5 // pred_fallthru
        _
    $region6: #{forward.1} parent=1 // loop_footer
      %s16 = sadd.s32 1, %s12
    $region7: #{forward.1} parent=1 // loop_footer_branch
      %11 = sbr.rel target = $region3
    $region8: #{forward.1} parent=1 // loop_exit
      _
    %6023 = vsyncpa [#allocation4], 1
    %s6024 = scalar_lea.sflag [#allocation4], 1
    %6025 = vsyncpa %s6024, 1

</llo_original>
